<compile_context>
chip_gen: v7x
topology: tpu7x:2x2x1
jax: 0.10.0
libtpu: 0.0.40
codegen_flags: <defaults>
</compile_context>

<pallas_src>
import numpy as np
import jax
import jax.numpy as jnp
from jax.experimental import pallas as pl
from jax.experimental.pallas import tpu as pltpu


def _shift_left_lanes(x):
    """result[:, c] = x[:, c+1]; the (never selected) last column is duplicated."""
    return jnp.concatenate([x[:, 1:], x[:, -1:]], axis=1)


# ---------------------------------------------------------------------------
# Fused forward kernel (one batch tile per grid step, batch folded into M)
# ---------------------------------------------------------------------------
def _fused_forward_kernel(x_ref, w1t_ref, b1t_ref, w2t_ref, b2t_ref,
                          s1_ref, s2_ref, wf_ref, fcb_ref, out_ref):
    bt = x_ref.shape[1]
    bf16 = jnp.bfloat16

    def mm(a, b):
        return jnp.dot(a, b, preferred_element_type=jnp.float32)

    # ---- conv1 (1 -> 10, k=5): 5 width-Toeplitz matmuls; rows = ih*bt + b ----
    xf = x_ref[...].reshape(28 * bt, 28)                      # bf16
    out1 = mm(xf[0:24 * bt, :], w1t_ref[0])
    for ki in range(1, 5):
        out1 = out1 + mm(xf[ki * bt:(ki + 24) * bt, :], w1t_ref[ki])
    out1 = out1 + b1t_ref[...]                                # (24*bt, 240) f32

    # ---- 2x2 max-pool + ReLU ----
    # Row pool: aligned sublane-block max (rows oh*bt+b -> r*bt+b).
    o3 = out1.reshape(12, 2 * bt, 240)
    rmax1 = jnp.maximum(o3[:, :bt, :], o3[:, bt:, :]).reshape(12 * bt, 240)
    # Column pool: lane shift + max, then ONE even-column 0/1 selector matmul.
    cmax1 = jnp.maximum(rmax1, _shift_left_lanes(rmax1))
    a1 = jnp.maximum(mm(cmax1.astype(bf16), s1_ref[...]), 0.0)  # (12*bt, 120)
    a1 = a1.astype(bf16)

    # ---- conv2 (10 -> 20, k=5): 5 width-Toeplitz matmuls ----
    out2 = mm(a1[0:8 * bt, :], w2t_ref[0])
    for ki in range(1, 5):
        out2 = out2 + mm(a1[ki * bt:(ki + 8) * bt, :], w2t_ref[ki])
    out2 = out2 + b2t_ref[...]                                # (8*bt, 160) f32

    p3 = out2.reshape(4, 2 * bt, 160)
    rmax2 = jnp.maximum(p3[:, :bt, :], p3[:, bt:, :]).reshape(4 * bt, 160)
    cmax2 = jnp.maximum(rmax2, _shift_left_lanes(rmax2))
    a2 = jnp.maximum(mm(cmax2.astype(bf16), s2_ref[...]), 0.0)  # (4*bt, 80)
    a2 = a2.astype(bf16)

    # TODO(synk): F.dropout treated as identity (eval mode); training-mode
    # stochastic dropout is not implemented.

    # ---- fc1 (320 -> 10): NCHW-flatten permutation folded into wf; class
    # axis lane-padded to 128 so the output store is one unmasked slab.
    h = mm(a2[0:bt, :], wf_ref[0])
    for r in range(1, 4):
        h = h + mm(a2[r * bt:(r + 1) * bt, :], wf_ref[r])
    h = jnp.maximum(h + fcb_ref[...], 0.0)                    # (bt, 128) f32

    # log_softmax over the 10 real classes (pad lanes forced very negative).
    lane = jax.lax.broadcasted_iota(jnp.int32, h.shape, 1)
    h = jnp.where(lane < 10, h, -1e30)
    m = jnp.max(h, axis=1, keepdims=True)
    lse = m + jnp.log(jnp.sum(jnp.exp(h - m), axis=1, keepdims=True))
    out_ref[...] = h - lse


# ---------------------------------------------------------------------------
# One-time host-side weight packing (Toeplitz matrices, even-column pool
# selectors, permuted + lane-padded FC weight).  Done with numpy, outside jit.
# ---------------------------------------------------------------------------
def pack_params(params):
    w1 = np.asarray(params["conv1_w"], np.float32)   # (10, 1, 5, 5)
    b1 = np.asarray(params["conv1_b"], np.float32)   # (10,)
    w2 = np.asarray(params["conv2_w"], np.float32)   # (20, 10, 5, 5)
    b2 = np.asarray(params["conv2_b"], np.float32)   # (20,)
    fw = np.asarray(params["fc1_w"], np.float32)     # (10, 320)
    fb = np.asarray(params["fc1_b"], np.float32)     # (10,)

    # conv1: W1T[ki, ow+kj, co*24+ow] = w1[co, 0, ki, kj]
    W1T = np.zeros((5, 28, 240), np.float32)
    for co in range(10):
        for ki in range(5):
            for kj in range(5):
                for ow in range(24):
                    W1T[ki, ow + kj, co * 24 + ow] = w1[co, 0, ki, kj]
    b1t = np.repeat(b1, 24)[None, :]                 # (1, 240)

    # conv2: W2T[ki, ci*12+ow+kj, co*8+ow] = w2[co, ci, ki, kj]
    W2T = np.zeros((5, 120, 160), np.float32)
    for co in range(20):
        for ci in range(10):
            for ki in range(5):
                for kj in range(5):
                    for ow in range(8):
                        W2T[ki, ci * 12 + ow + kj, co * 8 + ow] = w2[co, ci, ki, kj]
    b2t = np.repeat(b2, 8)[None, :]                  # (1, 160)

    # Even-column 2:1 pool selectors (right-multiplies, batch-friendly).
    S1 = np.zeros((240, 120), np.float32)
    for ci in range(10):
        for t in range(12):
            S1[ci * 24 + 2 * t, ci * 12 + t] = 1.0
    S2 = np.zeros((160, 80), np.float32)
    for co in range(20):
        for t in range(4):
            S2[co * 8 + 2 * t, co * 4 + t] = 1.0

    # fc1 weight permuted to (row=oh, col=co*4+ow) and lane-padded to 128
    # classes (torch flattens NCHW: index = co*16 + oh*4 + ow).
    WF = np.zeros((4, 80, 128), np.float32)
    for co in range(20):
        for oh in range(4):
            for ow in range(4):
                WF[oh, co * 4 + ow, :10] = fw[:, co * 16 + oh * 4 + ow]
    fcb = np.zeros((1, 128), np.float32)
    fcb[0, :10] = fb

    return {
        "w1t": jnp.asarray(W1T, jnp.bfloat16),
        "b1t": jnp.asarray(b1t, jnp.float32),
        "w2t": jnp.asarray(W2T, jnp.bfloat16),
        "b2t": jnp.asarray(b2t, jnp.float32),
        "s1": jnp.asarray(S1, jnp.bfloat16),
        "s2": jnp.asarray(S2, jnp.bfloat16),
        "wf": jnp.asarray(WF, jnp.bfloat16),
        "fcb": jnp.asarray(fcb, jnp.float32),
    }


# ---------------------------------------------------------------------------
# Parameters (deterministic, PyTorch-default-style uniform init)
# ---------------------------------------------------------------------------
def init_params(key):
    k1, k2, k3, k4, k5, k6 = jax.random.split(key, 6)

    def uni(k, shape, fan_in):
        bound = 1.0 / (fan_in ** 0.5)
        return jax.random.uniform(k, shape, jnp.float32, -bound, bound)

    return {
        "conv1_w": uni(k1, (10, 1, 5, 5), 1 * 5 * 5),
        "conv1_b": uni(k2, (10,), 1 * 5 * 5),
        "conv2_w": uni(k3, (20, 10, 5, 5), 10 * 5 * 5),
        "conv2_b": uni(k4, (20,), 10 * 5 * 5),
        "fc1_w": uni(k5, (10, 320), 320),
        "fc1_b": uni(k6, (10,), 320),
    }


def _round_up(a, b):
    return (a + b - 1) // b * b


# ---------------------------------------------------------------------------
# Forward pass: one pallas_call for the whole network
# ---------------------------------------------------------------------------
@jax.jit
def forward(packed, x_nchw):
    n = x_nchw.shape[0]
    assert x_nchw.shape[1:] == (1, 28, 28), "module requires 1x28x28 inputs"
    x = x_nchw[:, 0, :, :].astype(jnp.bfloat16)        # (N, 28, 28)

    # Batch tile: 128 for large batches (>=2 grid steps keeps v7x's two
    # TensorCores busy at N>=256); tiny batches just round up to 8.
    bt = 128 if n >= 128 else _round_up(n, 8)
    n_pad = _round_up(n, bt)
    if n_pad != n:
        x = jnp.pad(x, ((0, n_pad - n), (0, 0), (0, 0)))
    xT = jnp.transpose(x, (1, 0, 2))                   # (28, n_pad, 28)

    full3 = lambda i: (0, 0, 0)
    full2 = lambda i: (0, 0)
    out = pl.pallas_call(
        _fused_forward_kernel,
        out_shape=jax.ShapeDtypeStruct((n_pad, 128), jnp.float32),
        grid=(n_pad // bt,),
        in_specs=[
            pl.BlockSpec((28, bt, 28), lambda i: (0, i, 0)),   # x batch tile
            pl.BlockSpec((5, 28, 240), full3),                 # W1T
            pl.BlockSpec((1, 240), full2),                     # b1 tiled
            pl.BlockSpec((5, 120, 160), full3),                # W2T
            pl.BlockSpec((1, 160), full2),                     # b2 tiled
            pl.BlockSpec((240, 120), full2),                   # pool-1 selector
            pl.BlockSpec((160, 80), full2),                    # pool-2 selector
            pl.BlockSpec((4, 80, 128), full3),                 # permuted fc1 w
            pl.BlockSpec((1, 128), full2),                     # fc1 b (padded)
        ],
        out_specs=pl.BlockSpec((bt, 128), lambda i: (i, 0)),
        compiler_params=pltpu.CompilerParams(
            dimension_semantics=("parallel",),
            vmem_limit_bytes=48 * 1024 * 1024),
    )(xT, packed["w1t"], packed["b1t"], packed["w2t"], packed["b2t"],
      packed["s1"], packed["s2"], packed["wf"], packed["fcb"])
    return out[:n, :10]


# ---------------------------------------------------------------------------
# Pure-JAX reference (for a numerical sanity check)
# ---------------------------------------------------------------------------
@jax.jit
def reference_forward(params, x):
    hp = jax.lax.Precision.HIGHEST
    dn = ("NCHW", "OIHW", "NCHW")
    y = jax.lax.conv_general_dilated(x, params["conv1_w"], (1, 1), "VALID",
                                     dimension_numbers=dn, precision=hp)
    y = y + params["conv1_b"][None, :, None, None]
    y = jax.lax.reduce_window(y, -jnp.inf, jax.lax.max,
                              (1, 1, 2, 2), (1, 1, 2, 2), "VALID")
    y = jnp.maximum(y, 0.0)
    y = jax.lax.conv_general_dilated(y, params["conv2_w"], (1, 1), "VALID",
                                     dimension_numbers=dn, precision=hp)
    y = y + params["conv2_b"][None, :, None, None]
    y = jax.lax.reduce_window(y, -jnp.inf, jax.lax.max,
                              (1, 1, 2, 2), (1, 1, 2, 2), "VALID")
    y = jnp.maximum(y, 0.0)
    y = y.reshape(y.shape[0], -1)                              # NCHW flatten
    h = jnp.maximum(jnp.dot(y, params["fc1_w"].T, precision=hp)
                    + params["fc1_b"], 0.0)
    return jax.nn.log_softmax(h, axis=1)


if __name__ == "__main__":
    key = jax.random.PRNGKey(0)
    pkey, xkey = jax.random.split(key)
    params = init_params(pkey)
    packed = pack_params(params)          # one-time host-side weight packing
    # Shapes forced by the module: 1x28x28 input so that the flatten is 320.
    x = jax.random.normal(xkey, (2, 1, 28, 28), dtype=jnp.float32)

    out = forward(packed, x)
    jax.block_until_ready(out)
    assert out.shape == (2, 10) and out.dtype == jnp.float32

    ref = reference_forward(params, x)
    err = float(jnp.max(jnp.abs(out - ref)))
    assert err < 5e-2, f"Pallas output mismatch vs reference: max abs err = {err}"
    print("KERNEL_OK")
</pallas_src>

<mosaic_0001>
module attributes {stable_mosaic.version = 11 : i64} {
  func.func @_fused_forward_kernel(%arg0: i32, %arg1: memref<28x8x28xbf16, #tpu.memory_space<vmem>>, %arg2: memref<5x28x240xbf16, #tpu.memory_space<vmem>>, %arg3: memref<1x240xf32, #tpu.memory_space<vmem>>, %arg4: memref<5x120x160xbf16, #tpu.memory_space<vmem>>, %arg5: memref<1x160xf32, #tpu.memory_space<vmem>>, %arg6: memref<240x120xbf16, #tpu.memory_space<vmem>>, %arg7: memref<160x80xbf16, #tpu.memory_space<vmem>>, %arg8: memref<4x80x128xbf16, #tpu.memory_space<vmem>>, %arg9: memref<1x128xf32, #tpu.memory_space<vmem>>, %arg10: memref<8x128xf32, #tpu.memory_space<vmem>>) attributes {dimension_semantics = [#tpu.dimension_semantics<parallel>], iteration_bounds = array<i64: 1>, scalar_prefetch = 0 : i64, scratch_operands = 0 : i64, tpu.core_type = #tpu.core_type<tc>, window_params = [{transform_indices = @transform_0, window_bounds = array<i64: 28, 8, 28>}, {pipeline_mode = #tpu.pipeline_mode<synchronous>, transform_indices = @transform_1, window_bounds = array<i64: 5, 28, 240>}, {pipeline_mode = #tpu.pipeline_mode<synchronous>, transform_indices = @transform_2, window_bounds = array<i64: 1, 240>}, {pipeline_mode = #tpu.pipeline_mode<synchronous>, transform_indices = @transform_3, window_bounds = array<i64: 5, 120, 160>}, {pipeline_mode = #tpu.pipeline_mode<synchronous>, transform_indices = @transform_4, window_bounds = array<i64: 1, 160>}, {pipeline_mode = #tpu.pipeline_mode<synchronous>, transform_indices = @transform_5, window_bounds = array<i64: 240, 120>}, {pipeline_mode = #tpu.pipeline_mode<synchronous>, transform_indices = @transform_6, window_bounds = array<i64: 160, 80>}, {pipeline_mode = #tpu.pipeline_mode<synchronous>, transform_indices = @transform_7, window_bounds = array<i64: 4, 80, 128>}, {pipeline_mode = #tpu.pipeline_mode<synchronous>, transform_indices = @transform_8, window_bounds = array<i64: 1, 128>}, {transform_indices = @transform_9, window_bounds = array<i64: 8, 128>}]} {
    %c0 = arith.constant 0 : index
    %c0_0 = arith.constant 0 : index
    %c0_1 = arith.constant 0 : index
    %0 = vector.load %arg1[%c0, %c0_0, %c0_1] : memref<28x8x28xbf16, #tpu.memory_space<vmem>>, vector<28x8x28xbf16>
    %1 = vector.shape_cast %0 : vector<28x8x28xbf16> to vector<224x28xbf16>
    %2 = vector.extract_strided_slice %1 {offsets = [0, 0], sizes = [192, 28], strides = [1, 1]} : vector<224x28xbf16> to vector<192x28xbf16>
    %c0_2 = arith.constant 0 : index
    %c0_3 = arith.constant 0 : index
    %c0_4 = arith.constant 0 : index
    %3 = vector.load %arg2[%c0_2, %c0_3, %c0_4] : memref<5x28x240xbf16, #tpu.memory_space<vmem>>, vector<1x28x240xbf16>
    %4 = vector.shape_cast %3 : vector<1x28x240xbf16> to vector<28x240xbf16>
    %cst = arith.constant dense<0.000000e+00> : vector<192x240xf32>
    %5 = tpu.matmul %2, %4, %cst {dimension_numbers = #tpu.dot_dimension_numbers<[1], [0], [0], [1], [0, 0, 1, 1], [], []>} : vector<192x28xbf16>, vector<28x240xbf16>, vector<192x240xf32> -> vector<192x240xf32>
    %6 = vector.extract_strided_slice %1 {offsets = [8, 0], sizes = [192, 28], strides = [1, 1]} : vector<224x28xbf16> to vector<192x28xbf16>
    %c1 = arith.constant 1 : index
    %c0_5 = arith.constant 0 : index
    %c0_6 = arith.constant 0 : index
    %7 = vector.load %arg2[%c1, %c0_5, %c0_6] : memref<5x28x240xbf16, #tpu.memory_space<vmem>>, vector<1x28x240xbf16>
    %8 = vector.shape_cast %7 : vector<1x28x240xbf16> to vector<28x240xbf16>
    %cst_7 = arith.constant dense<0.000000e+00> : vector<192x240xf32>
    %9 = tpu.matmul %6, %8, %cst_7 {dimension_numbers = #tpu.dot_dimension_numbers<[1], [0], [0], [1], [0, 0, 1, 1], [], []>} : vector<192x28xbf16>, vector<28x240xbf16>, vector<192x240xf32> -> vector<192x240xf32>
    %10 = arith.addf %5, %9 : vector<192x240xf32>
    %11 = vector.extract_strided_slice %1 {offsets = [16, 0], sizes = [192, 28], strides = [1, 1]} : vector<224x28xbf16> to vector<192x28xbf16>
    %c2 = arith.constant 2 : index
    %c0_8 = arith.constant 0 : index
    %c0_9 = arith.constant 0 : index
    %12 = vector.load %arg2[%c2, %c0_8, %c0_9] : memref<5x28x240xbf16, #tpu.memory_space<vmem>>, vector<1x28x240xbf16>
    %13 = vector.shape_cast %12 : vector<1x28x240xbf16> to vector<28x240xbf16>
    %cst_10 = arith.constant dense<0.000000e+00> : vector<192x240xf32>
    %14 = tpu.matmul %11, %13, %cst_10 {dimension_numbers = #tpu.dot_dimension_numbers<[1], [0], [0], [1], [0, 0, 1, 1], [], []>} : vector<192x28xbf16>, vector<28x240xbf16>, vector<192x240xf32> -> vector<192x240xf32>
    %15 = arith.addf %10, %14 : vector<192x240xf32>
    %16 = vector.extract_strided_slice %1 {offsets = [24, 0], sizes = [192, 28], strides = [1, 1]} : vector<224x28xbf16> to vector<192x28xbf16>
    %c3 = arith.constant 3 : index
    %c0_11 = arith.constant 0 : index
    %c0_12 = arith.constant 0 : index
    %17 = vector.load %arg2[%c3, %c0_11, %c0_12] : memref<5x28x240xbf16, #tpu.memory_space<vmem>>, vector<1x28x240xbf16>
    %18 = vector.shape_cast %17 : vector<1x28x240xbf16> to vector<28x240xbf16>
    %cst_13 = arith.constant dense<0.000000e+00> : vector<192x240xf32>
    %19 = tpu.matmul %16, %18, %cst_13 {dimension_numbers = #tpu.dot_dimension_numbers<[1], [0], [0], [1], [0, 0, 1, 1], [], []>} : vector<192x28xbf16>, vector<28x240xbf16>, vector<192x240xf32> -> vector<192x240xf32>
    %20 = arith.addf %15, %19 : vector<192x240xf32>
    %21 = vector.extract_strided_slice %1 {offsets = [32, 0], sizes = [192, 28], strides = [1, 1]} : vector<224x28xbf16> to vector<192x28xbf16>
    %c4 = arith.constant 4 : index
    %c0_14 = arith.constant 0 : index
    %c0_15 = arith.constant 0 : index
    %22 = vector.load %arg2[%c4, %c0_14, %c0_15] : memref<5x28x240xbf16, #tpu.memory_space<vmem>>, vector<1x28x240xbf16>
    %23 = vector.shape_cast %22 : vector<1x28x240xbf16> to vector<28x240xbf16>
    %cst_16 = arith.constant dense<0.000000e+00> : vector<192x240xf32>
    %24 = tpu.matmul %21, %23, %cst_16 {dimension_numbers = #tpu.dot_dimension_numbers<[1], [0], [0], [1], [0, 0, 1, 1], [], []>} : vector<192x28xbf16>, vector<28x240xbf16>, vector<192x240xf32> -> vector<192x240xf32>
    %25 = arith.addf %20, %24 : vector<192x240xf32>
    %c0_17 = arith.constant 0 : index
    %c0_18 = arith.constant 0 : index
    %26 = vector.load %arg3[%c0_17, %c0_18] : memref<1x240xf32, #tpu.memory_space<vmem>>, vector<1x240xf32>
    %27 = vector.broadcast %26 : vector<1x240xf32> to vector<192x240xf32>
    %28 = arith.addf %25, %27 : vector<192x240xf32>
    %29 = vector.shape_cast %28 : vector<192x240xf32> to vector<12x16x240xf32>
    %30 = vector.extract_strided_slice %29 {offsets = [0, 0, 0], sizes = [12, 8, 240], strides = [1, 1, 1]} : vector<12x16x240xf32> to vector<12x8x240xf32>
    %31 = vector.extract_strided_slice %29 {offsets = [0, 8, 0], sizes = [12, 8, 240], strides = [1, 1, 1]} : vector<12x16x240xf32> to vector<12x8x240xf32>
    %32 = arith.maximumf %30, %31 : vector<12x8x240xf32>
    %33 = vector.shape_cast %32 : vector<12x8x240xf32> to vector<96x240xf32>
    %34 = vector.extract_strided_slice %33 {offsets = [0, 1], sizes = [96, 239], strides = [1, 1]} : vector<96x240xf32> to vector<96x239xf32>
    %35 = vector.extract_strided_slice %33 {offsets = [0, 239], sizes = [96, 1], strides = [1, 1]} : vector<96x240xf32> to vector<96x1xf32>
    %36 = tpu.concatenate %34, %35 in 1 : vector<96x239xf32>, vector<96x1xf32> -> vector<96x240xf32>
    %37 = arith.maximumf %33, %36 : vector<96x240xf32>
    %38 = arith.truncf %37 : vector<96x240xf32> to vector<96x240xbf16>
    %c0_19 = arith.constant 0 : index
    %c0_20 = arith.constant 0 : index
    %39 = vector.load %arg6[%c0_19, %c0_20] : memref<240x120xbf16, #tpu.memory_space<vmem>>, vector<240x120xbf16>
    %cst_21 = arith.constant dense<0.000000e+00> : vector<96x120xf32>
    %40 = tpu.matmul %38, %39, %cst_21 {dimension_numbers = #tpu.dot_dimension_numbers<[1], [0], [0], [1], [0, 0, 1, 1], [], []>} : vector<96x240xbf16>, vector<240x120xbf16>, vector<96x120xf32> -> vector<96x120xf32>
    %cst_22 = arith.constant 0.000000e+00 : f32
    %41 = vector.broadcast %cst_22 : f32 to vector<96x120xf32>
    %42 = arith.maximumf %40, %41 : vector<96x120xf32>
    %43 = arith.truncf %42 : vector<96x120xf32> to vector<96x120xbf16>
    %44 = vector.extract_strided_slice %43 {offsets = [0, 0], sizes = [64, 120], strides = [1, 1]} : vector<96x120xbf16> to vector<64x120xbf16>
    %c0_23 = arith.constant 0 : index
    %c0_24 = arith.constant 0 : index
    %c0_25 = arith.constant 0 : index
    %45 = vector.load %arg4[%c0_23, %c0_24, %c0_25] : memref<5x120x160xbf16, #tpu.memory_space<vmem>>, vector<1x120x160xbf16>
    %46 = vector.shape_cast %45 : vector<1x120x160xbf16> to vector<120x160xbf16>
    %cst_26 = arith.constant dense<0.000000e+00> : vector<64x160xf32>
    %47 = tpu.matmul %44, %46, %cst_26 {dimension_numbers = #tpu.dot_dimension_numbers<[1], [0], [0], [1], [0, 0, 1, 1], [], []>} : vector<64x120xbf16>, vector<120x160xbf16>, vector<64x160xf32> -> vector<64x160xf32>
    %48 = vector.extract_strided_slice %43 {offsets = [8, 0], sizes = [64, 120], strides = [1, 1]} : vector<96x120xbf16> to vector<64x120xbf16>
    %c1_27 = arith.constant 1 : index
    %c0_28 = arith.constant 0 : index
    %c0_29 = arith.constant 0 : index
    %49 = vector.load %arg4[%c1_27, %c0_28, %c0_29] : memref<5x120x160xbf16, #tpu.memory_space<vmem>>, vector<1x120x160xbf16>
    %50 = vector.shape_cast %49 : vector<1x120x160xbf16> to vector<120x160xbf16>
    %cst_30 = arith.constant dense<0.000000e+00> : vector<64x160xf32>
    %51 = tpu.matmul %48, %50, %cst_30 {dimension_numbers = #tpu.dot_dimension_numbers<[1], [0], [0], [1], [0, 0, 1, 1], [], []>} : vector<64x120xbf16>, vector<120x160xbf16>, vector<64x160xf32> -> vector<64x160xf32>
    %52 = arith.addf %47, %51 : vector<64x160xf32>
    %53 = vector.extract_strided_slice %43 {offsets = [16, 0], sizes = [64, 120], strides = [1, 1]} : vector<96x120xbf16> to vector<64x120xbf16>
    %c2_31 = arith.constant 2 : index
    %c0_32 = arith.constant 0 : index
    %c0_33 = arith.constant 0 : index
    %54 = vector.load %arg4[%c2_31, %c0_32, %c0_33] : memref<5x120x160xbf16, #tpu.memory_space<vmem>>, vector<1x120x160xbf16>
    %55 = vector.shape_cast %54 : vector<1x120x160xbf16> to vector<120x160xbf16>
    %cst_34 = arith.constant dense<0.000000e+00> : vector<64x160xf32>
    %56 = tpu.matmul %53, %55, %cst_34 {dimension_numbers = #tpu.dot_dimension_numbers<[1], [0], [0], [1], [0, 0, 1, 1], [], []>} : vector<64x120xbf16>, vector<120x160xbf16>, vector<64x160xf32> -> vector<64x160xf32>
    %57 = arith.addf %52, %56 : vector<64x160xf32>
    %58 = vector.extract_strided_slice %43 {offsets = [24, 0], sizes = [64, 120], strides = [1, 1]} : vector<96x120xbf16> to vector<64x120xbf16>
    %c3_35 = arith.constant 3 : index
    %c0_36 = arith.constant 0 : index
    %c0_37 = arith.constant 0 : index
    %59 = vector.load %arg4[%c3_35, %c0_36, %c0_37] : memref<5x120x160xbf16, #tpu.memory_space<vmem>>, vector<1x120x160xbf16>
    %60 = vector.shape_cast %59 : vector<1x120x160xbf16> to vector<120x160xbf16>
    %cst_38 = arith.constant dense<0.000000e+00> : vector<64x160xf32>
    %61 = tpu.matmul %58, %60, %cst_38 {dimension_numbers = #tpu.dot_dimension_numbers<[1], [0], [0], [1], [0, 0, 1, 1], [], []>} : vector<64x120xbf16>, vector<120x160xbf16>, vector<64x160xf32> -> vector<64x160xf32>
    %62 = arith.addf %57, %61 : vector<64x160xf32>
    %63 = vector.extract_strided_slice %43 {offsets = [32, 0], sizes = [64, 120], strides = [1, 1]} : vector<96x120xbf16> to vector<64x120xbf16>
    %c4_39 = arith.constant 4 : index
    %c0_40 = arith.constant 0 : index
    %c0_41 = arith.constant 0 : index
    %64 = vector.load %arg4[%c4_39, %c0_40, %c0_41] : memref<5x120x160xbf16, #tpu.memory_space<vmem>>, vector<1x120x160xbf16>
    %65 = vector.shape_cast %64 : vector<1x120x160xbf16> to vector<120x160xbf16>
    %cst_42 = arith.constant dense<0.000000e+00> : vector<64x160xf32>
    %66 = tpu.matmul %63, %65, %cst_42 {dimension_numbers = #tpu.dot_dimension_numbers<[1], [0], [0], [1], [0, 0, 1, 1], [], []>} : vector<64x120xbf16>, vector<120x160xbf16>, vector<64x160xf32> -> vector<64x160xf32>
    %67 = arith.addf %62, %66 : vector<64x160xf32>
    %c0_43 = arith.constant 0 : index
    %c0_44 = arith.constant 0 : index
    %68 = vector.load %arg5[%c0_43, %c0_44] : memref<1x160xf32, #tpu.memory_space<vmem>>, vector<1x160xf32>
    %69 = vector.broadcast %68 : vector<1x160xf32> to vector<64x160xf32>
    %70 = arith.addf %67, %69 : vector<64x160xf32>
    %71 = vector.shape_cast %70 : vector<64x160xf32> to vector<4x16x160xf32>
    %72 = vector.extract_strided_slice %71 {offsets = [0, 0, 0], sizes = [4, 8, 160], strides = [1, 1, 1]} : vector<4x16x160xf32> to vector<4x8x160xf32>
    %73 = vector.extract_strided_slice %71 {offsets = [0, 8, 0], sizes = [4, 8, 160], strides = [1, 1, 1]} : vector<4x16x160xf32> to vector<4x8x160xf32>
    %74 = arith.maximumf %72, %73 : vector<4x8x160xf32>
    %75 = vector.shape_cast %74 : vector<4x8x160xf32> to vector<32x160xf32>
    %76 = vector.extract_strided_slice %75 {offsets = [0, 1], sizes = [32, 159], strides = [1, 1]} : vector<32x160xf32> to vector<32x159xf32>
    %77 = vector.extract_strided_slice %75 {offsets = [0, 159], sizes = [32, 1], strides = [1, 1]} : vector<32x160xf32> to vector<32x1xf32>
    %78 = tpu.concatenate %76, %77 in 1 : vector<32x159xf32>, vector<32x1xf32> -> vector<32x160xf32>
    %79 = arith.maximumf %75, %78 : vector<32x160xf32>
    %80 = arith.truncf %79 : vector<32x160xf32> to vector<32x160xbf16>
    %c0_45 = arith.constant 0 : index
    %c0_46 = arith.constant 0 : index
    %81 = vector.load %arg7[%c0_45, %c0_46] : memref<160x80xbf16, #tpu.memory_space<vmem>>, vector<160x80xbf16>
    %cst_47 = arith.constant dense<0.000000e+00> : vector<32x80xf32>
    %82 = tpu.matmul %80, %81, %cst_47 {dimension_numbers = #tpu.dot_dimension_numbers<[1], [0], [0], [1], [0, 0, 1, 1], [], []>} : vector<32x160xbf16>, vector<160x80xbf16>, vector<32x80xf32> -> vector<32x80xf32>
    %cst_48 = arith.constant 0.000000e+00 : f32
    %83 = vector.broadcast %cst_48 : f32 to vector<32x80xf32>
    %84 = arith.maximumf %82, %83 : vector<32x80xf32>
    %85 = arith.truncf %84 : vector<32x80xf32> to vector<32x80xbf16>
    %86 = vector.extract_strided_slice %85 {offsets = [0, 0], sizes = [8, 80], strides = [1, 1]} : vector<32x80xbf16> to vector<8x80xbf16>
    %c0_49 = arith.constant 0 : index
    %c0_50 = arith.constant 0 : index
    %c0_51 = arith.constant 0 : index
    %87 = vector.load %arg8[%c0_49, %c0_50, %c0_51] : memref<4x80x128xbf16, #tpu.memory_space<vmem>>, vector<1x80x128xbf16>
    %88 = vector.shape_cast %87 : vector<1x80x128xbf16> to vector<80x128xbf16>
    %cst_52 = arith.constant dense<0.000000e+00> : vector<8x128xf32>
    %89 = tpu.matmul %86, %88, %cst_52 {dimension_numbers = #tpu.dot_dimension_numbers<[1], [0], [0], [1], [0, 0, 1, 1], [], []>} : vector<8x80xbf16>, vector<80x128xbf16>, vector<8x128xf32> -> vector<8x128xf32>
    %90 = vector.extract_strided_slice %85 {offsets = [8, 0], sizes = [8, 80], strides = [1, 1]} : vector<32x80xbf16> to vector<8x80xbf16>
    %c1_53 = arith.constant 1 : index
    %c0_54 = arith.constant 0 : index
    %c0_55 = arith.constant 0 : index
    %91 = vector.load %arg8[%c1_53, %c0_54, %c0_55] : memref<4x80x128xbf16, #tpu.memory_space<vmem>>, vector<1x80x128xbf16>
    %92 = vector.shape_cast %91 : vector<1x80x128xbf16> to vector<80x128xbf16>
    %cst_56 = arith.constant dense<0.000000e+00> : vector<8x128xf32>
    %93 = tpu.matmul %90, %92, %cst_56 {dimension_numbers = #tpu.dot_dimension_numbers<[1], [0], [0], [1], [0, 0, 1, 1], [], []>} : vector<8x80xbf16>, vector<80x128xbf16>, vector<8x128xf32> -> vector<8x128xf32>
    %94 = arith.addf %89, %93 : vector<8x128xf32>
    %95 = vector.extract_strided_slice %85 {offsets = [16, 0], sizes = [8, 80], strides = [1, 1]} : vector<32x80xbf16> to vector<8x80xbf16>
    %c2_57 = arith.constant 2 : index
    %c0_58 = arith.constant 0 : index
    %c0_59 = arith.constant 0 : index
    %96 = vector.load %arg8[%c2_57, %c0_58, %c0_59] : memref<4x80x128xbf16, #tpu.memory_space<vmem>>, vector<1x80x128xbf16>
    %97 = vector.shape_cast %96 : vector<1x80x128xbf16> to vector<80x128xbf16>
    %cst_60 = arith.constant dense<0.000000e+00> : vector<8x128xf32>
    %98 = tpu.matmul %95, %97, %cst_60 {dimension_numbers = #tpu.dot_dimension_numbers<[1], [0], [0], [1], [0, 0, 1, 1], [], []>} : vector<8x80xbf16>, vector<80x128xbf16>, vector<8x128xf32> -> vector<8x128xf32>
    %99 = arith.addf %94, %98 : vector<8x128xf32>
    %100 = vector.extract_strided_slice %85 {offsets = [24, 0], sizes = [8, 80], strides = [1, 1]} : vector<32x80xbf16> to vector<8x80xbf16>
    %c3_61 = arith.constant 3 : index
    %c0_62 = arith.constant 0 : index
    %c0_63 = arith.constant 0 : index
    %101 = vector.load %arg8[%c3_61, %c0_62, %c0_63] : memref<4x80x128xbf16, #tpu.memory_space<vmem>>, vector<1x80x128xbf16>
    %102 = vector.shape_cast %101 : vector<1x80x128xbf16> to vector<80x128xbf16>
    %cst_64 = arith.constant dense<0.000000e+00> : vector<8x128xf32>
    %103 = tpu.matmul %100, %102, %cst_64 {dimension_numbers = #tpu.dot_dimension_numbers<[1], [0], [0], [1], [0, 0, 1, 1], [], []>} : vector<8x80xbf16>, vector<80x128xbf16>, vector<8x128xf32> -> vector<8x128xf32>
    %104 = arith.addf %99, %103 : vector<8x128xf32>
    %c0_65 = arith.constant 0 : index
    %c0_66 = arith.constant 0 : index
    %105 = vector.load %arg9[%c0_65, %c0_66] : memref<1x128xf32, #tpu.memory_space<vmem>>, vector<1x128xf32>
    %106 = vector.broadcast %105 : vector<1x128xf32> to vector<8x128xf32>
    %107 = arith.addf %104, %106 : vector<8x128xf32>
    %cst_67 = arith.constant 0.000000e+00 : f32
    %108 = vector.broadcast %cst_67 : f32 to vector<8x128xf32>
    %109 = arith.maximumf %107, %108 : vector<8x128xf32>
    %110 = tpu.iota {dimensions = array<i32: 1>} : vector<8x128xi32>
    %c10_i32 = arith.constant 10 : i32
    %111 = vector.broadcast %c10_i32 : i32 to vector<8x128xi32>
    %112 = arith.cmpi slt, %110, %111 : vector<8x128xi32>
    %cst_68 = arith.constant -1.000000e+30 : f32
    %113 = vector.broadcast %cst_68 : f32 to vector<8x128xf32>
    %114 = arith.select %112, %109, %113 : vector<8x128xi1>, vector<8x128xf32>
    %cst_69 = arith.constant dense<0xFF800000> : vector<8xf32>
    %115 = vector.multi_reduction <maximumf>, %114, %cst_69 [1] : vector<8x128xf32> to vector<8xf32>
    %116 = vector.shape_cast %115 : vector<8xf32> to vector<8x1xf32>
    %117 = vector.broadcast %116 : vector<8x1xf32> to vector<8x128xf32>
    %118 = arith.subf %114, %117 : vector<8x128xf32>
    %119 = math.exp %118 : vector<8x128xf32>
    %cst_70 = arith.constant dense<0.000000e+00> : vector<8xf32>
    %120 = vector.multi_reduction <add>, %119, %cst_70 [1] : vector<8x128xf32> to vector<8xf32>
    %121 = vector.shape_cast %120 : vector<8xf32> to vector<8x1xf32>
    %122 = math.log %121 : vector<8x1xf32>
    %123 = arith.addf %116, %122 : vector<8x1xf32>
    %124 = vector.broadcast %123 : vector<8x1xf32> to vector<8x128xf32>
    %125 = arith.subf %114, %124 : vector<8x128xf32>
    %c0_71 = arith.constant 0 : index
    %c0_72 = arith.constant 0 : index
    %126 = vector.load %arg10[%c0_71, %c0_72] : memref<8x128xf32, #tpu.memory_space<vmem>>, vector<8x128xf32>
    tpu.vector_store %arg10[%c0_71, %c0_72], %125 {strides = array<i32>} : memref<8x128xf32, #tpu.memory_space<vmem>>, vector<8x128xf32>,
    return
  }
  func.func @transform_0(%arg0: i32) -> (i32, i32, i32) {
    %c0_i32 = arith.constant 0 : i32
    %c0_i32_0 = arith.constant 0 : i32
    %c0_i32_1 = arith.constant 0 : i32
    return %c0_i32, %arg0, %c0_i32_0 : i32, i32, i32
  }
  func.func @transform_1(%arg0: i32) -> (i32, i32, i32) {
    %c0_i32 = arith.constant 0 : i32
    %c0_i32_0 = arith.constant 0 : i32
    %c0_i32_1 = arith.constant 0 : i32
    %c0_i32_2 = arith.constant 0 : i32
    return %c0_i32, %c0_i32_0, %c0_i32_1 : i32, i32, i32
  }
  func.func @transform_2(%arg0: i32) -> (i32, i32) {
    %c0_i32 = arith.constant 0 : i32
    %c0_i32_0 = arith.constant 0 : i32
    %c0_i32_1 = arith.constant 0 : i32
    return %c0_i32, %c0_i32_0 : i32, i32
  }
  func.func @transform_3(%arg0: i32) -> (i32, i32, i32) {
    %c0_i32 = arith.constant 0 : i32
    %c0_i32_0 = arith.constant 0 : i32
    %c0_i32_1 = arith.constant 0 : i32
    %c0_i32_2 = arith.constant 0 : i32
    return %c0_i32, %c0_i32_0, %c0_i32_1 : i32, i32, i32
  }
  func.func @transform_4(%arg0: i32) -> (i32, i32) {
    %c0_i32 = arith.constant 0 : i32
    %c0_i32_0 = arith.constant 0 : i32
    %c0_i32_1 = arith.constant 0 : i32
    return %c0_i32, %c0_i32_0 : i32, i32
  }
  func.func @transform_5(%arg0: i32) -> (i32, i32) {
    %c0_i32 = arith.constant 0 : i32
    %c0_i32_0 = arith.constant 0 : i32
    %c0_i32_1 = arith.constant 0 : i32
    return %c0_i32, %c0_i32_0 : i32, i32
  }
  func.func @transform_6(%arg0: i32) -> (i32, i32) {
    %c0_i32 = arith.constant 0 : i32
    %c0_i32_0 = arith.constant 0 : i32
    %c0_i32_1 = arith.constant 0 : i32
    return %c0_i32, %c0_i32_0 : i32, i32
  }
  func.func @transform_7(%arg0: i32) -> (i32, i32, i32) {
    %c0_i32 = arith.constant 0 : i32
    %c0_i32_0 = arith.constant 0 : i32
    %c0_i32_1 = arith.constant 0 : i32
    %c0_i32_2 = arith.constant 0 : i32
    return %c0_i32, %c0_i32_0, %c0_i32_1 : i32, i32, i32
  }
  func.func @transform_8(%arg0: i32) -> (i32, i32) {
    %c0_i32 = arith.constant 0 : i32
    %c0_i32_0 = arith.constant 0 : i32
    %c0_i32_1 = arith.constant 0 : i32
    return %c0_i32, %c0_i32_0 : i32, i32
  }
  func.func @transform_9(%arg0: i32) -> (i32, i32) {
    %c0_i32 = arith.constant 0 : i32
    %c0_i32_0 = arith.constant 0 : i32
    return %arg0, %c0_i32 : i32, i32
  }
}

</mosaic_0001>

<llo_original>
// kernel: forward.1
$region0: #{forward.1}
  #allocation0 [shape = 'u32[]', space=smem, size = 0x4, offset = 0x4, fixed_abs, tag = 'smem constant byte address 0x4 - core index']
  #allocation1 [shape = 'u32[144,128]{1,0:T(1,128)}', space=vmem, size = 0x12000, scoped, tag = 'internal scratch']
  %s0 = inlined_call_operand.vmem [shape: bf16[28,8,28], index: 0, kind: input, shape index: {}]
  %s1 = inlined_call_operand.vmem [shape: bf16[5,28,240], index: 1, kind: input, shape index: {}]
  %s2 = inlined_call_operand.vmem [shape: f32[1,240], index: 2, kind: input, shape index: {}]
  %s3 = inlined_call_operand.vmem [shape: bf16[5,120,160], index: 3, kind: input, shape index: {}]
  %s4 = inlined_call_operand.vmem [shape: f32[1,160], index: 4, kind: input, shape index: {}]
  %s5 = inlined_call_operand.vmem [shape: bf16[240,120], index: 5, kind: input, shape index: {}]
  %s6 = inlined_call_operand.vmem [shape: bf16[160,80], index: 6, kind: input, shape index: {}]
  %s7 = inlined_call_operand.vmem [shape: bf16[4,80,128], index: 7, kind: input, shape index: {}]
  %s8 = inlined_call_operand.vmem [shape: f32[1,128], index: 8, kind: input, shape index: {}]
  %s9 = inlined_call_operand.vmem [shape: f32[8,128], index: 9, kind: output, shape index: {}]
  %s10 = sld [smem:[#allocation0]]
  $region46: #{forward.1} parent=0
    _
  %s12 = ssub.s32 1, %s10
  %s13 = scalar_select 0, %s12, %s10
  // Predicated region
  $region2: #{forward.1} parent=0 // pred_check
    _
  $region3: #{forward.1} parent=0 // pred_check_branch
    %15 = sbr.rel (0) target = $region5
  $region4: #{forward.1} parent=0 // pred_region
    _
  $region5: #{forward.1} parent=0 // pred_fallthru
    _
  // Predicated region
  $region6: #{forward.1} parent=0 // pred_check
    _
  $region7: #{forward.1} parent=0 // pred_check_branch
    %17 = sbr.rel (0) target = $region9
  $region8: #{forward.1} parent=0 // pred_region
    _
  $region9: #{forward.1} parent=0 // pred_fallthru
    _
  // Predicated region
  $region10: #{forward.1} parent=0 // pred_check
    _
  $region11: #{forward.1} parent=0 // pred_check_branch
    %19 = sbr.rel (0) target = $region13
  $region12: #{forward.1} parent=0 // pred_region
    _
  $region13: #{forward.1} parent=0 // pred_fallthru
    _
  // Predicated region
  $region14: #{forward.1} parent=0 // pred_check
    _
  $region15: #{forward.1} parent=0 // pred_check_branch
    %21 = sbr.rel (0) target = $region17
  $region16: #{forward.1} parent=0 // pred_region
    _
  $region17: #{forward.1} parent=0 // pred_fallthru
    _
  // Predicated region
  $region18: #{forward.1} parent=0 // pred_check
    _
  $region19: #{forward.1} parent=0 // pred_check_branch
    %23 = sbr.rel (0) target = $region21
  $region20: #{forward.1} parent=0 // pred_region
    _
  $region21: #{forward.1} parent=0 // pred_fallthru
    _
  // Predicated region
  $region22: #{forward.1} parent=0 // pred_check
    _
  $region23: #{forward.1} parent=0 // pred_check_branch
    %25 = sbr.rel (0) target = $region25
  $region24: #{forward.1} parent=0 // pred_region
    _
  $region25: #{forward.1} parent=0 // pred_fallthru
    _
  // Predicated region
  $region26: #{forward.1} parent=0 // pred_check
    _
  $region27: #{forward.1} parent=0 // pred_check_branch
    %27 = sbr.rel (0) target = $region29
  $region28: #{forward.1} parent=0 // pred_region
    _
  $region29: #{forward.1} parent=0 // pred_fallthru
    _
  // Predicated region
  $region30: #{forward.1} parent=0 // pred_check
    _
  $region31: #{forward.1} parent=0 // pred_check_branch
    %29 = sbr.rel (0) target = $region33
  $region32: #{forward.1} parent=0 // pred_region
    _
  $region33: #{forward.1} parent=0 // pred_fallthru
    _
  // Predicated region
  $region34: #{forward.1} parent=0 // pred_check
    _
  $region35: #{forward.1} parent=0 // pred_check_branch
    %31 = sbr.rel (0) target = $region37
  $region36: #{forward.1} parent=0 // pred_region
    _
  $region37: #{forward.1} parent=0 // pred_fallthru
    _
  %v33 = vld [vmem:[%s0] sm:$0xf]
  %v34 = vld [vmem:[%s0 + $0x4] sm:$0xf]
  %v35 = vld [vmem:[%s0 + $0x8] sm:$0xf]
  %v36 = vld [vmem:[%s0 + $0xc] sm:$0xf]
  %v37 = vld [vmem:[%s0 + $0x10] sm:$0xf]
  %v38 = vld [vmem:[%s0 + $0x14] sm:$0xf]
  %v39 = vld [vmem:[%s0 + $0x18] sm:$0xf]
  %v40 = vld [vmem:[%s0 + $0x1c] sm:$0xf]
  %v41 = vld [vmem:[%s0 + $0x20] sm:$0xf]
  %v42 = vld [vmem:[%s0 + $0x24] sm:$0xf]
  %v43 = vld [vmem:[%s0 + $0x28] sm:$0xf]
  %v44 = vld [vmem:[%s0 + $0x2c] sm:$0xf]
  %v45 = vld [vmem:[%s0 + $0x30] sm:$0xf]
  %v46 = vld [vmem:[%s0 + $0x34] sm:$0xf]
  %v47 = vld [vmem:[%s0 + $0x38] sm:$0xf]
  %v48 = vld [vmem:[%s0 + $0x3c] sm:$0xf]
  %v49 = vld [vmem:[%s0 + $0x40] sm:$0xf]
  %v50 = vld [vmem:[%s0 + $0x44] sm:$0xf]
  %v51 = vld [vmem:[%s0 + $0x48] sm:$0xf]
  %v52 = vld [vmem:[%s0 + $0x4c] sm:$0xf]
  %v53 = vld [vmem:[%s0 + $0x50] sm:$0xf]
  %v54 = vld [vmem:[%s0 + $0x54] sm:$0xf]
  %v55 = vld [vmem:[%s0 + $0x58] sm:$0xf]
  %v56 = vld [vmem:[%s0 + $0x5c] sm:$0xf]
  %v57 = vld [vmem:[%s0 + $0x60] sm:$0xf]
  %v58 = vld [vmem:[%s0 + $0x64] sm:$0xf]
  %v59 = vld [vmem:[%s0 + $0x68] sm:$0xf]
  %v60 = vld [vmem:[%s0 + $0x6c] sm:$0xf]
  %v61 = vld [vmem:[%s1] sm:$0xff]
  %v62 = vld [vmem:[%s1 + $0x8] sm:$0xff]
  %v63 = vld [vmem:[%s1 + $0x10] sm:$0xff]
  %v64 = vld [vmem:[%s1 + $0x18] sm:$0x33]
  %s65 = scalar_lea.vmem %s1, 32
  %v66 = vld [vmem:[%s65] sm:$0xff]
  %v67 = vld [vmem:[%s65 + $0x8] sm:$0xff]
  %v68 = vld [vmem:[%s65 + $0x10] sm:$0xff]
  %v69 = vld [vmem:[%s65 + $0x18] sm:$0x33]
  %v94 = vunpack.c.l.b16 %v34
  %v95 = vunpack.c.l.b16 %v35
  %v96 = vunpack.c.l.b16 %v36
  %v97 = vunpack.c.l.b16 %v37
  %v98 = vunpack.c.l.b16 %v38
  %v99 = vunpack.c.l.b16 %v39
  %v100 = vunpack.c.l.b16 %v40
  %v101 = vunpack.c.l.b16 %v41
  %v102 = vunpack.c.l.b16 %v42
  %v103 = vunpack.c.l.b16 %v43
  %v104 = vunpack.c.l.b16 %v44
  %v105 = vunpack.c.l.b16 %v45
  %v106 = vunpack.c.l.b16 %v46
  %v107 = vunpack.c.l.b16 %v47
  %v108 = vunpack.c.l.b16 %v48
  %v109 = vunpack.c.l.b16 %v49
  %v110 = vunpack.c.l.b16 %v50
  %v111 = vunpack.c.l.b16 %v51
  %v112 = vunpack.c.l.b16 %v52
  %v113 = vunpack.c.l.b16 %v53
  %v114 = vunpack.c.l.b16 %v54
  %v115 = vunpack.c.l.b16 %v55
  %v116 = vunpack.c.l.b16 %v56
  %v117 = vunpack.c.l.b16 %v57
  %v118 = vpack.c.b16 %v95, %v94
  %v119 = vpack.c.b16 %v97, %v96
  %v120 = vpack.c.b16 %v99, %v98
  %v121 = vpack.c.b16 %v101, %v100
  %v122 = vpack.c.b16 %v103, %v102
  %v123 = vpack.c.b16 %v105, %v104
  %v124 = vpack.c.b16 %v107, %v106
  %v125 = vpack.c.b16 %v109, %v108
  %v126 = vpack.c.b16 %v111, %v110
  %v127 = vpack.c.b16 %v113, %v112
  %v128 = vpack.c.b16 %v115, %v114
  %v129 = vpack.c.b16 %v117, %v116
  %v134 = vunpack.c.l.b16 %v66
  %v135 = vunpack.c.h.b16 %v66
  %v136 = vunpack.c.l.b16 %v67
  %v137 = vunpack.c.h.b16 %v67
  %v138 = vunpack.c.l.b16 %v68
  %v139 = vunpack.c.h.b16 %v68
  %v140 = vunpack.c.l.b16 %v69
  %v141 = vunpack.c.h.b16 %v69
  %v142 = vpack.c.b16 %v136, %v134
  %v143 = vpack.c.b16 %v137, %v135
  %v144 = vpack.c.b16 %v140, %v138
  %v145 = vpack.c.b16 %v141, %v139
  %vm148 = vcmask 228352
  %v150 = vsel %vm148, %v118, 0
  %v153 = vsel %vm148, %v119, 0
  %v156 = vsel %vm148, %v120, 0
  %v159 = vsel %vm148, %v121, 0
  %v162 = vsel %vm148, %v122, 0
  %v165 = vsel %vm148, %v123, 0
  %v168 = vsel %vm148, %v124, 0
  %v171 = vsel %vm148, %v125, 0
  %v174 = vsel %vm148, %v126, 0
  %v177 = vsel %vm148, %v127, 0
  %v180 = vsel %vm148, %v128, 0
  %v183 = vsel %vm148, %v129, 0
  %vm185 = vcmask 1045504
  %v187 = vsel %vm185, %v144, 0
  %v190 = vsel %vm185, %v145, 0
  %192 = vmatprep.subr.bf16.mxu0 %v143
  %193 = vmatpush1.bf16.msra.mxu0 %v142
  %194 = vmatprep.subr.bf16.mxu0 %v190
  %195 = vmatpush1.bf16.msra.mxu0 %v187
  %196 = vmatprep.subr.bf16.mxu0 0
  %197 = vmatpush1.bf16.msra.mxu0 0
  %198 = vmatprep.subr.bf16.mxu0 0
  %199 = vmatpush1.bf16.msra.mxu0 0
  %200 = vmatprep.subr.bf16.mxu0 0
  %201 = vmatpush1.bf16.msra.mxu0 0
  %202 = vmatprep.subr.bf16.mxu0 0
  %203 = vmatpush1.bf16.msra.mxu0 0
  %204 = vmatprep.subr.bf16.mxu0 0
  %205 = vmatpush1.bf16.msra.mxu0 0
  %206 = vmatprep.subr.bf16.mxu0 0
  %207 = vmatpush1.bf16.msra.mxu0 0
  %208 = vmatprep.subr.bf16.mxu0 0
  %209 = vmatpush1.bf16.msra.mxu0 0
  %210 = vmatprep.subr.bf16.mxu0 0
  %211 = vmatpush1.bf16.msra.mxu0 0
  %212 = vmatprep.subr.bf16.mxu0 0
  %213 = vmatpush1.bf16.msra.mxu0 0
  %214 = vmatprep.subr.bf16.mxu0 0
  %215 = vmatpush1.bf16.msra.mxu0 0
  %216 = vmatprep.subr.bf16.mxu0 0
  %217 = vmatpush1.bf16.msra.mxu0 0
  %218 = vmatprep.subr.bf16.mxu0 0
  %219 = vmatpush1.bf16.msra.mxu0 0
  %220 = vmatprep.subr.bf16.mxu0 0
  %221 = vmatpush1.bf16.msra.mxu0 0
  %222 = vmatprep.subr.bf16.mxu0 0
  %223 = vmatpush1.bf16.msra.mxu0 0
  %224 = vmatprep.mubr.bf16.mxu0 0
  %225 = vmatmul.mubr.bf16.gmra.mrb[0].mxu0 %v150
  %v226 = vpop.f32.mrb[0].mxu0
  %v227 = vadd.f32 0.0, %v226
  %v228 = vpop.f32.mrb[0].mxu0
  %v229 = vadd.f32 0.0, %v228
  %v230 = vpop.f32.mrb[0].mxu0
  %v231 = vadd.f32 0.0, %v230
  %v232 = vpop.f32.mrb[0].mxu0
  %v233 = vadd.f32 0.0, %v232
  %234 = vmatprep.mubr.bf16.mxu0 0
  %235 = vmatmul.mubr.bf16.gmra.mrb[0].mxu0 %v153
  %v236 = vpop.f32.mrb[0].mxu0
  %v237 = vadd.f32 0.0, %v236
  %v238 = vpop.f32.mrb[0].mxu0
  %v239 = vadd.f32 0.0, %v238
  %v240 = vpop.f32.mrb[0].mxu0
  %v241 = vadd.f32 0.0, %v240
  %v242 = vpop.f32.mrb[0].mxu0
  %v243 = vadd.f32 0.0, %v242
  %244 = vmatprep.mubr.bf16.mxu0 0
  %245 = vmatmul.mubr.bf16.gmra.mrb[0].mxu0 %v156
  %v246 = vpop.f32.mrb[0].mxu0
  %v247 = vadd.f32 0.0, %v246
  %v248 = vpop.f32.mrb[0].mxu0
  %v249 = vadd.f32 0.0, %v248
  %v250 = vpop.f32.mrb[0].mxu0
  %v251 = vadd.f32 0.0, %v250
  %v252 = vpop.f32.mrb[0].mxu0
  %v253 = vadd.f32 0.0, %v252
  %254 = vmatprep.mubr.bf16.mxu0 0
  %255 = vmatmul.mubr.bf16.gmra.mrb[0].mxu0 %v159
  %v256 = vpop.f32.mrb[0].mxu0
  %v257 = vadd.f32 0.0, %v256
  %v258 = vpop.f32.mrb[0].mxu0
  %v259 = vadd.f32 0.0, %v258
  %v260 = vpop.f32.mrb[0].mxu0
  %v261 = vadd.f32 0.0, %v260
  %v262 = vpop.f32.mrb[0].mxu0
  %v263 = vadd.f32 0.0, %v262
  %264 = vmatprep.mubr.bf16.mxu0 0
  %265 = vmatmul.mubr.bf16.gmra.mrb[0].mxu0 %v162
  %v266 = vpop.f32.mrb[0].mxu0
  %v267 = vadd.f32 0.0, %v266
  %v268 = vpop.f32.mrb[0].mxu0
  %v269 = vadd.f32 0.0, %v268
  %v270 = vpop.f32.mrb[0].mxu0
  %v271 = vadd.f32 0.0, %v270
  %v272 = vpop.f32.mrb[0].mxu0
  %v273 = vadd.f32 0.0, %v272
  %274 = vmatprep.mubr.bf16.mxu0 0
  %275 = vmatmul.mubr.bf16.gmra.mrb[0].mxu0 %v165
  %v276 = vpop.f32.mrb[0].mxu0
  %v277 = vadd.f32 0.0, %v276
  %v278 = vpop.f32.mrb[0].mxu0
  %v279 = vadd.f32 0.0, %v278
  %v280 = vpop.f32.mrb[0].mxu0
  %v281 = vadd.f32 0.0, %v280
  %v282 = vpop.f32.mrb[0].mxu0
  %v283 = vadd.f32 0.0, %v282
  %284 = vmatprep.mubr.bf16.mxu0 0
  %285 = vmatmul.mubr.bf16.gmra.mrb[0].mxu0 %v168
  %v286 = vpop.f32.mrb[0].mxu0
  %v287 = vadd.f32 0.0, %v286
  %v288 = vpop.f32.mrb[0].mxu0
  %v289 = vadd.f32 0.0, %v288
  %v290 = vpop.f32.mrb[0].mxu0
  %v291 = vadd.f32 0.0, %v290
  %v292 = vpop.f32.mrb[0].mxu0
  %v293 = vadd.f32 0.0, %v292
  %294 = vmatprep.mubr.bf16.mxu0 0
  %295 = vmatmul.mubr.bf16.gmra.mrb[0].mxu0 %v171
  %v296 = vpop.f32.mrb[0].mxu0
  %v297 = vadd.f32 0.0, %v296
  %v298 = vpop.f32.mrb[0].mxu0
  %v299 = vadd.f32 0.0, %v298
  %v300 = vpop.f32.mrb[0].mxu0
  %v301 = vadd.f32 0.0, %v300
  %v302 = vpop.f32.mrb[0].mxu0
  %v303 = vadd.f32 0.0, %v302
  %304 = vmatprep.mubr.bf16.mxu0 0
  %305 = vmatmul.mubr.bf16.gmra.mrb[0].mxu0 %v174
  %v306 = vpop.f32.mrb[0].mxu0
  %v307 = vadd.f32 0.0, %v306
  %v308 = vpop.f32.mrb[0].mxu0
  %v309 = vadd.f32 0.0, %v308
  %v310 = vpop.f32.mrb[0].mxu0
  %v311 = vadd.f32 0.0, %v310
  %v312 = vpop.f32.mrb[0].mxu0
  %v313 = vadd.f32 0.0, %v312
  %314 = vmatprep.mubr.bf16.mxu0 0
  %315 = vmatmul.mubr.bf16.gmra.mrb[0].mxu0 %v177
  %v316 = vpop.f32.mrb[0].mxu0
  %v317 = vadd.f32 0.0, %v316
  %v318 = vpop.f32.mrb[0].mxu0
  %v319 = vadd.f32 0.0, %v318
  %v320 = vpop.f32.mrb[0].mxu0
  %v321 = vadd.f32 0.0, %v320
  %v322 = vpop.f32.mrb[0].mxu0
  %v323 = vadd.f32 0.0, %v322
  %324 = vmatprep.mubr.bf16.mxu0 0
  %325 = vmatmul.mubr.bf16.gmra.mrb[0].mxu0 %v180
  %v326 = vpop.f32.mrb[0].mxu0
  %v327 = vadd.f32 0.0, %v326
  %v328 = vpop.f32.mrb[0].mxu0
  %v329 = vadd.f32 0.0, %v328
  %v330 = vpop.f32.mrb[0].mxu0
  %v331 = vadd.f32 0.0, %v330
  %v332 = vpop.f32.mrb[0].mxu0
  %v333 = vadd.f32 0.0, %v332
  %334 = vmatprep.mubr.bf16.mxu0 0
  %335 = vmatmul.mubr.bf16.gmra.mrb[0].mxu0 %v183
  %v336 = vpop.f32.mrb[0].mxu0
  %v337 = vadd.f32 0.0, %v336
  %v338 = vpop.f32.mrb[0].mxu0
  %v339 = vadd.f32 0.0, %v338
  %v340 = vpop.f32.mrb[0].mxu0
  %v341 = vadd.f32 0.0, %v340
  %v342 = vpop.f32.mrb[0].mxu0
  %v343 = vadd.f32 0.0, %v342
  %344 = vdwg.mxu0
  %v346 = vunpack.c.l.b16 %v33
  %v347 = vpack.c.b16 %v94, %v346
  %v348 = vpack.c.b16 %v96, %v95
  %v349 = vpack.c.b16 %v98, %v97
  %v350 = vpack.c.b16 %v100, %v99
  %v351 = vpack.c.b16 %v102, %v101
  %v352 = vpack.c.b16 %v104, %v103
  %v353 = vpack.c.b16 %v106, %v105
  %v354 = vpack.c.b16 %v108, %v107
  %v355 = vpack.c.b16 %v110, %v109
  %v356 = vpack.c.b16 %v112, %v111
  %v357 = vpack.c.b16 %v114, %v113
  %v358 = vpack.c.b16 %v116, %v115
  %v363 = vunpack.c.l.b16 %v61
  %v364 = vunpack.c.h.b16 %v61
  %v365 = vunpack.c.l.b16 %v62
  %v366 = vunpack.c.h.b16 %v62
  %v367 = vunpack.c.l.b16 %v63
  %v368 = vunpack.c.h.b16 %v63
  %v369 = vunpack.c.l.b16 %v64
  %v370 = vunpack.c.h.b16 %v64
  %v371 = vpack.c.b16 %v365, %v363
  %v372 = vpack.c.b16 %v366, %v364
  %v373 = vpack.c.b16 %v369, %v367
  %v374 = vpack.c.b16 %v370, %v368
  %v378 = vsel %vm148, %v347, 0
  %v381 = vsel %vm148, %v348, 0
  %v384 = vsel %vm148, %v349, 0
  %v387 = vsel %vm148, %v350, 0
  %v390 = vsel %vm148, %v351, 0
  %v393 = vsel %vm148, %v352, 0
  %v396 = vsel %vm148, %v353, 0
  %v399 = vsel %vm148, %v354, 0
  %v402 = vsel %vm148, %v355, 0
  %v405 = vsel %vm148, %v356, 0
  %v408 = vsel %vm148, %v357, 0
  %v411 = vsel %vm148, %v358, 0
  %v414 = vsel %vm185, %v373, 0
  %v417 = vsel %vm185, %v374, 0
  %419 = vmatprep.subr.bf16.mxu0 %v372
  %420 = vmatpush1.bf16.msra.mxu0 %v371
  %421 = vmatprep.subr.bf16.mxu0 %v417
  %422 = vmatpush1.bf16.msra.mxu0 %v414
  %423 = vmatprep.subr.bf16.mxu0 0
  %424 = vmatpush1.bf16.msra.mxu0 0
  %425 = vmatprep.subr.bf16.mxu0 0
  %426 = vmatpush1.bf16.msra.mxu0 0
  %427 = vmatprep.subr.bf16.mxu0 0
  %428 = vmatpush1.bf16.msra.mxu0 0
  %429 = vmatprep.subr.bf16.mxu0 0
  %430 = vmatpush1.bf16.msra.mxu0 0
  %431 = vmatprep.subr.bf16.mxu0 0
  %432 = vmatpush1.bf16.msra.mxu0 0
  %433 = vmatprep.subr.bf16.mxu0 0
  %434 = vmatpush1.bf16.msra.mxu0 0
  %435 = vmatprep.subr.bf16.mxu0 0
  %436 = vmatpush1.bf16.msra.mxu0 0
  %437 = vmatprep.subr.bf16.mxu0 0
  %438 = vmatpush1.bf16.msra.mxu0 0
  %439 = vmatprep.subr.bf16.mxu0 0
  %440 = vmatpush1.bf16.msra.mxu0 0
  %441 = vmatprep.subr.bf16.mxu0 0
  %442 = vmatpush1.bf16.msra.mxu0 0
  %443 = vmatprep.subr.bf16.mxu0 0
  %444 = vmatpush1.bf16.msra.mxu0 0
  %445 = vmatprep.subr.bf16.mxu0 0
  %446 = vmatpush1.bf16.msra.mxu0 0
  %447 = vmatprep.subr.bf16.mxu0 0
  %448 = vmatpush1.bf16.msra.mxu0 0
  %449 = vmatprep.subr.bf16.mxu0 0
  %450 = vmatpush1.bf16.msra.mxu0 0
  %451 = vmatprep.mubr.bf16.mxu0 0
  %452 = vmatmul.mubr.bf16.gmra.mrb[0].mxu0 %v378
  %v453 = vpop.f32.mrb[0].mxu0
  %v454 = vadd.f32 %v227, %v453
  %v455 = vpop.f32.mrb[0].mxu0
  %v456 = vadd.f32 %v229, %v455
  %v457 = vpop.f32.mrb[0].mxu0
  %v458 = vadd.f32 %v231, %v457
  %v459 = vpop.f32.mrb[0].mxu0
  %v460 = vadd.f32 %v233, %v459
  %461 = vmatprep.mubr.bf16.mxu0 0
  %462 = vmatmul.mubr.bf16.gmra.mrb[0].mxu0 %v381
  %v463 = vpop.f32.mrb[0].mxu0
  %v464 = vadd.f32 %v237, %v463
  %v465 = vpop.f32.mrb[0].mxu0
  %v466 = vadd.f32 %v239, %v465
  %v467 = vpop.f32.mrb[0].mxu0
  %v468 = vadd.f32 %v241, %v467
  %v469 = vpop.f32.mrb[0].mxu0
  %v470 = vadd.f32 %v243, %v469
  %471 = vmatprep.mubr.bf16.mxu0 0
  %472 = vmatmul.mubr.bf16.gmra.mrb[0].mxu0 %v384
  %v473 = vpop.f32.mrb[0].mxu0
  %v474 = vadd.f32 %v247, %v473
  %v475 = vpop.f32.mrb[0].mxu0
  %v476 = vadd.f32 %v249, %v475
  %v477 = vpop.f32.mrb[0].mxu0
  %v478 = vadd.f32 %v251, %v477
  %v479 = vpop.f32.mrb[0].mxu0
  %v480 = vadd.f32 %v253, %v479
  %481 = vmatprep.mubr.bf16.mxu0 0
  %482 = vmatmul.mubr.bf16.gmra.mrb[0].mxu0 %v387
  %v483 = vpop.f32.mrb[0].mxu0
  %v484 = vadd.f32 %v257, %v483
  %v485 = vpop.f32.mrb[0].mxu0
  %v486 = vadd.f32 %v259, %v485
  %v487 = vpop.f32.mrb[0].mxu0
  %v488 = vadd.f32 %v261, %v487
  %v489 = vpop.f32.mrb[0].mxu0
  %v490 = vadd.f32 %v263, %v489
  %491 = vmatprep.mubr.bf16.mxu0 0
  %492 = vmatmul.mubr.bf16.gmra.mrb[0].mxu0 %v390
  %v493 = vpop.f32.mrb[0].mxu0
  %v494 = vadd.f32 %v267, %v493
  %v495 = vpop.f32.mrb[0].mxu0
  %v496 = vadd.f32 %v269, %v495
  %v497 = vpop.f32.mrb[0].mxu0
  %v498 = vadd.f32 %v271, %v497
  %v499 = vpop.f32.mrb[0].mxu0
  %v500 = vadd.f32 %v273, %v499
  %501 = vmatprep.mubr.bf16.mxu0 0
  %502 = vmatmul.mubr.bf16.gmra.mrb[0].mxu0 %v393
  %v503 = vpop.f32.mrb[0].mxu0
  %v504 = vadd.f32 %v277, %v503
  %v505 = vpop.f32.mrb[0].mxu0
  %v506 = vadd.f32 %v279, %v505
  %v507 = vpop.f32.mrb[0].mxu0
  %v508 = vadd.f32 %v281, %v507
  %v509 = vpop.f32.mrb[0].mxu0
  %v510 = vadd.f32 %v283, %v509
  %511 = vmatprep.mubr.bf16.mxu0 0
  %512 = vmatmul.mubr.bf16.gmra.mrb[0].mxu0 %v396
  %v513 = vpop.f32.mrb[0].mxu0
  %v514 = vadd.f32 %v287, %v513
  %v515 = vpop.f32.mrb[0].mxu0
  %v516 = vadd.f32 %v289, %v515
  %v517 = vpop.f32.mrb[0].mxu0
  %v518 = vadd.f32 %v291, %v517
  %v519 = vpop.f32.mrb[0].mxu0
  %v520 = vadd.f32 %v293, %v519
  %521 = vmatprep.mubr.bf16.mxu0 0
  %522 = vmatmul.mubr.bf16.gmra.mrb[0].mxu0 %v399
  %v523 = vpop.f32.mrb[0].mxu0
  %v524 = vadd.f32 %v297, %v523
  %v525 = vpop.f32.mrb[0].mxu0
  %v526 = vadd.f32 %v299, %v525
  %v527 = vpop.f32.mrb[0].mxu0
  %v528 = vadd.f32 %v301, %v527
  %v529 = vpop.f32.mrb[0].mxu0
  %v530 = vadd.f32 %v303, %v529
  %531 = vmatprep.mubr.bf16.mxu0 0
  %532 = vmatmul.mubr.bf16.gmra.mrb[0].mxu0 %v402
  %v533 = vpop.f32.mrb[0].mxu0
  %v534 = vadd.f32 %v307, %v533
  %v535 = vpop.f32.mrb[0].mxu0
  %v536 = vadd.f32 %v309, %v535
  %v537 = vpop.f32.mrb[0].mxu0
  %v538 = vadd.f32 %v311, %v537
  %v539 = vpop.f32.mrb[0].mxu0
  %v540 = vadd.f32 %v313, %v539
  %541 = vmatprep.mubr.bf16.mxu0 0
  %542 = vmatmul.mubr.bf16.gmra.mrb[0].mxu0 %v405
  %v543 = vpop.f32.mrb[0].mxu0
  %v544 = vadd.f32 %v317, %v543
  %v545 = vpop.f32.mrb[0].mxu0
  %v546 = vadd.f32 %v319, %v545
  %v547 = vpop.f32.mrb[0].mxu0
  %v548 = vadd.f32 %v321, %v547
  %v549 = vpop.f32.mrb[0].mxu0
  %v550 = vadd.f32 %v323, %v549
  %551 = vmatprep.mubr.bf16.mxu0 0
  %552 = vmatmul.mubr.bf16.gmra.mrb[0].mxu0 %v408
  %v553 = vpop.f32.mrb[0].mxu0
  %v554 = vadd.f32 %v327, %v553
  %v555 = vpop.f32.mrb[0].mxu0
  %v556 = vadd.f32 %v329, %v555
  %v557 = vpop.f32.mrb[0].mxu0
  %v558 = vadd.f32 %v331, %v557
  %v559 = vpop.f32.mrb[0].mxu0
  %v560 = vadd.f32 %v333, %v559
  %561 = vmatprep.mubr.bf16.mxu0 0
  %562 = vmatmul.mubr.bf16.gmra.mrb[0].mxu0 %v411
  %v563 = vpop.f32.mrb[0].mxu0
  %v564 = vadd.f32 %v337, %v563
  %v565 = vpop.f32.mrb[0].mxu0
  %v566 = vadd.f32 %v339, %v565
  %v567 = vpop.f32.mrb[0].mxu0
  %v568 = vadd.f32 %v341, %v567
  %v569 = vpop.f32.mrb[0].mxu0
  %v570 = vadd.f32 %v343, %v569
  %571 = vdwg.mxu0
  %s572 = scalar_lea.vmem %s1, 64
  %v573 = vld [vmem:[%s572] sm:$0xff]
  %v574 = vld [vmem:[%s572 + $0x8] sm:$0xff]
  %v575 = vld [vmem:[%s572 + $0x10] sm:$0xff]
  %v576 = vld [vmem:[%s572 + $0x18] sm:$0x33]
  %v578 = vunpack.c.l.b16 %v58
  %v579 = vpack.c.b16 %v578, %v117
  %v584 = vunpack.c.l.b16 %v573
  %v585 = vunpack.c.h.b16 %v573
  %v586 = vunpack.c.l.b16 %v574
  %v587 = vunpack.c.h.b16 %v574
  %v588 = vunpack.c.l.b16 %v575
  %v589 = vunpack.c.h.b16 %v575
  %v590 = vunpack.c.l.b16 %v576
  %v591 = vunpack.c.h.b16 %v576
  %v592 = vpack.c.b16 %v586, %v584
  %v593 = vpack.c.b16 %v587, %v585
  %v594 = vpack.c.b16 %v590, %v588
  %v595 = vpack.c.b16 %v591, %v589
  %v599 = vsel %vm148, %v579, 0
  %v602 = vsel %vm185, %v594, 0
  %v605 = vsel %vm185, %v595, 0
  %607 = vmatprep.subr.bf16.mxu0 %v593
  %608 = vmatpush1.bf16.msra.mxu0 %v592
  %609 = vmatprep.subr.bf16.mxu0 %v605
  %610 = vmatpush1.bf16.msra.mxu0 %v602
  %611 = vmatprep.subr.bf16.mxu0 0
  %612 = vmatpush1.bf16.msra.mxu0 0
  %613 = vmatprep.subr.bf16.mxu0 0
  %614 = vmatpush1.bf16.msra.mxu0 0
  %615 = vmatprep.subr.bf16.mxu0 0
  %616 = vmatpush1.bf16.msra.mxu0 0
  %617 = vmatprep.subr.bf16.mxu0 0
  %618 = vmatpush1.bf16.msra.mxu0 0
  %619 = vmatprep.subr.bf16.mxu0 0
  %620 = vmatpush1.bf16.msra.mxu0 0
  %621 = vmatprep.subr.bf16.mxu0 0
  %622 = vmatpush1.bf16.msra.mxu0 0
  %623 = vmatprep.subr.bf16.mxu0 0
  %624 = vmatpush1.bf16.msra.mxu0 0
  %625 = vmatprep.subr.bf16.mxu0 0
  %626 = vmatpush1.bf16.msra.mxu0 0
  %627 = vmatprep.subr.bf16.mxu0 0
  %628 = vmatpush1.bf16.msra.mxu0 0
  %629 = vmatprep.subr.bf16.mxu0 0
  %630 = vmatpush1.bf16.msra.mxu0 0
  %631 = vmatprep.subr.bf16.mxu0 0
  %632 = vmatpush1.bf16.msra.mxu0 0
  %633 = vmatprep.subr.bf16.mxu0 0
  %634 = vmatpush1.bf16.msra.mxu0 0
  %635 = vmatprep.subr.bf16.mxu0 0
  %636 = vmatpush1.bf16.msra.mxu0 0
  %637 = vmatprep.subr.bf16.mxu0 0
  %638 = vmatpush1.bf16.msra.mxu0 0
  %639 = vmatprep.mubr.bf16.mxu0 0
  %640 = vmatmul.mubr.bf16.gmra.mrb[0].mxu0 %v381
  %v641 = vpop.f32.mrb[0].mxu0
  %v642 = vadd.f32 0.0, %v641
  %v643 = vpop.f32.mrb[0].mxu0
  %v644 = vadd.f32 0.0, %v643
  %v645 = vpop.f32.mrb[0].mxu0
  %v646 = vadd.f32 0.0, %v645
  %v647 = vpop.f32.mrb[0].mxu0
  %v648 = vadd.f32 0.0, %v647
  %649 = vmatprep.mubr.bf16.mxu0 0
  %650 = vmatmul.mubr.bf16.gmra.mrb[0].mxu0 %v384
  %v651 = vpop.f32.mrb[0].mxu0
  %v652 = vadd.f32 0.0, %v651
  %v653 = vpop.f32.mrb[0].mxu0
  %v654 = vadd.f32 0.0, %v653
  %v655 = vpop.f32.mrb[0].mxu0
  %v656 = vadd.f32 0.0, %v655
  %v657 = vpop.f32.mrb[0].mxu0
  %v658 = vadd.f32 0.0, %v657
  %659 = vmatprep.mubr.bf16.mxu0 0
  %660 = vmatmul.mubr.bf16.gmra.mrb[0].mxu0 %v387
  %v661 = vpop.f32.mrb[0].mxu0
  %v662 = vadd.f32 0.0, %v661
  %v663 = vpop.f32.mrb[0].mxu0
  %v664 = vadd.f32 0.0, %v663
  %v665 = vpop.f32.mrb[0].mxu0
  %v666 = vadd.f32 0.0, %v665
  %v667 = vpop.f32.mrb[0].mxu0
  %v668 = vadd.f32 0.0, %v667
  %669 = vmatprep.mubr.bf16.mxu0 0
  %670 = vmatmul.mubr.bf16.gmra.mrb[0].mxu0 %v390
  %v671 = vpop.f32.mrb[0].mxu0
  %v672 = vadd.f32 0.0, %v671
  %v673 = vpop.f32.mrb[0].mxu0
  %v674 = vadd.f32 0.0, %v673
  %v675 = vpop.f32.mrb[0].mxu0
  %v676 = vadd.f32 0.0, %v675
  %v677 = vpop.f32.mrb[0].mxu0
  %v678 = vadd.f32 0.0, %v677
  %679 = vmatprep.mubr.bf16.mxu0 0
  %680 = vmatmul.mubr.bf16.gmra.mrb[0].mxu0 %v393
  %v681 = vpop.f32.mrb[0].mxu0
  %v682 = vadd.f32 0.0, %v681
  %v683 = vpop.f32.mrb[0].mxu0
  %v684 = vadd.f32 0.0, %v683
  %v685 = vpop.f32.mrb[0].mxu0
  %v686 = vadd.f32 0.0, %v685
  %v687 = vpop.f32.mrb[0].mxu0
  %v688 = vadd.f32 0.0, %v687
  %689 = vmatprep.mubr.bf16.mxu0 0
  %690 = vmatmul.mubr.bf16.gmra.mrb[0].mxu0 %v396
  %v691 = vpop.f32.mrb[0].mxu0
  %v692 = vadd.f32 0.0, %v691
  %v693 = vpop.f32.mrb[0].mxu0
  %v694 = vadd.f32 0.0, %v693
  %v695 = vpop.f32.mrb[0].mxu0
  %v696 = vadd.f32 0.0, %v695
  %v697 = vpop.f32.mrb[0].mxu0
  %v698 = vadd.f32 0.0, %v697
  %699 = vmatprep.mubr.bf16.mxu0 0
  %700 = vmatmul.mubr.bf16.gmra.mrb[0].mxu0 %v399
  %v701 = vpop.f32.mrb[0].mxu0
  %v702 = vadd.f32 0.0, %v701
  %v703 = vpop.f32.mrb[0].mxu0
  %v704 = vadd.f32 0.0, %v703
  %v705 = vpop.f32.mrb[0].mxu0
  %v706 = vadd.f32 0.0, %v705
  %v707 = vpop.f32.mrb[0].mxu0
  %v708 = vadd.f32 0.0, %v707
  %709 = vmatprep.mubr.bf16.mxu0 0
  %710 = vmatmul.mubr.bf16.gmra.mrb[0].mxu0 %v402
  %v711 = vpop.f32.mrb[0].mxu0
  %v712 = vadd.f32 0.0, %v711
  %v713 = vpop.f32.mrb[0].mxu0
  %v714 = vadd.f32 0.0, %v713
  %v715 = vpop.f32.mrb[0].mxu0
  %v716 = vadd.f32 0.0, %v715
  %v717 = vpop.f32.mrb[0].mxu0
  %v718 = vadd.f32 0.0, %v717
  %719 = vmatprep.mubr.bf16.mxu0 0
  %720 = vmatmul.mubr.bf16.gmra.mrb[0].mxu0 %v405
  %v721 = vpop.f32.mrb[0].mxu0
  %v722 = vadd.f32 0.0, %v721
  %v723 = vpop.f32.mrb[0].mxu0
  %v724 = vadd.f32 0.0, %v723
  %v725 = vpop.f32.mrb[0].mxu0
  %v726 = vadd.f32 0.0, %v725
  %v727 = vpop.f32.mrb[0].mxu0
  %v728 = vadd.f32 0.0, %v727
  %729 = vmatprep.mubr.bf16.mxu0 0
  %730 = vmatmul.mubr.bf16.gmra.mrb[0].mxu0 %v408
  %v731 = vpop.f32.mrb[0].mxu0
  %v732 = vadd.f32 0.0, %v731
  %v733 = vpop.f32.mrb[0].mxu0
  %v734 = vadd.f32 0.0, %v733
  %v735 = vpop.f32.mrb[0].mxu0
  %v736 = vadd.f32 0.0, %v735
  %v737 = vpop.f32.mrb[0].mxu0
  %v738 = vadd.f32 0.0, %v737
  %739 = vmatprep.mubr.bf16.mxu0 0
  %740 = vmatmul.mubr.bf16.gmra.mrb[0].mxu0 %v411
  %v741 = vpop.f32.mrb[0].mxu0
  %v742 = vadd.f32 0.0, %v741
  %v743 = vpop.f32.mrb[0].mxu0
  %v744 = vadd.f32 0.0, %v743
  %v745 = vpop.f32.mrb[0].mxu0
  %v746 = vadd.f32 0.0, %v745
  %v747 = vpop.f32.mrb[0].mxu0
  %v748 = vadd.f32 0.0, %v747
  %749 = vmatprep.mubr.bf16.mxu0 0
  %750 = vmatmul.mubr.bf16.gmra.mrb[0].mxu0 %v599
  %v751 = vpop.f32.mrb[0].mxu0
  %v752 = vadd.f32 0.0, %v751
  %v753 = vpop.f32.mrb[0].mxu0
  %v754 = vadd.f32 0.0, %v753
  %v755 = vpop.f32.mrb[0].mxu0
  %v756 = vadd.f32 0.0, %v755
  %v757 = vpop.f32.mrb[0].mxu0
  %v758 = vadd.f32 0.0, %v757
  %759 = vdwg.mxu0
  %v760 = vadd.f32 %v454, %v642
  %v761 = vadd.f32 %v456, %v644
  %v762 = vadd.f32 %v458, %v646
  %v763 = vadd.f32 %v460, %v648
  %v764 = vadd.f32 %v464, %v652
  %v765 = vadd.f32 %v466, %v654
  %v766 = vadd.f32 %v468, %v656
  %v767 = vadd.f32 %v470, %v658
  %v768 = vadd.f32 %v474, %v662
  %v769 = vadd.f32 %v476, %v664
  %v770 = vadd.f32 %v478, %v666
  %v771 = vadd.f32 %v480, %v668
  %v772 = vadd.f32 %v484, %v672
  %v773 = vadd.f32 %v486, %v674
  %v774 = vadd.f32 %v488, %v676
  %v775 = vadd.f32 %v490, %v678
  %v776 = vadd.f32 %v494, %v682
  %v777 = vadd.f32 %v496, %v684
  %v778 = vadd.f32 %v498, %v686
  %v779 = vadd.f32 %v500, %v688
  %v780 = vadd.f32 %v504, %v692
  %v781 = vadd.f32 %v506, %v694
  %v782 = vadd.f32 %v508, %v696
  %v783 = vadd.f32 %v510, %v698
  %v784 = vadd.f32 %v514, %v702
  %v785 = vadd.f32 %v516, %v704
  %v786 = vadd.f32 %v518, %v706
  %v787 = vadd.f32 %v520, %v708
  %v788 = vadd.f32 %v524, %v712
  %v789 = vadd.f32 %v526, %v714
  %v790 = vadd.f32 %v528, %v716
  %v791 = vadd.f32 %v530, %v718
  %v792 = vadd.f32 %v534, %v722
  %v793 = vadd.f32 %v536, %v724
  %v794 = vadd.f32 %v538, %v726
  %v795 = vadd.f32 %v540, %v728
  %v796 = vadd.f32 %v544, %v732
  %v797 = vadd.f32 %v546, %v734
  %v798 = vadd.f32 %v548, %v736
  %v799 = vadd.f32 %v550, %v738
  %v800 = vadd.f32 %v554, %v742
  %v801 = vadd.f32 %v556, %v744
  %v802 = vadd.f32 %v558, %v746
  %v803 = vadd.f32 %v560, %v748
  %v804 = vadd.f32 %v564, %v752
  %v805 = vadd.f32 %v566, %v754
  %v806 = vadd.f32 %v568, %v756
  %v807 = vadd.f32 %v570, %v758
  %s808 = scalar_lea.vmem %s1, 96
  %v809 = vld [vmem:[%s808] sm:$0xff]
  %v810 = vld [vmem:[%s808 + $0x8] sm:$0xff]
  %v811 = vld [vmem:[%s808 + $0x10] sm:$0xff]
  %v812 = vld [vmem:[%s808 + $0x18] sm:$0x33]
  %v814 = vunpack.c.l.b16 %v59
  %v815 = vpack.c.b16 %v814, %v578
  %v820 = vunpack.c.l.b16 %v809
  %v821 = vunpack.c.h.b16 %v809
  %v822 = vunpack.c.l.b16 %v810
  %v823 = vunpack.c.h.b16 %v810
  %v824 = vunpack.c.l.b16 %v811
  %v825 = vunpack.c.h.b16 %v811
  %v826 = vunpack.c.l.b16 %v812
  %v827 = vunpack.c.h.b16 %v812
  %v828 = vpack.c.b16 %v822, %v820
  %v829 = vpack.c.b16 %v823, %v821
  %v830 = vpack.c.b16 %v826, %v824
  %v831 = vpack.c.b16 %v827, %v825
  %v835 = vsel %vm148, %v815, 0
  %v838 = vsel %vm185, %v830, 0
  %v841 = vsel %vm185, %v831, 0
  %843 = vmatprep.subr.bf16.mxu0 %v829
  %844 = vmatpush1.bf16.msra.mxu0 %v828
  %845 = vmatprep.subr.bf16.mxu0 %v841
  %846 = vmatpush1.bf16.msra.mxu0 %v838
  %847 = vmatprep.subr.bf16.mxu0 0
  %848 = vmatpush1.bf16.msra.mxu0 0
  %849 = vmatprep.subr.bf16.mxu0 0
  %850 = vmatpush1.bf16.msra.mxu0 0
  %851 = vmatprep.subr.bf16.mxu0 0
  %852 = vmatpush1.bf16.msra.mxu0 0
  %853 = vmatprep.subr.bf16.mxu0 0
  %854 = vmatpush1.bf16.msra.mxu0 0
  %855 = vmatprep.subr.bf16.mxu0 0
  %856 = vmatpush1.bf16.msra.mxu0 0
  %857 = vmatprep.subr.bf16.mxu0 0
  %858 = vmatpush1.bf16.msra.mxu0 0
  %859 = vmatprep.subr.bf16.mxu0 0
  %860 = vmatpush1.bf16.msra.mxu0 0
  %861 = vmatprep.subr.bf16.mxu0 0
  %862 = vmatpush1.bf16.msra.mxu0 0
  %863 = vmatprep.subr.bf16.mxu0 0
  %864 = vmatpush1.bf16.msra.mxu0 0
  %865 = vmatprep.subr.bf16.mxu0 0
  %866 = vmatpush1.bf16.msra.mxu0 0
  %867 = vmatprep.subr.bf16.mxu0 0
  %868 = vmatpush1.bf16.msra.mxu0 0
  %869 = vmatprep.subr.bf16.mxu0 0
  %870 = vmatpush1.bf16.msra.mxu0 0
  %871 = vmatprep.subr.bf16.mxu0 0
  %872 = vmatpush1.bf16.msra.mxu0 0
  %873 = vmatprep.subr.bf16.mxu0 0
  %874 = vmatpush1.bf16.msra.mxu0 0
  %875 = vmatprep.mubr.bf16.mxu0 0
  %876 = vmatmul.mubr.bf16.gmra.mrb[0].mxu0 %v153
  %v877 = vpop.f32.mrb[0].mxu0
  %v878 = vadd.f32 0.0, %v877
  %v879 = vpop.f32.mrb[0].mxu0
  %v880 = vadd.f32 0.0, %v879
  %v881 = vpop.f32.mrb[0].mxu0
  %v882 = vadd.f32 0.0, %v881
  %v883 = vpop.f32.mrb[0].mxu0
  %v884 = vadd.f32 0.0, %v883
  %885 = vmatprep.mubr.bf16.mxu0 0
  %886 = vmatmul.mubr.bf16.gmra.mrb[0].mxu0 %v156
  %v887 = vpop.f32.mrb[0].mxu0
  %v888 = vadd.f32 0.0, %v887
  %v889 = vpop.f32.mrb[0].mxu0
  %v890 = vadd.f32 0.0, %v889
  %v891 = vpop.f32.mrb[0].mxu0
  %v892 = vadd.f32 0.0, %v891
  %v893 = vpop.f32.mrb[0].mxu0
  %v894 = vadd.f32 0.0, %v893
  %895 = vmatprep.mubr.bf16.mxu0 0
  %896 = vmatmul.mubr.bf16.gmra.mrb[0].mxu0 %v159
  %v897 = vpop.f32.mrb[0].mxu0
  %v898 = vadd.f32 0.0, %v897
  %v899 = vpop.f32.mrb[0].mxu0
  %v900 = vadd.f32 0.0, %v899
  %v901 = vpop.f32.mrb[0].mxu0
  %v902 = vadd.f32 0.0, %v901
  %v903 = vpop.f32.mrb[0].mxu0
  %v904 = vadd.f32 0.0, %v903
  %905 = vmatprep.mubr.bf16.mxu0 0
  %906 = vmatmul.mubr.bf16.gmra.mrb[0].mxu0 %v162
  %v907 = vpop.f32.mrb[0].mxu0
  %v908 = vadd.f32 0.0, %v907
  %v909 = vpop.f32.mrb[0].mxu0
  %v910 = vadd.f32 0.0, %v909
  %v911 = vpop.f32.mrb[0].mxu0
  %v912 = vadd.f32 0.0, %v911
  %v913 = vpop.f32.mrb[0].mxu0
  %v914 = vadd.f32 0.0, %v913
  %915 = vmatprep.mubr.bf16.mxu0 0
  %916 = vmatmul.mubr.bf16.gmra.mrb[0].mxu0 %v165
  %v917 = vpop.f32.mrb[0].mxu0
  %v918 = vadd.f32 0.0, %v917
  %v919 = vpop.f32.mrb[0].mxu0
  %v920 = vadd.f32 0.0, %v919
  %v921 = vpop.f32.mrb[0].mxu0
  %v922 = vadd.f32 0.0, %v921
  %v923 = vpop.f32.mrb[0].mxu0
  %v924 = vadd.f32 0.0, %v923
  %925 = vmatprep.mubr.bf16.mxu0 0
  %926 = vmatmul.mubr.bf16.gmra.mrb[0].mxu0 %v168
  %v927 = vpop.f32.mrb[0].mxu0
  %v928 = vadd.f32 0.0, %v927
  %v929 = vpop.f32.mrb[0].mxu0
  %v930 = vadd.f32 0.0, %v929
  %v931 = vpop.f32.mrb[0].mxu0
  %v932 = vadd.f32 0.0, %v931
  %v933 = vpop.f32.mrb[0].mxu0
  %v934 = vadd.f32 0.0, %v933
  %935 = vmatprep.mubr.bf16.mxu0 0
  %936 = vmatmul.mubr.bf16.gmra.mrb[0].mxu0 %v171
  %v937 = vpop.f32.mrb[0].mxu0
  %v938 = vadd.f32 0.0, %v937
  %v939 = vpop.f32.mrb[0].mxu0
  %v940 = vadd.f32 0.0, %v939
  %v941 = vpop.f32.mrb[0].mxu0
  %v942 = vadd.f32 0.0, %v941
  %v943 = vpop.f32.mrb[0].mxu0
  %v944 = vadd.f32 0.0, %v943
  %945 = vmatprep.mubr.bf16.mxu0 0
  %946 = vmatmul.mubr.bf16.gmra.mrb[0].mxu0 %v174
  %v947 = vpop.f32.mrb[0].mxu0
  %v948 = vadd.f32 0.0, %v947
  %v949 = vpop.f32.mrb[0].mxu0
  %v950 = vadd.f32 0.0, %v949
  %v951 = vpop.f32.mrb[0].mxu0
  %v952 = vadd.f32 0.0, %v951
  %v953 = vpop.f32.mrb[0].mxu0
  %v954 = vadd.f32 0.0, %v953
  %955 = vmatprep.mubr.bf16.mxu0 0
  %956 = vmatmul.mubr.bf16.gmra.mrb[0].mxu0 %v177
  %v957 = vpop.f32.mrb[0].mxu0
  %v958 = vadd.f32 0.0, %v957
  %v959 = vpop.f32.mrb[0].mxu0
  %v960 = vadd.f32 0.0, %v959
  %v961 = vpop.f32.mrb[0].mxu0
  %v962 = vadd.f32 0.0, %v961
  %v963 = vpop.f32.mrb[0].mxu0
  %v964 = vadd.f32 0.0, %v963
  %965 = vmatprep.mubr.bf16.mxu0 0
  %966 = vmatmul.mubr.bf16.gmra.mrb[0].mxu0 %v180
  %v967 = vpop.f32.mrb[0].mxu0
  %v968 = vadd.f32 0.0, %v967
  %v969 = vpop.f32.mrb[0].mxu0
  %v970 = vadd.f32 0.0, %v969
  %v971 = vpop.f32.mrb[0].mxu0
  %v972 = vadd.f32 0.0, %v971
  %v973 = vpop.f32.mrb[0].mxu0
  %v974 = vadd.f32 0.0, %v973
  %975 = vmatprep.mubr.bf16.mxu0 0
  %976 = vmatmul.mubr.bf16.gmra.mrb[0].mxu0 %v183
  %v977 = vpop.f32.mrb[0].mxu0
  %v978 = vadd.f32 0.0, %v977
  %v979 = vpop.f32.mrb[0].mxu0
  %v980 = vadd.f32 0.0, %v979
  %v981 = vpop.f32.mrb[0].mxu0
  %v982 = vadd.f32 0.0, %v981
  %v983 = vpop.f32.mrb[0].mxu0
  %v984 = vadd.f32 0.0, %v983
  %985 = vmatprep.mubr.bf16.mxu0 0
  %986 = vmatmul.mubr.bf16.gmra.mrb[0].mxu0 %v835
  %v987 = vpop.f32.mrb[0].mxu0
  %v988 = vadd.f32 0.0, %v987
  %v989 = vpop.f32.mrb[0].mxu0
  %v990 = vadd.f32 0.0, %v989
  %v991 = vpop.f32.mrb[0].mxu0
  %v992 = vadd.f32 0.0, %v991
  %v993 = vpop.f32.mrb[0].mxu0
  %v994 = vadd.f32 0.0, %v993
  %995 = vdwg.mxu0
  %v996 = vadd.f32 %v760, %v878
  %v997 = vadd.f32 %v761, %v880
  %v998 = vadd.f32 %v762, %v882
  %v999 = vadd.f32 %v763, %v884
  %v1000 = vadd.f32 %v764, %v888
  %v1001 = vadd.f32 %v765, %v890
  %v1002 = vadd.f32 %v766, %v892
  %v1003 = vadd.f32 %v767, %v894
  %v1004 = vadd.f32 %v768, %v898
  %v1005 = vadd.f32 %v769, %v900
  %v1006 = vadd.f32 %v770, %v902
  %v1007 = vadd.f32 %v771, %v904
  %v1008 = vadd.f32 %v772, %v908
  %v1009 = vadd.f32 %v773, %v910
  %v1010 = vadd.f32 %v774, %v912
  %v1011 = vadd.f32 %v775, %v914
  %v1012 = vadd.f32 %v776, %v918
  %v1013 = vadd.f32 %v777, %v920
  %v1014 = vadd.f32 %v778, %v922
  %v1015 = vadd.f32 %v779, %v924
  %v1016 = vadd.f32 %v780, %v928
  %v1017 = vadd.f32 %v781, %v930
  %v1018 = vadd.f32 %v782, %v932
  %v1019 = vadd.f32 %v783, %v934
  %v1020 = vadd.f32 %v784, %v938
  %v1021 = vadd.f32 %v785, %v940
  %v1022 = vadd.f32 %v786, %v942
  %v1023 = vadd.f32 %v787, %v944
  %v1024 = vadd.f32 %v788, %v948
  %v1025 = vadd.f32 %v789, %v950
  %v1026 = vadd.f32 %v790, %v952
  %v1027 = vadd.f32 %v791, %v954
  %v1028 = vadd.f32 %v792, %v958
  %v1029 = vadd.f32 %v793, %v960
  %v1030 = vadd.f32 %v794, %v962
  %v1031 = vadd.f32 %v795, %v964
  %v1032 = vadd.f32 %v796, %v968
  %v1033 = vadd.f32 %v797, %v970
  %v1034 = vadd.f32 %v798, %v972
  %v1035 = vadd.f32 %v799, %v974
  %v1036 = vadd.f32 %v800, %v978
  %v1037 = vadd.f32 %v801, %v980
  %v1038 = vadd.f32 %v802, %v982
  %v1039 = vadd.f32 %v803, %v984
  %v1040 = vadd.f32 %v804, %v988
  %v1041 = vadd.f32 %v805, %v990
  %v1042 = vadd.f32 %v806, %v992
  %v1043 = vadd.f32 %v807, %v994
  %s1044 = scalar_lea.vmem %s1, 128
  %v1045 = vld [vmem:[%s1044] sm:$0xff]
  %v1046 = vld [vmem:[%s1044 + $0x8] sm:$0xff]
  %v1047 = vld [vmem:[%s1044 + $0x10] sm:$0xff]
  %v1048 = vld [vmem:[%s1044 + $0x18] sm:$0x33]
  %v1050 = vunpack.c.l.b16 %v60
  %v1051 = vpack.c.b16 %v1050, %v814
  %v1056 = vunpack.c.l.b16 %v1045
  %v1057 = vunpack.c.h.b16 %v1045
  %v1058 = vunpack.c.l.b16 %v1046
  %v1059 = vunpack.c.h.b16 %v1046
  %v1060 = vunpack.c.l.b16 %v1047
  %v1061 = vunpack.c.h.b16 %v1047
  %v1062 = vunpack.c.l.b16 %v1048
  %v1063 = vunpack.c.h.b16 %v1048
  %v1064 = vpack.c.b16 %v1058, %v1056
  %v1065 = vpack.c.b16 %v1059, %v1057
  %v1066 = vpack.c.b16 %v1062, %v1060
  %v1067 = vpack.c.b16 %v1063, %v1061
  %v1071 = vsel %vm148, %v1051, 0
  %v1074 = vsel %vm185, %v1066, 0
  %v1077 = vsel %vm185, %v1067, 0
  %1079 = vmatprep.subr.bf16.mxu0 %v1065
  %1080 = vmatpush1.bf16.msra.mxu0 %v1064
  %1081 = vmatprep.subr.bf16.mxu0 %v1077
  %1082 = vmatpush1.bf16.msra.mxu0 %v1074
  %1083 = vmatprep.subr.bf16.mxu0 0
  %1084 = vmatpush1.bf16.msra.mxu0 0
  %1085 = vmatprep.subr.bf16.mxu0 0
  %1086 = vmatpush1.bf16.msra.mxu0 0
  %1087 = vmatprep.subr.bf16.mxu0 0
  %1088 = vmatpush1.bf16.msra.mxu0 0
  %1089 = vmatprep.subr.bf16.mxu0 0
  %1090 = vmatpush1.bf16.msra.mxu0 0
  %1091 = vmatprep.subr.bf16.mxu0 0
  %1092 = vmatpush1.bf16.msra.mxu0 0
  %1093 = vmatprep.subr.bf16.mxu0 0
  %1094 = vmatpush1.bf16.msra.mxu0 0
  %1095 = vmatprep.subr.bf16.mxu0 0
  %1096 = vmatpush1.bf16.msra.mxu0 0
  %1097 = vmatprep.subr.bf16.mxu0 0
  %1098 = vmatpush1.bf16.msra.mxu0 0
  %1099 = vmatprep.subr.bf16.mxu0 0
  %1100 = vmatpush1.bf16.msra.mxu0 0
  %1101 = vmatprep.subr.bf16.mxu0 0
  %1102 = vmatpush1.bf16.msra.mxu0 0
  %1103 = vmatprep.subr.bf16.mxu0 0
  %1104 = vmatpush1.bf16.msra.mxu0 0
  %1105 = vmatprep.subr.bf16.mxu0 0
  %1106 = vmatpush1.bf16.msra.mxu0 0
  %1107 = vmatprep.subr.bf16.mxu0 0
  %1108 = vmatpush1.bf16.msra.mxu0 0
  %1109 = vmatprep.subr.bf16.mxu0 0
  %1110 = vmatpush1.bf16.msra.mxu0 0
  %1111 = vmatprep.mubr.bf16.mxu0 0
  %1112 = vmatmul.mubr.bf16.gmra.mrb[0].mxu0 %v384
  %v1113 = vpop.f32.mrb[0].mxu0
  %v1114 = vadd.f32 0.0, %v1113
  %v1115 = vpop.f32.mrb[0].mxu0
  %v1116 = vadd.f32 0.0, %v1115
  %v1117 = vpop.f32.mrb[0].mxu0
  %v1118 = vadd.f32 0.0, %v1117
  %v1119 = vpop.f32.mrb[0].mxu0
  %v1120 = vadd.f32 0.0, %v1119
  %1121 = vmatprep.mubr.bf16.mxu0 0
  %1122 = vmatmul.mubr.bf16.gmra.mrb[0].mxu0 %v387
  %v1123 = vpop.f32.mrb[0].mxu0
  %v1124 = vadd.f32 0.0, %v1123
  %v1125 = vpop.f32.mrb[0].mxu0
  %v1126 = vadd.f32 0.0, %v1125
  %v1127 = vpop.f32.mrb[0].mxu0
  %v1128 = vadd.f32 0.0, %v1127
  %v1129 = vpop.f32.mrb[0].mxu0
  %v1130 = vadd.f32 0.0, %v1129
  %1131 = vmatprep.mubr.bf16.mxu0 0
  %1132 = vmatmul.mubr.bf16.gmra.mrb[0].mxu0 %v390
  %v1133 = vpop.f32.mrb[0].mxu0
  %v1134 = vadd.f32 0.0, %v1133
  %v1135 = vpop.f32.mrb[0].mxu0
  %v1136 = vadd.f32 0.0, %v1135
  %v1137 = vpop.f32.mrb[0].mxu0
  %v1138 = vadd.f32 0.0, %v1137
  %v1139 = vpop.f32.mrb[0].mxu0
  %v1140 = vadd.f32 0.0, %v1139
  %1141 = vmatprep.mubr.bf16.mxu0 0
  %1142 = vmatmul.mubr.bf16.gmra.mrb[0].mxu0 %v393
  %v1143 = vpop.f32.mrb[0].mxu0
  %v1144 = vadd.f32 0.0, %v1143
  %v1145 = vpop.f32.mrb[0].mxu0
  %v1146 = vadd.f32 0.0, %v1145
  %v1147 = vpop.f32.mrb[0].mxu0
  %v1148 = vadd.f32 0.0, %v1147
  %v1149 = vpop.f32.mrb[0].mxu0
  %v1150 = vadd.f32 0.0, %v1149
  %1151 = vmatprep.mubr.bf16.mxu0 0
  %1152 = vmatmul.mubr.bf16.gmra.mrb[0].mxu0 %v396
  %v1153 = vpop.f32.mrb[0].mxu0
  %v1154 = vadd.f32 0.0, %v1153
  %v1155 = vpop.f32.mrb[0].mxu0
  %v1156 = vadd.f32 0.0, %v1155
  %v1157 = vpop.f32.mrb[0].mxu0
  %v1158 = vadd.f32 0.0, %v1157
  %v1159 = vpop.f32.mrb[0].mxu0
  %v1160 = vadd.f32 0.0, %v1159
  %1161 = vmatprep.mubr.bf16.mxu0 0
  %1162 = vmatmul.mubr.bf16.gmra.mrb[0].mxu0 %v399
  %v1163 = vpop.f32.mrb[0].mxu0
  %v1164 = vadd.f32 0.0, %v1163
  %v1165 = vpop.f32.mrb[0].mxu0
  %v1166 = vadd.f32 0.0, %v1165
  %v1167 = vpop.f32.mrb[0].mxu0
  %v1168 = vadd.f32 0.0, %v1167
  %v1169 = vpop.f32.mrb[0].mxu0
  %v1170 = vadd.f32 0.0, %v1169
  %1171 = vmatprep.mubr.bf16.mxu0 0
  %1172 = vmatmul.mubr.bf16.gmra.mrb[0].mxu0 %v402
  %v1173 = vpop.f32.mrb[0].mxu0
  %v1174 = vadd.f32 0.0, %v1173
  %v1175 = vpop.f32.mrb[0].mxu0
  %v1176 = vadd.f32 0.0, %v1175
  %v1177 = vpop.f32.mrb[0].mxu0
  %v1178 = vadd.f32 0.0, %v1177
  %v1179 = vpop.f32.mrb[0].mxu0
  %v1180 = vadd.f32 0.0, %v1179
  %1181 = vmatprep.mubr.bf16.mxu0 0
  %1182 = vmatmul.mubr.bf16.gmra.mrb[0].mxu0 %v405
  %v1183 = vpop.f32.mrb[0].mxu0
  %v1184 = vadd.f32 0.0, %v1183
  %v1185 = vpop.f32.mrb[0].mxu0
  %v1186 = vadd.f32 0.0, %v1185
  %v1187 = vpop.f32.mrb[0].mxu0
  %v1188 = vadd.f32 0.0, %v1187
  %v1189 = vpop.f32.mrb[0].mxu0
  %v1190 = vadd.f32 0.0, %v1189
  %1191 = vmatprep.mubr.bf16.mxu0 0
  %1192 = vmatmul.mubr.bf16.gmra.mrb[0].mxu0 %v408
  %v1193 = vpop.f32.mrb[0].mxu0
  %v1194 = vadd.f32 0.0, %v1193
  %v1195 = vpop.f32.mrb[0].mxu0
  %v1196 = vadd.f32 0.0, %v1195
  %v1197 = vpop.f32.mrb[0].mxu0
  %v1198 = vadd.f32 0.0, %v1197
  %v1199 = vpop.f32.mrb[0].mxu0
  %v1200 = vadd.f32 0.0, %v1199
  %1201 = vmatprep.mubr.bf16.mxu0 0
  %1202 = vmatmul.mubr.bf16.gmra.mrb[0].mxu0 %v411
  %v1203 = vpop.f32.mrb[0].mxu0
  %v1204 = vadd.f32 0.0, %v1203
  %v1205 = vpop.f32.mrb[0].mxu0
  %v1206 = vadd.f32 0.0, %v1205
  %v1207 = vpop.f32.mrb[0].mxu0
  %v1208 = vadd.f32 0.0, %v1207
  %v1209 = vpop.f32.mrb[0].mxu0
  %v1210 = vadd.f32 0.0, %v1209
  %1211 = vmatprep.mubr.bf16.mxu0 0
  %1212 = vmatmul.mubr.bf16.gmra.mrb[0].mxu0 %v599
  %v1213 = vpop.f32.mrb[0].mxu0
  %v1214 = vadd.f32 0.0, %v1213
  %v1215 = vpop.f32.mrb[0].mxu0
  %v1216 = vadd.f32 0.0, %v1215
  %v1217 = vpop.f32.mrb[0].mxu0
  %v1218 = vadd.f32 0.0, %v1217
  %v1219 = vpop.f32.mrb[0].mxu0
  %v1220 = vadd.f32 0.0, %v1219
  %1221 = vmatprep.mubr.bf16.mxu0 0
  %1222 = vmatmul.mubr.bf16.gmra.mrb[0].mxu0 %v1071
  %v1223 = vpop.f32.mrb[0].mxu0
  %v1224 = vadd.f32 0.0, %v1223
  %v1225 = vpop.f32.mrb[0].mxu0
  %v1226 = vadd.f32 0.0, %v1225
  %v1227 = vpop.f32.mrb[0].mxu0
  %v1228 = vadd.f32 0.0, %v1227
  %v1229 = vpop.f32.mrb[0].mxu0
  %v1230 = vadd.f32 0.0, %v1229
  %1231 = vdwg.mxu0
  %v1232 = vadd.f32 %v996, %v1114
  %v1233 = vadd.f32 %v997, %v1116
  %v1234 = vadd.f32 %v998, %v1118
  %v1235 = vadd.f32 %v999, %v1120
  %v1236 = vadd.f32 %v1000, %v1124
  %v1237 = vadd.f32 %v1001, %v1126
  %v1238 = vadd.f32 %v1002, %v1128
  %v1239 = vadd.f32 %v1003, %v1130
  %v1240 = vadd.f32 %v1004, %v1134
  %v1241 = vadd.f32 %v1005, %v1136
  %v1242 = vadd.f32 %v1006, %v1138
  %v1243 = vadd.f32 %v1007, %v1140
  %v1244 = vadd.f32 %v1008, %v1144
  %v1245 = vadd.f32 %v1009, %v1146
  %v1246 = vadd.f32 %v1010, %v1148
  %v1247 = vadd.f32 %v1011, %v1150
  %v1248 = vadd.f32 %v1012, %v1154
  %v1249 = vadd.f32 %v1013, %v1156
  %v1250 = vadd.f32 %v1014, %v1158
  %v1251 = vadd.f32 %v1015, %v1160
  %v1252 = vadd.f32 %v1016, %v1164
  %v1253 = vadd.f32 %v1017, %v1166
  %v1254 = vadd.f32 %v1018, %v1168
  %v1255 = vadd.f32 %v1019, %v1170
  %v1256 = vadd.f32 %v1020, %v1174
  %v1257 = vadd.f32 %v1021, %v1176
  %v1258 = vadd.f32 %v1022, %v1178
  %v1259 = vadd.f32 %v1023, %v1180
  %v1260 = vadd.f32 %v1024, %v1184
  %v1261 = vadd.f32 %v1025, %v1186
  %v1262 = vadd.f32 %v1026, %v1188
  %v1263 = vadd.f32 %v1027, %v1190
  %v1264 = vadd.f32 %v1028, %v1194
  %v1265 = vadd.f32 %v1029, %v1196
  %v1266 = vadd.f32 %v1030, %v1198
  %v1267 = vadd.f32 %v1031, %v1200
  %v1268 = vadd.f32 %v1032, %v1204
  %v1269 = vadd.f32 %v1033, %v1206
  %v1270 = vadd.f32 %v1034, %v1208
  %v1271 = vadd.f32 %v1035, %v1210
  %v1272 = vadd.f32 %v1036, %v1214
  %v1273 = vadd.f32 %v1037, %v1216
  %v1274 = vadd.f32 %v1038, %v1218
  %v1275 = vadd.f32 %v1039, %v1220
  %v1276 = vadd.f32 %v1040, %v1224
  %v1277 = vadd.f32 %v1041, %v1226
  %v1278 = vadd.f32 %v1042, %v1228
  %v1279 = vadd.f32 %v1043, %v1230
  %v1280 = vld [vmem:[%s2] sm:$0x3]
  %v1282 = vlaneseq
  %v1283 = vshrl.u32 %v1282, 7
  %v1284 = vsub.s32 0, %v1283
  %v1285 = vrot.slane %v1280, %v1284
  %v1286 = vlaneseq
  %v1287 = vshrl.u32 %v1286, 7
  %v1288 = vsub.s32 1, %v1287
  %v1289 = vrot.slane %v1280, %v1288
  %v1292 = vadd.f32 %v1232, %v1285
  %v1293 = vadd.f32 %v1233, %v1289
  %v1294 = vadd.f32 %v1234, %v1285
  %v1295 = vadd.f32 %v1235, %v1289
  %v1296 = vadd.f32 %v1236, %v1285
  %v1297 = vadd.f32 %v1237, %v1289
  %v1298 = vadd.f32 %v1238, %v1285
  %v1299 = vadd.f32 %v1239, %v1289
  %v1300 = vadd.f32 %v1240, %v1285
  %v1301 = vadd.f32 %v1241, %v1289
  %v1302 = vadd.f32 %v1242, %v1285
  %v1303 = vadd.f32 %v1243, %v1289
  %v1304 = vadd.f32 %v1244, %v1285
  %v1305 = vadd.f32 %v1245, %v1289
  %v1306 = vadd.f32 %v1246, %v1285
  %v1307 = vadd.f32 %v1247, %v1289
  %v1308 = vadd.f32 %v1248, %v1285
  %v1309 = vadd.f32 %v1249, %v1289
  %v1310 = vadd.f32 %v1250, %v1285
  %v1311 = vadd.f32 %v1251, %v1289
  %v1312 = vadd.f32 %v1252, %v1285
  %v1313 = vadd.f32 %v1253, %v1289
  %v1314 = vadd.f32 %v1254, %v1285
  %v1315 = vadd.f32 %v1255, %v1289
  %v1316 = vadd.f32 %v1256, %v1285
  %v1317 = vadd.f32 %v1257, %v1289
  %v1318 = vadd.f32 %v1258, %v1285
  %v1319 = vadd.f32 %v1259, %v1289
  %v1320 = vadd.f32 %v1260, %v1285
  %v1321 = vadd.f32 %v1261, %v1289
  %v1322 = vadd.f32 %v1262, %v1285
  %v1323 = vadd.f32 %v1263, %v1289
  %v1324 = vadd.f32 %v1264, %v1285
  %v1325 = vadd.f32 %v1265, %v1289
  %v1326 = vadd.f32 %v1266, %v1285
  %v1327 = vadd.f32 %v1267, %v1289
  %v1328 = vadd.f32 %v1268, %v1285
  %v1329 = vadd.f32 %v1269, %v1289
  %v1330 = vadd.f32 %v1270, %v1285
  %v1331 = vadd.f32 %v1271, %v1289
  %v1332 = vadd.f32 %v1272, %v1285
  %v1333 = vadd.f32 %v1273, %v1289
  %v1334 = vadd.f32 %v1274, %v1285
  %v1335 = vadd.f32 %v1275, %v1289
  %v1336 = vadd.f32 %v1276, %v1285
  %v1337 = vadd.f32 %v1277, %v1289
  %v1338 = vadd.f32 %v1278, %v1285
  %v1339 = vadd.f32 %v1279, %v1289
  %v1340 = vmax.f32 %v1292, %v1294
  %v1341 = vmax.f32 %v1293, %v1295
  %v1342 = vmax.f32 %v1296, %v1298
  %v1343 = vmax.f32 %v1297, %v1299
  %v1344 = vmax.f32 %v1300, %v1302
  %v1345 = vmax.f32 %v1301, %v1303
  %v1346 = vmax.f32 %v1304, %v1306
  %v1347 = vmax.f32 %v1305, %v1307
  %v1348 = vmax.f32 %v1308, %v1310
  %v1349 = vmax.f32 %v1309, %v1311
  %v1350 = vmax.f32 %v1312, %v1314
  %v1351 = vmax.f32 %v1313, %v1315
  %v1352 = vmax.f32 %v1316, %v1318
  %v1353 = vmax.f32 %v1317, %v1319
  %v1354 = vmax.f32 %v1320, %v1322
  %v1355 = vmax.f32 %v1321, %v1323
  %v1356 = vmax.f32 %v1324, %v1326
  %v1357 = vmax.f32 %v1325, %v1327
  %v1358 = vmax.f32 %v1328, %v1330
  %v1359 = vmax.f32 %v1329, %v1331
  %v1360 = vmax.f32 %v1332, %v1334
  %v1361 = vmax.f32 %v1333, %v1335
  %v1362 = vmax.f32 %v1336, %v1338
  %v1363 = vmax.f32 %v1337, %v1339
  %1388 = vrot.lane.b32.xlu0 %v1340, 127
  %v1389 = vpop.permute.xlu0 %1388
  %1390 = vrot.lane.b32.xlu0 %v1341, 127
  %v1391 = vpop.permute.xlu0 %1390
  %1392 = vrot.lane.b32.xlu0 %v1342, 127
  %v1393 = vpop.permute.xlu0 %1392
  %1394 = vrot.lane.b32.xlu0 %v1343, 127
  %v1395 = vpop.permute.xlu0 %1394
  %1396 = vrot.lane.b32.xlu0 %v1344, 127
  %v1397 = vpop.permute.xlu0 %1396
  %1398 = vrot.lane.b32.xlu0 %v1345, 127
  %v1399 = vpop.permute.xlu0 %1398
  %1400 = vrot.lane.b32.xlu0 %v1346, 127
  %v1401 = vpop.permute.xlu0 %1400
  %1402 = vrot.lane.b32.xlu0 %v1347, 127
  %v1403 = vpop.permute.xlu0 %1402
  %1404 = vrot.lane.b32.xlu0 %v1348, 127
  %v1405 = vpop.permute.xlu0 %1404
  %1406 = vrot.lane.b32.xlu0 %v1349, 127
  %v1407 = vpop.permute.xlu0 %1406
  %1408 = vrot.lane.b32.xlu0 %v1350, 127
  %v1409 = vpop.permute.xlu0 %1408
  %1410 = vrot.lane.b32.xlu0 %v1351, 127
  %v1411 = vpop.permute.xlu0 %1410
  %1412 = vrot.lane.b32.xlu0 %v1352, 127
  %v1413 = vpop.permute.xlu0 %1412
  %1414 = vrot.lane.b32.xlu0 %v1353, 127
  %v1415 = vpop.permute.xlu0 %1414
  %1416 = vrot.lane.b32.xlu0 %v1354, 127
  %v1417 = vpop.permute.xlu0 %1416
  %1418 = vrot.lane.b32.xlu0 %v1355, 127
  %v1419 = vpop.permute.xlu0 %1418
  %1420 = vrot.lane.b32.xlu0 %v1356, 127
  %v1421 = vpop.permute.xlu0 %1420
  %1422 = vrot.lane.b32.xlu0 %v1357, 127
  %v1423 = vpop.permute.xlu0 %1422
  %1424 = vrot.lane.b32.xlu0 %v1358, 127
  %v1425 = vpop.permute.xlu0 %1424
  %1426 = vrot.lane.b32.xlu0 %v1359, 127
  %v1427 = vpop.permute.xlu0 %1426
  %1428 = vrot.lane.b32.xlu0 %v1360, 127
  %v1429 = vpop.permute.xlu0 %1428
  %1430 = vrot.lane.b32.xlu0 %v1361, 127
  %v1431 = vpop.permute.xlu0 %1430
  %1432 = vrot.lane.b32.xlu0 %v1362, 127
  %v1433 = vpop.permute.xlu0 %1432
  %1434 = vrot.lane.b32.xlu0 %v1363, 127
  %v1435 = vpop.permute.xlu0 %1434
  %vm1436 = vcmask 1039360
  %v1437 = vsel %vm1436, %v1389, %v1391
  %v1438 = vsel %vm1436, %v1393, %v1395
  %v1439 = vsel %vm1436, %v1397, %v1399
  %v1440 = vsel %vm1436, %v1401, %v1403
  %v1441 = vsel %vm1436, %v1405, %v1407
  %v1442 = vsel %vm1436, %v1409, %v1411
  %v1443 = vsel %vm1436, %v1413, %v1415
  %v1444 = vsel %vm1436, %v1417, %v1419
  %v1445 = vsel %vm1436, %v1421, %v1423
  %v1446 = vsel %vm1436, %v1425, %v1427
  %v1447 = vsel %vm1436, %v1429, %v1431
  %v1448 = vsel %vm1436, %v1433, %v1435
  %vm1473 = vcmask 908288
  %v1474 = vsel %vm1473, %v1391, %v1341
  %v1475 = vsel %vm1473, %v1395, %v1343
  %v1476 = vsel %vm1473, %v1399, %v1345
  %v1477 = vsel %vm1473, %v1403, %v1347
  %v1478 = vsel %vm1473, %v1407, %v1349
  %v1479 = vsel %vm1473, %v1411, %v1351
  %v1480 = vsel %vm1473, %v1415, %v1353
  %v1481 = vsel %vm1473, %v1419, %v1355
  %v1482 = vsel %vm1473, %v1423, %v1357
  %v1483 = vsel %vm1473, %v1427, %v1359
  %v1484 = vsel %vm1473, %v1431, %v1361
  %v1485 = vsel %vm1473, %v1435, %v1363
  %v1486 = vmax.f32 %v1340, %v1437
  %v1487 = vmax.f32 %v1341, %v1474
  %v1488 = vmax.f32 %v1342, %v1438
  %v1489 = vmax.f32 %v1343, %v1475
  %v1490 = vmax.f32 %v1344, %v1439
  %v1491 = vmax.f32 %v1345, %v1476
  %v1492 = vmax.f32 %v1346, %v1440
  %v1493 = vmax.f32 %v1347, %v1477
  %v1494 = vmax.f32 %v1348, %v1441
  %v1495 = vmax.f32 %v1349, %v1478
  %v1496 = vmax.f32 %v1350, %v1442
  %v1497 = vmax.f32 %v1351, %v1479
  %v1498 = vmax.f32 %v1352, %v1443
  %v1499 = vmax.f32 %v1353, %v1480
  %v1500 = vmax.f32 %v1354, %v1444
  %v1501 = vmax.f32 %v1355, %v1481
  %v1502 = vmax.f32 %v1356, %v1445
  %v1503 = vmax.f32 %v1357, %v1482
  %v1504 = vmax.f32 %v1358, %v1446
  %v1505 = vmax.f32 %v1359, %v1483
  %v1506 = vmax.f32 %v1360, %v1447
  %v1507 = vmax.f32 %v1361, %v1484
  %v1508 = vmax.f32 %v1362, %v1448
  %v1509 = vmax.f32 %v1363, %v1485
  %v1510 = vpack.c.bf16 %v1488, %v1486
  %v1511 = vpack.c.bf16 %v1489, %v1487
  %v1512 = vpack.c.bf16 %v1492, %v1490
  %v1513 = vpack.c.bf16 %v1493, %v1491
  %v1514 = vpack.c.bf16 %v1496, %v1494
  %v1515 = vpack.c.bf16 %v1497, %v1495
  %v1516 = vpack.c.bf16 %v1500, %v1498
  %v1517 = vpack.c.bf16 %v1501, %v1499
  %v1518 = vpack.c.bf16 %v1504, %v1502
  %v1519 = vpack.c.bf16 %v1505, %v1503
  %v1520 = vpack.c.bf16 %v1508, %v1506
  %v1521 = vpack.c.bf16 %v1509, %v1507
  %v1522 = vld [vmem:[%s5] sm:$0xf]
  %v1523 = vld [vmem:[%s5 + $0x4] sm:$0xf]
  %v1524 = vld [vmem:[%s5 + $0x8] sm:$0xf]
  %v1525 = vld [vmem:[%s5 + $0xc] sm:$0xf]
  %v1526 = vld [vmem:[%s5 + $0x10] sm:$0xf]
  %v1527 = vld [vmem:[%s5 + $0x14] sm:$0xf]
  %v1528 = vld [vmem:[%s5 + $0x18] sm:$0xf]
  %v1529 = vld [vmem:[%s5 + $0x1c] sm:$0xf]
  %v1530 = vld [vmem:[%s5 + $0x20] sm:$0xf]
  %v1531 = vld [vmem:[%s5 + $0x24] sm:$0xf]
  %v1532 = vld [vmem:[%s5 + $0x28] sm:$0xf]
  %v1533 = vld [vmem:[%s5 + $0x2c] sm:$0xf]
  %v1534 = vld [vmem:[%s5 + $0x30] sm:$0xf]
  %v1535 = vld [vmem:[%s5 + $0x34] sm:$0xf]
  %v1536 = vld [vmem:[%s5 + $0x38] sm:$0xf]
  %v1537 = vld [vmem:[%s5 + $0x3c] sm:$0xf]
  %v1538 = vld [vmem:[%s5 + $0x40] sm:$0xf]
  %v1539 = vld [vmem:[%s5 + $0x44] sm:$0xf]
  %v1540 = vld [vmem:[%s5 + $0x48] sm:$0xf]
  %v1541 = vld [vmem:[%s5 + $0x4c] sm:$0xf]
  %v1542 = vld [vmem:[%s5 + $0x50] sm:$0xf]
  %v1543 = vld [vmem:[%s5 + $0x54] sm:$0xf]
  %v1544 = vld [vmem:[%s5 + $0x58] sm:$0xf]
  %v1545 = vld [vmem:[%s5 + $0x5c] sm:$0xf]
  %v1546 = vld [vmem:[%s5 + $0x60] sm:$0xf]
  %v1547 = vld [vmem:[%s5 + $0x64] sm:$0xf]
  %v1548 = vld [vmem:[%s5 + $0x68] sm:$0xf]
  %v1549 = vld [vmem:[%s5 + $0x6c] sm:$0xf]
  %v1550 = vld [vmem:[%s5 + $0x70] sm:$0xf]
  %v1551 = vld [vmem:[%s5 + $0x74] sm:$0xf]
  %v1582 = vunpack.c.l.b16 %v1522
  %v1583 = vunpack.c.l.b16 %v1523
  %v1584 = vunpack.c.l.b16 %v1524
  %v1585 = vunpack.c.l.b16 %v1525
  %v1586 = vunpack.c.l.b16 %v1526
  %v1587 = vunpack.c.l.b16 %v1527
  %v1588 = vunpack.c.l.b16 %v1528
  %v1589 = vunpack.c.l.b16 %v1529
  %v1590 = vunpack.c.l.b16 %v1530
  %v1591 = vunpack.c.l.b16 %v1531
  %v1592 = vunpack.c.l.b16 %v1532
  %v1593 = vunpack.c.l.b16 %v1533
  %v1594 = vunpack.c.l.b16 %v1534
  %v1595 = vunpack.c.l.b16 %v1535
  %v1596 = vunpack.c.l.b16 %v1536
  %v1597 = vunpack.c.l.b16 %v1537
  %v1598 = vunpack.c.l.b16 %v1538
  %v1599 = vunpack.c.l.b16 %v1539
  %v1600 = vunpack.c.l.b16 %v1540
  %v1601 = vunpack.c.l.b16 %v1541
  %v1602 = vunpack.c.l.b16 %v1542
  %v1603 = vunpack.c.l.b16 %v1543
  %v1604 = vunpack.c.l.b16 %v1544
  %v1605 = vunpack.c.l.b16 %v1545
  %v1606 = vunpack.c.l.b16 %v1546
  %v1607 = vunpack.c.l.b16 %v1547
  %v1608 = vunpack.c.l.b16 %v1548
  %v1609 = vunpack.c.l.b16 %v1549
  %v1610 = vunpack.c.l.b16 %v1550
  %v1611 = vunpack.c.l.b16 %v1551
  %v1612 = vpack.c.b16 %v1583, %v1582
  %v1613 = vpack.c.b16 %v1585, %v1584
  %v1614 = vpack.c.b16 %v1587, %v1586
  %v1615 = vpack.c.b16 %v1589, %v1588
  %v1616 = vpack.c.b16 %v1591, %v1590
  %v1617 = vpack.c.b16 %v1593, %v1592
  %v1618 = vpack.c.b16 %v1595, %v1594
  %v1619 = vpack.c.b16 %v1597, %v1596
  %v1620 = vpack.c.b16 %v1599, %v1598
  %v1621 = vpack.c.b16 %v1601, %v1600
  %v1622 = vpack.c.b16 %v1603, %v1602
  %v1623 = vpack.c.b16 %v1605, %v1604
  %v1624 = vpack.c.b16 %v1607, %v1606
  %v1625 = vpack.c.b16 %v1609, %v1608
  %v1626 = vpack.c.b16 %v1611, %v1610
  %vm1642 = vcmask 916480
  %v1644 = vsel %vm1642, %v1511, 0
  %v1647 = vsel %vm1642, %v1513, 0
  %v1650 = vsel %vm1642, %v1515, 0
  %v1653 = vsel %vm1642, %v1517, 0
  %v1656 = vsel %vm1642, %v1519, 0
  %v1659 = vsel %vm1642, %v1521, 0
  %1661 = vmatprep.subr.bf16.mxu0 0
  %1662 = vmatpush1.bf16.msra.mxu0 %v1612
  %1663 = vmatprep.subr.bf16.mxu0 0
  %1664 = vmatpush1.bf16.msra.mxu0 %v1613
  %1665 = vmatprep.subr.bf16.mxu0 0
  %1666 = vmatpush1.bf16.msra.mxu0 %v1614
  %1667 = vmatprep.subr.bf16.mxu0 0
  %1668 = vmatpush1.bf16.msra.mxu0 %v1615
  %1669 = vmatprep.subr.bf16.mxu0 0
  %1670 = vmatpush1.bf16.msra.mxu0 %v1616
  %1671 = vmatprep.subr.bf16.mxu0 0
  %1672 = vmatpush1.bf16.msra.mxu0 %v1617
  %1673 = vmatprep.subr.bf16.mxu0 0
  %1674 = vmatpush1.bf16.msra.mxu0 %v1618
  %1675 = vmatprep.subr.bf16.mxu0 0
  %1676 = vmatpush1.bf16.msra.mxu0 %v1619
  %1677 = vmatprep.subr.bf16.mxu0 0
  %1678 = vmatpush1.bf16.msra.mxu0 %v1620
  %1679 = vmatprep.subr.bf16.mxu0 0
  %1680 = vmatpush1.bf16.msra.mxu0 %v1621
  %1681 = vmatprep.subr.bf16.mxu0 0
  %1682 = vmatpush1.bf16.msra.mxu0 %v1622
  %1683 = vmatprep.subr.bf16.mxu0 0
  %1684 = vmatpush1.bf16.msra.mxu0 %v1623
  %1685 = vmatprep.subr.bf16.mxu0 0
  %1686 = vmatpush1.bf16.msra.mxu0 %v1624
  %1687 = vmatprep.subr.bf16.mxu0 0
  %1688 = vmatpush1.bf16.msra.mxu0 %v1625
  %1689 = vmatprep.subr.bf16.mxu0 0
  %1690 = vmatpush1.bf16.msra.mxu0 %v1626
  %1691 = vmatprep.subr.bf16.mxu0 0
  %1692 = vmatpush1.bf16.msra.mxu0 0
  %1693 = vmatprep.mubr.bf16.mxu0 %v1644
  %1694 = vmatmul.mubr.bf16.gmra.mrb[0].mxu0 %v1510
  %v1695 = vpop.f32.mrb[0].mxu0
  %v1696 = vadd.f32 0.0, %v1695
  %v1697 = vpop.f32.mrb[0].mxu0
  %v1698 = vpop.f32.mrb[0].mxu0
  %v1699 = vadd.f32 0.0, %v1698
  %v1700 = vpop.f32.mrb[0].mxu0
  %1701 = vmatprep.mubr.bf16.mxu0 %v1647
  %1702 = vmatmul.mubr.bf16.gmra.mrb[0].mxu0 %v1512
  %v1703 = vpop.f32.mrb[0].mxu0
  %v1704 = vadd.f32 0.0, %v1703
  %v1705 = vpop.f32.mrb[0].mxu0
  %v1706 = vpop.f32.mrb[0].mxu0
  %v1707 = vadd.f32 0.0, %v1706
  %v1708 = vpop.f32.mrb[0].mxu0
  %1709 = vmatprep.mubr.bf16.mxu0 %v1650
  %1710 = vmatmul.mubr.bf16.gmra.mrb[0].mxu0 %v1514
  %v1711 = vpop.f32.mrb[0].mxu0
  %v1712 = vadd.f32 0.0, %v1711
  %v1713 = vpop.f32.mrb[0].mxu0
  %v1714 = vpop.f32.mrb[0].mxu0
  %v1715 = vadd.f32 0.0, %v1714
  %v1716 = vpop.f32.mrb[0].mxu0
  %1717 = vmatprep.mubr.bf16.mxu0 %v1653
  %1718 = vmatmul.mubr.bf16.gmra.mrb[0].mxu0 %v1516
  %v1719 = vpop.f32.mrb[0].mxu0
  %v1720 = vadd.f32 0.0, %v1719
  %v1721 = vpop.f32.mrb[0].mxu0
  %v1722 = vpop.f32.mrb[0].mxu0
  %v1723 = vadd.f32 0.0, %v1722
  %v1724 = vpop.f32.mrb[0].mxu0
  %1725 = vmatprep.mubr.bf16.mxu0 %v1656
  %1726 = vmatmul.mubr.bf16.gmra.mrb[0].mxu0 %v1518
  %v1727 = vpop.f32.mrb[0].mxu0
  %v1728 = vadd.f32 0.0, %v1727
  %v1729 = vpop.f32.mrb[0].mxu0
  %v1730 = vpop.f32.mrb[0].mxu0
  %v1731 = vadd.f32 0.0, %v1730
  %v1732 = vpop.f32.mrb[0].mxu0
  %1733 = vmatprep.mubr.bf16.mxu0 %v1659
  %1734 = vmatmul.mubr.bf16.gmra.mrb[0].mxu0 %v1520
  %v1735 = vpop.f32.mrb[0].mxu0
  %v1736 = vadd.f32 0.0, %v1735
  %v1737 = vpop.f32.mrb[0].mxu0
  %v1738 = vpop.f32.mrb[0].mxu0
  %v1739 = vadd.f32 0.0, %v1738
  %v1740 = vpop.f32.mrb[0].mxu0
  %1741 = vdwg.mxu0
  %v1742 = vmax.f32 %v1696, 0.0
  %v1743 = vmax.f32 %v1699, 0.0
  %v1744 = vmax.f32 %v1704, 0.0
  %v1745 = vmax.f32 %v1707, 0.0
  %v1746 = vmax.f32 %v1712, 0.0
  %v1747 = vmax.f32 %v1715, 0.0
  %v1748 = vmax.f32 %v1720, 0.0
  %v1749 = vmax.f32 %v1723, 0.0
  %v1750 = vmax.f32 %v1728, 0.0
  %v1751 = vmax.f32 %v1731, 0.0
  %v1752 = vmax.f32 %v1736, 0.0
  %v1753 = vmax.f32 %v1739, 0.0
  %v1754 = vpack.c.bf16 %v1743, %v1742
  %v1755 = vpack.c.bf16 %v1745, %v1744
  %v1756 = vpack.c.bf16 %v1747, %v1746
  %v1757 = vpack.c.bf16 %v1749, %v1748
  %v1758 = vpack.c.bf16 %v1751, %v1750
  %v1759 = vpack.c.bf16 %v1753, %v1752
  %v1760 = vld [vmem:[%s3] sm:$0xff]
  %v1761 = vld [vmem:[%s3 + $0x8] sm:$0xff]
  %v1762 = vld [vmem:[%s3 + $0x10] sm:$0xff]
  %v1763 = vld [vmem:[%s3 + $0x18] sm:$0xff]
  %v1764 = vld [vmem:[%s3 + $0x20] sm:$0xff]
  %v1765 = vld [vmem:[%s3 + $0x28] sm:$0xff]
  %v1766 = vld [vmem:[%s3 + $0x30] sm:$0xff]
  %v1767 = vld [vmem:[%s3 + $0x38] sm:$0xff]
  %v1768 = vld [vmem:[%s3 + $0x40] sm:$0xff]
  %v1769 = vld [vmem:[%s3 + $0x48] sm:$0xff]
  %v1770 = vld [vmem:[%s3 + $0x50] sm:$0xff]
  %v1771 = vld [vmem:[%s3 + $0x58] sm:$0xff]
  %v1772 = vld [vmem:[%s3 + $0x60] sm:$0xff]
  %v1773 = vld [vmem:[%s3 + $0x68] sm:$0xff]
  %v1774 = vld [vmem:[%s3 + $0x70] sm:$0xff]
  %s1775 = scalar_lea.vmem %s3, 120
  %v1776 = vld [vmem:[%s1775] sm:$0xff]
  %v1777 = vld [vmem:[%s1775 + $0x8] sm:$0xff]
  %v1778 = vld [vmem:[%s1775 + $0x10] sm:$0xff]
  %v1779 = vld [vmem:[%s1775 + $0x18] sm:$0xff]
  %v1780 = vld [vmem:[%s1775 + $0x20] sm:$0xff]
  %v1781 = vld [vmem:[%s1775 + $0x28] sm:$0xff]
  %v1782 = vld [vmem:[%s1775 + $0x30] sm:$0xff]
  %v1783 = vld [vmem:[%s1775 + $0x38] sm:$0xff]
  %v1784 = vld [vmem:[%s1775 + $0x40] sm:$0xff]
  %v1785 = vld [vmem:[%s1775 + $0x48] sm:$0xff]
  %v1786 = vld [vmem:[%s1775 + $0x50] sm:$0xff]
  %v1787 = vld [vmem:[%s1775 + $0x58] sm:$0xff]
  %v1788 = vld [vmem:[%s1775 + $0x60] sm:$0xff]
  %v1789 = vld [vmem:[%s1775 + $0x68] sm:$0xff]
  %v1790 = vld [vmem:[%s1775 + $0x70] sm:$0xff]
  %vm1796 = vcmask 1043456
  %v1797 = vrot.slane %v1754, 4
  %v1798 = vrot.slane %v1755, 4
  %v1799 = vsel %vm1796, %v1797, %v1798
  %v1800 = vrot.slane %v1756, 4
  %v1801 = vsel %vm1796, %v1798, %v1800
  %v1802 = vrot.slane %v1757, 4
  %v1803 = vsel %vm1796, %v1800, %v1802
  %v1804 = vrot.slane %v1758, 4
  %v1805 = vsel %vm1796, %v1802, %v1804
  %v1821 = vunpack.c.l.b16 %v1776
  %v1822 = vunpack.c.h.b16 %v1776
  %v1823 = vunpack.c.l.b16 %v1777
  %v1824 = vunpack.c.h.b16 %v1777
  %v1825 = vunpack.c.l.b16 %v1778
  %v1826 = vunpack.c.h.b16 %v1778
  %v1827 = vunpack.c.l.b16 %v1779
  %v1828 = vunpack.c.h.b16 %v1779
  %v1829 = vunpack.c.l.b16 %v1780
  %v1830 = vunpack.c.h.b16 %v1780
  %v1831 = vunpack.c.l.b16 %v1781
  %v1832 = vunpack.c.h.b16 %v1781
  %v1833 = vunpack.c.l.b16 %v1782
  %v1834 = vunpack.c.h.b16 %v1782
  %v1835 = vunpack.c.l.b16 %v1783
  %v1836 = vunpack.c.h.b16 %v1783
  %v1837 = vunpack.c.l.b16 %v1784
  %v1838 = vunpack.c.h.b16 %v1784
  %v1839 = vunpack.c.l.b16 %v1785
  %v1840 = vunpack.c.h.b16 %v1785
  %v1841 = vunpack.c.l.b16 %v1786
  %v1842 = vunpack.c.h.b16 %v1786
  %v1843 = vunpack.c.l.b16 %v1787
  %v1844 = vunpack.c.h.b16 %v1787
  %v1845 = vunpack.c.l.b16 %v1788
  %v1846 = vunpack.c.h.b16 %v1788
  %v1847 = vunpack.c.l.b16 %v1789
  %v1848 = vunpack.c.h.b16 %v1789
  %v1849 = vunpack.c.l.b16 %v1790
  %v1850 = vunpack.c.h.b16 %v1790
  %v1851 = vpack.c.b16 %v1823, %v1821
  %v1852 = vpack.c.b16 %v1824, %v1822
  %v1853 = vpack.c.b16 %v1827, %v1825
  %v1854 = vpack.c.b16 %v1828, %v1826
  %v1855 = vpack.c.b16 %v1831, %v1829
  %v1856 = vpack.c.b16 %v1832, %v1830
  %v1857 = vpack.c.b16 %v1835, %v1833
  %v1858 = vpack.c.b16 %v1836, %v1834
  %v1859 = vpack.c.b16 %v1839, %v1837
  %v1860 = vpack.c.b16 %v1840, %v1838
  %v1861 = vpack.c.b16 %v1843, %v1841
  %v1862 = vpack.c.b16 %v1844, %v1842
  %v1863 = vpack.c.b16 %v1847, %v1845
  %v1864 = vpack.c.b16 %v1848, %v1846
  %v1865 = vpack.c.b16 %v1849, %v1849
  %v1866 = vpack.c.b16 %v1850, %v1850
  %vm1881 = vcmask 982016
  %v1883 = vsel %vm1881, %v1799, 0
  %v1886 = vsel %vm1881, %v1801, 0
  %v1889 = vsel %vm1881, %v1803, 0
  %v1892 = vsel %vm1881, %v1805, 0
  %vm1894 = vcmask 1043456
  %v1896 = vsel %vm1894, %v1865, 0
  %v1899 = vsel %vm1894, %v1866, 0
  %1901 = vmatprep.subr.bf16.mxu0 %v1852
  %1902 = vmatpush1.bf16.msra.mxu0 %v1851
  %1903 = vmatprep.subr.bf16.mxu0 %v1854
  %1904 = vmatpush1.bf16.msra.mxu0 %v1853
  %1905 = vmatprep.subr.bf16.mxu0 %v1856
  %1906 = vmatpush1.bf16.msra.mxu0 %v1855
  %1907 = vmatprep.subr.bf16.mxu0 %v1858
  %1908 = vmatpush1.bf16.msra.mxu0 %v1857
  %1909 = vmatprep.subr.bf16.mxu0 %v1860
  %1910 = vmatpush1.bf16.msra.mxu0 %v1859
  %1911 = vmatprep.subr.bf16.mxu0 %v1862
  %1912 = vmatpush1.bf16.msra.mxu0 %v1861
  %1913 = vmatprep.subr.bf16.mxu0 %v1864
  %1914 = vmatpush1.bf16.msra.mxu0 %v1863
  %1915 = vmatprep.subr.bf16.mxu0 %v1899
  %1916 = vmatpush1.bf16.msra.mxu0 %v1896
  %1917 = vmatprep.subr.bf16.mxu0 0
  %1918 = vmatpush1.bf16.msra.mxu0 0
  %1919 = vmatprep.subr.bf16.mxu0 0
  %1920 = vmatpush1.bf16.msra.mxu0 0
  %1921 = vmatprep.subr.bf16.mxu0 0
  %1922 = vmatpush1.bf16.msra.mxu0 0
  %1923 = vmatprep.subr.bf16.mxu0 0
  %1924 = vmatpush1.bf16.msra.mxu0 0
  %1925 = vmatprep.subr.bf16.mxu0 0
  %1926 = vmatpush1.bf16.msra.mxu0 0
  %1927 = vmatprep.subr.bf16.mxu0 0
  %1928 = vmatpush1.bf16.msra.mxu0 0
  %1929 = vmatprep.subr.bf16.mxu0 0
  %1930 = vmatpush1.bf16.msra.mxu0 0
  %1931 = vmatprep.subr.bf16.mxu0 0
  %1932 = vmatpush1.bf16.msra.mxu0 0
  %1933 = vmatprep.mubr.bf16.mxu0 0
  %1934 = vmatmul.mubr.bf16.gmra.mrb[0].mxu0 %v1883
  %v1935 = vpop.f32.mrb[0].mxu0
  %v1936 = vadd.f32 0.0, %v1935
  %v1937 = vpop.f32.mrb[0].mxu0
  %v1938 = vadd.f32 0.0, %v1937
  %v1939 = vpop.f32.mrb[0].mxu0
  %v1940 = vadd.f32 0.0, %v1939
  %v1941 = vpop.f32.mrb[0].mxu0
  %v1942 = vadd.f32 0.0, %v1941
  %1943 = vmatprep.mubr.bf16.mxu0 0
  %1944 = vmatmul.mubr.bf16.gmra.mrb[0].mxu0 %v1886
  %v1945 = vpop.f32.mrb[0].mxu0
  %v1946 = vadd.f32 0.0, %v1945
  %v1947 = vpop.f32.mrb[0].mxu0
  %v1948 = vadd.f32 0.0, %v1947
  %v1949 = vpop.f32.mrb[0].mxu0
  %v1950 = vadd.f32 0.0, %v1949
  %v1951 = vpop.f32.mrb[0].mxu0
  %v1952 = vadd.f32 0.0, %v1951
  %1953 = vmatprep.mubr.bf16.mxu0 0
  %1954 = vmatmul.mubr.bf16.gmra.mrb[0].mxu0 %v1889
  %v1955 = vpop.f32.mrb[0].mxu0
  %v1956 = vadd.f32 0.0, %v1955
  %v1957 = vpop.f32.mrb[0].mxu0
  %v1958 = vadd.f32 0.0, %v1957
  %v1959 = vpop.f32.mrb[0].mxu0
  %v1960 = vadd.f32 0.0, %v1959
  %v1961 = vpop.f32.mrb[0].mxu0
  %v1962 = vadd.f32 0.0, %v1961
  %1963 = vmatprep.mubr.bf16.mxu0 0
  %1964 = vmatmul.mubr.bf16.gmra.mrb[0].mxu0 %v1892
  %v1965 = vpop.f32.mrb[0].mxu0
  %v1966 = vadd.f32 0.0, %v1965
  %v1967 = vpop.f32.mrb[0].mxu0
  %v1968 = vadd.f32 0.0, %v1967
  %v1969 = vpop.f32.mrb[0].mxu0
  %v1970 = vadd.f32 0.0, %v1969
  %v1971 = vpop.f32.mrb[0].mxu0
  %v1972 = vadd.f32 0.0, %v1971
  %1973 = vdwg.mxu0
  %v1989 = vunpack.c.l.b16 %v1760
  %v1990 = vunpack.c.h.b16 %v1760
  %v1991 = vunpack.c.l.b16 %v1761
  %v1992 = vunpack.c.h.b16 %v1761
  %v1993 = vunpack.c.l.b16 %v1762
  %v1994 = vunpack.c.h.b16 %v1762
  %v1995 = vunpack.c.l.b16 %v1763
  %v1996 = vunpack.c.h.b16 %v1763
  %v1997 = vunpack.c.l.b16 %v1764
  %v1998 = vunpack.c.h.b16 %v1764
  %v1999 = vunpack.c.l.b16 %v1765
  %v2000 = vunpack.c.h.b16 %v1765
  %v2001 = vunpack.c.l.b16 %v1766
  %v2002 = vunpack.c.h.b16 %v1766
  %v2003 = vunpack.c.l.b16 %v1767
  %v2004 = vunpack.c.h.b16 %v1767
  %v2005 = vunpack.c.l.b16 %v1768
  %v2006 = vunpack.c.h.b16 %v1768
  %v2007 = vunpack.c.l.b16 %v1769
  %v2008 = vunpack.c.h.b16 %v1769
  %v2009 = vunpack.c.l.b16 %v1770
  %v2010 = vunpack.c.h.b16 %v1770
  %v2011 = vunpack.c.l.b16 %v1771
  %v2012 = vunpack.c.h.b16 %v1771
  %v2013 = vunpack.c.l.b16 %v1772
  %v2014 = vunpack.c.h.b16 %v1772
  %v2015 = vunpack.c.l.b16 %v1773
  %v2016 = vunpack.c.h.b16 %v1773
  %v2017 = vunpack.c.l.b16 %v1774
  %v2018 = vunpack.c.h.b16 %v1774
  %v2019 = vpack.c.b16 %v1991, %v1989
  %v2020 = vpack.c.b16 %v1992, %v1990
  %v2021 = vpack.c.b16 %v1995, %v1993
  %v2022 = vpack.c.b16 %v1996, %v1994
  %v2023 = vpack.c.b16 %v1999, %v1997
  %v2024 = vpack.c.b16 %v2000, %v1998
  %v2025 = vpack.c.b16 %v2003, %v2001
  %v2026 = vpack.c.b16 %v2004, %v2002
  %v2027 = vpack.c.b16 %v2007, %v2005
  %v2028 = vpack.c.b16 %v2008, %v2006
  %v2029 = vpack.c.b16 %v2011, %v2009
  %v2030 = vpack.c.b16 %v2012, %v2010
  %v2031 = vpack.c.b16 %v2015, %v2013
  %v2032 = vpack.c.b16 %v2016, %v2014
  %v2033 = vpack.c.b16 %v2017, %v2017
  %v2034 = vpack.c.b16 %v2018, %v2018
  %v2050 = vsel %vm1881, %v1754, 0
  %v2053 = vsel %vm1881, %v1755, 0
  %v2056 = vsel %vm1881, %v1756, 0
  %v2059 = vsel %vm1881, %v1757, 0
  %v2062 = vsel %vm1894, %v2033, 0
  %v2065 = vsel %vm1894, %v2034, 0
  %2067 = vmatprep.subr.bf16.mxu0 %v2020
  %2068 = vmatpush1.bf16.msra.mxu0 %v2019
  %2069 = vmatprep.subr.bf16.mxu0 %v2022
  %2070 = vmatpush1.bf16.msra.mxu0 %v2021
  %2071 = vmatprep.subr.bf16.mxu0 %v2024
  %2072 = vmatpush1.bf16.msra.mxu0 %v2023
  %2073 = vmatprep.subr.bf16.mxu0 %v2026
  %2074 = vmatpush1.bf16.msra.mxu0 %v2025
  %2075 = vmatprep.subr.bf16.mxu0 %v2028
  %2076 = vmatpush1.bf16.msra.mxu0 %v2027
  %2077 = vmatprep.subr.bf16.mxu0 %v2030
  %2078 = vmatpush1.bf16.msra.mxu0 %v2029
  %2079 = vmatprep.subr.bf16.mxu0 %v2032
  %2080 = vmatpush1.bf16.msra.mxu0 %v2031
  %2081 = vmatprep.subr.bf16.mxu0 %v2065
  %2082 = vmatpush1.bf16.msra.mxu0 %v2062
  %2083 = vmatprep.subr.bf16.mxu0 0
  %2084 = vmatpush1.bf16.msra.mxu0 0
  %2085 = vmatprep.subr.bf16.mxu0 0
  %2086 = vmatpush1.bf16.msra.mxu0 0
  %2087 = vmatprep.subr.bf16.mxu0 0
  %2088 = vmatpush1.bf16.msra.mxu0 0
  %2089 = vmatprep.subr.bf16.mxu0 0
  %2090 = vmatpush1.bf16.msra.mxu0 0
  %2091 = vmatprep.subr.bf16.mxu0 0
  %2092 = vmatpush1.bf16.msra.mxu0 0
  %2093 = vmatprep.subr.bf16.mxu0 0
  %2094 = vmatpush1.bf16.msra.mxu0 0
  %2095 = vmatprep.subr.bf16.mxu0 0
  %2096 = vmatpush1.bf16.msra.mxu0 0
  %2097 = vmatprep.subr.bf16.mxu0 0
  %2098 = vmatpush1.bf16.msra.mxu0 0
  %2099 = vmatprep.mubr.bf16.mxu0 0
  %2100 = vmatmul.mubr.bf16.gmra.mrb[0].mxu0 %v2050
  %v2101 = vpop.f32.mrb[0].mxu0
  %v2102 = vadd.f32 %v1936, %v2101
  %v2103 = vpop.f32.mrb[0].mxu0
  %v2104 = vadd.f32 %v1938, %v2103
  %v2105 = vpop.f32.mrb[0].mxu0
  %v2106 = vadd.f32 %v1940, %v2105
  %v2107 = vpop.f32.mrb[0].mxu0
  %v2108 = vadd.f32 %v1942, %v2107
  %2109 = vmatprep.mubr.bf16.mxu0 0
  %2110 = vmatmul.mubr.bf16.gmra.mrb[0].mxu0 %v2053
  %v2111 = vpop.f32.mrb[0].mxu0
  %v2112 = vadd.f32 %v1946, %v2111
  %v2113 = vpop.f32.mrb[0].mxu0
  %v2114 = vadd.f32 %v1948, %v2113
  %v2115 = vpop.f32.mrb[0].mxu0
  %v2116 = vadd.f32 %v1950, %v2115
  %v2117 = vpop.f32.mrb[0].mxu0
  %v2118 = vadd.f32 %v1952, %v2117
  %2119 = vmatprep.mubr.bf16.mxu0 0
  %2120 = vmatmul.mubr.bf16.gmra.mrb[0].mxu0 %v2056
  %v2121 = vpop.f32.mrb[0].mxu0
  %v2122 = vadd.f32 %v1956, %v2121
  %v2123 = vpop.f32.mrb[0].mxu0
  %v2124 = vadd.f32 %v1958, %v2123
  %v2125 = vpop.f32.mrb[0].mxu0
  %v2126 = vadd.f32 %v1960, %v2125
  %v2127 = vpop.f32.mrb[0].mxu0
  %v2128 = vadd.f32 %v1962, %v2127
  %2129 = vmatprep.mubr.bf16.mxu0 0
  %2130 = vmatmul.mubr.bf16.gmra.mrb[0].mxu0 %v2059
  %v2131 = vpop.f32.mrb[0].mxu0
  %v2132 = vadd.f32 %v1966, %v2131
  %v2133 = vpop.f32.mrb[0].mxu0
  %v2134 = vadd.f32 %v1968, %v2133
  %v2135 = vpop.f32.mrb[0].mxu0
  %v2136 = vadd.f32 %v1970, %v2135
  %v2137 = vpop.f32.mrb[0].mxu0
  %v2138 = vadd.f32 %v1972, %v2137
  %2139 = vdwg.mxu0
  %s2140 = scalar_lea.vmem %s3, 240
  %v2141 = vld [vmem:[%s2140] sm:$0xff]
  %v2142 = vld [vmem:[%s2140 + $0x8] sm:$0xff]
  %v2143 = vld [vmem:[%s2140 + $0x10] sm:$0xff]
  %v2144 = vld [vmem:[%s2140 + $0x18] sm:$0xff]
  %v2145 = vld [vmem:[%s2140 + $0x20] sm:$0xff]
  %v2146 = vld [vmem:[%s2140 + $0x28] sm:$0xff]
  %v2147 = vld [vmem:[%s2140 + $0x30] sm:$0xff]
  %v2148 = vld [vmem:[%s2140 + $0x38] sm:$0xff]
  %v2149 = vld [vmem:[%s2140 + $0x40] sm:$0xff]
  %v2150 = vld [vmem:[%s2140 + $0x48] sm:$0xff]
  %v2151 = vld [vmem:[%s2140 + $0x50] sm:$0xff]
  %v2152 = vld [vmem:[%s2140 + $0x58] sm:$0xff]
  %v2153 = vld [vmem:[%s2140 + $0x60] sm:$0xff]
  %v2154 = vld [vmem:[%s2140 + $0x68] sm:$0xff]
  %v2155 = vld [vmem:[%s2140 + $0x70] sm:$0xff]
  %v2171 = vunpack.c.l.b16 %v2141
  %v2172 = vunpack.c.h.b16 %v2141
  %v2173 = vunpack.c.l.b16 %v2142
  %v2174 = vunpack.c.h.b16 %v2142
  %v2175 = vunpack.c.l.b16 %v2143
  %v2176 = vunpack.c.h.b16 %v2143
  %v2177 = vunpack.c.l.b16 %v2144
  %v2178 = vunpack.c.h.b16 %v2144
  %v2179 = vunpack.c.l.b16 %v2145
  %v2180 = vunpack.c.h.b16 %v2145
  %v2181 = vunpack.c.l.b16 %v2146
  %v2182 = vunpack.c.h.b16 %v2146
  %v2183 = vunpack.c.l.b16 %v2147
  %v2184 = vunpack.c.h.b16 %v2147
  %v2185 = vunpack.c.l.b16 %v2148
  %v2186 = vunpack.c.h.b16 %v2148
  %v2187 = vunpack.c.l.b16 %v2149
  %v2188 = vunpack.c.h.b16 %v2149
  %v2189 = vunpack.c.l.b16 %v2150
  %v2190 = vunpack.c.h.b16 %v2150
  %v2191 = vunpack.c.l.b16 %v2151
  %v2192 = vunpack.c.h.b16 %v2151
  %v2193 = vunpack.c.l.b16 %v2152
  %v2194 = vunpack.c.h.b16 %v2152
  %v2195 = vunpack.c.l.b16 %v2153
  %v2196 = vunpack.c.h.b16 %v2153
  %v2197 = vunpack.c.l.b16 %v2154
  %v2198 = vunpack.c.h.b16 %v2154
  %v2199 = vunpack.c.l.b16 %v2155
  %v2200 = vunpack.c.h.b16 %v2155
  %v2201 = vpack.c.b16 %v2173, %v2171
  %v2202 = vpack.c.b16 %v2174, %v2172
  %v2203 = vpack.c.b16 %v2177, %v2175
  %v2204 = vpack.c.b16 %v2178, %v2176
  %v2205 = vpack.c.b16 %v2181, %v2179
  %v2206 = vpack.c.b16 %v2182, %v2180
  %v2207 = vpack.c.b16 %v2185, %v2183
  %v2208 = vpack.c.b16 %v2186, %v2184
  %v2209 = vpack.c.b16 %v2189, %v2187
  %v2210 = vpack.c.b16 %v2190, %v2188
  %v2211 = vpack.c.b16 %v2193, %v2191
  %v2212 = vpack.c.b16 %v2194, %v2192
  %v2213 = vpack.c.b16 %v2197, %v2195
  %v2214 = vpack.c.b16 %v2198, %v2196
  %v2215 = vpack.c.b16 %v2199, %v2199
  %v2216 = vpack.c.b16 %v2200, %v2200
  %v2232 = vsel %vm1881, %v1758, 0
  %v2235 = vsel %vm1894, %v2215, 0
  %v2238 = vsel %vm1894, %v2216, 0
  %2240 = vmatprep.subr.bf16.mxu0 %v2202
  %2241 = vmatpush1.bf16.msra.mxu0 %v2201
  %2242 = vmatprep.subr.bf16.mxu0 %v2204
  %2243 = vmatpush1.bf16.msra.mxu0 %v2203
  %2244 = vmatprep.subr.bf16.mxu0 %v2206
  %2245 = vmatpush1.bf16.msra.mxu0 %v2205
  %2246 = vmatprep.subr.bf16.mxu0 %v2208
  %2247 = vmatpush1.bf16.msra.mxu0 %v2207
  %2248 = vmatprep.subr.bf16.mxu0 %v2210
  %2249 = vmatpush1.bf16.msra.mxu0 %v2209
  %2250 = vmatprep.subr.bf16.mxu0 %v2212
  %2251 = vmatpush1.bf16.msra.mxu0 %v2211
  %2252 = vmatprep.subr.bf16.mxu0 %v2214
  %2253 = vmatpush1.bf16.msra.mxu0 %v2213
  %2254 = vmatprep.subr.bf16.mxu0 %v2238
  %2255 = vmatpush1.bf16.msra.mxu0 %v2235
  %2256 = vmatprep.subr.bf16.mxu0 0
  %2257 = vmatpush1.bf16.msra.mxu0 0
  %2258 = vmatprep.subr.bf16.mxu0 0
  %2259 = vmatpush1.bf16.msra.mxu0 0
  %2260 = vmatprep.subr.bf16.mxu0 0
  %2261 = vmatpush1.bf16.msra.mxu0 0
  %2262 = vmatprep.subr.bf16.mxu0 0
  %2263 = vmatpush1.bf16.msra.mxu0 0
  %2264 = vmatprep.subr.bf16.mxu0 0
  %2265 = vmatpush1.bf16.msra.mxu0 0
  %2266 = vmatprep.subr.bf16.mxu0 0
  %2267 = vmatpush1.bf16.msra.mxu0 0
  %2268 = vmatprep.subr.bf16.mxu0 0
  %2269 = vmatpush1.bf16.msra.mxu0 0
  %2270 = vmatprep.subr.bf16.mxu0 0
  %2271 = vmatpush1.bf16.msra.mxu0 0
  %2272 = vmatprep.mubr.bf16.mxu0 0
  %2273 = vmatmul.mubr.bf16.gmra.mrb[0].mxu0 %v2053
  %v2274 = vpop.f32.mrb[0].mxu0
  %v2275 = vadd.f32 0.0, %v2274
  %v2276 = vpop.f32.mrb[0].mxu0
  %v2277 = vadd.f32 0.0, %v2276
  %v2278 = vpop.f32.mrb[0].mxu0
  %v2279 = vadd.f32 0.0, %v2278
  %v2280 = vpop.f32.mrb[0].mxu0
  %v2281 = vadd.f32 0.0, %v2280
  %2282 = vmatprep.mubr.bf16.mxu0 0
  %2283 = vmatmul.mubr.bf16.gmra.mrb[0].mxu0 %v2056
  %v2284 = vpop.f32.mrb[0].mxu0
  %v2285 = vadd.f32 0.0, %v2284
  %v2286 = vpop.f32.mrb[0].mxu0
  %v2287 = vadd.f32 0.0, %v2286
  %v2288 = vpop.f32.mrb[0].mxu0
  %v2289 = vadd.f32 0.0, %v2288
  %v2290 = vpop.f32.mrb[0].mxu0
  %v2291 = vadd.f32 0.0, %v2290
  %2292 = vmatprep.mubr.bf16.mxu0 0
  %2293 = vmatmul.mubr.bf16.gmra.mrb[0].mxu0 %v2059
  %v2294 = vpop.f32.mrb[0].mxu0
  %v2295 = vadd.f32 0.0, %v2294
  %v2296 = vpop.f32.mrb[0].mxu0
  %v2297 = vadd.f32 0.0, %v2296
  %v2298 = vpop.f32.mrb[0].mxu0
  %v2299 = vadd.f32 0.0, %v2298
  %v2300 = vpop.f32.mrb[0].mxu0
  %v2301 = vadd.f32 0.0, %v2300
  %2302 = vmatprep.mubr.bf16.mxu0 0
  %2303 = vmatmul.mubr.bf16.gmra.mrb[0].mxu0 %v2232
  %v2304 = vpop.f32.mrb[0].mxu0
  %v2305 = vadd.f32 0.0, %v2304
  %v2306 = vpop.f32.mrb[0].mxu0
  %v2307 = vadd.f32 0.0, %v2306
  %v2308 = vpop.f32.mrb[0].mxu0
  %v2309 = vadd.f32 0.0, %v2308
  %v2310 = vpop.f32.mrb[0].mxu0
  %v2311 = vadd.f32 0.0, %v2310
  %2312 = vdwg.mxu0
  %v2313 = vadd.f32 %v2102, %v2275
  %v2314 = vadd.f32 %v2104, %v2277
  %v2315 = vadd.f32 %v2106, %v2279
  %v2316 = vadd.f32 %v2108, %v2281
  %v2317 = vadd.f32 %v2112, %v2285
  %v2318 = vadd.f32 %v2114, %v2287
  %v2319 = vadd.f32 %v2116, %v2289
  %v2320 = vadd.f32 %v2118, %v2291
  %v2321 = vadd.f32 %v2122, %v2295
  %v2322 = vadd.f32 %v2124, %v2297
  %v2323 = vadd.f32 %v2126, %v2299
  %v2324 = vadd.f32 %v2128, %v2301
  %v2325 = vadd.f32 %v2132, %v2305
  %v2326 = vadd.f32 %v2134, %v2307
  %v2327 = vadd.f32 %v2136, %v2309
  %v2328 = vadd.f32 %v2138, %v2311
  %s2329 = scalar_lea.vmem %s3, 360
  %v2330 = vld [vmem:[%s2329] sm:$0xff]
  %v2331 = vld [vmem:[%s2329 + $0x8] sm:$0xff]
  %v2332 = vld [vmem:[%s2329 + $0x10] sm:$0xff]
  %v2333 = vld [vmem:[%s2329 + $0x18] sm:$0xff]
  %v2334 = vld [vmem:[%s2329 + $0x20] sm:$0xff]
  %v2335 = vld [vmem:[%s2329 + $0x28] sm:$0xff]
  %v2336 = vld [vmem:[%s2329 + $0x30] sm:$0xff]
  %v2337 = vld [vmem:[%s2329 + $0x38] sm:$0xff]
  %v2338 = vld [vmem:[%s2329 + $0x40] sm:$0xff]
  %v2339 = vld [vmem:[%s2329 + $0x48] sm:$0xff]
  %v2340 = vld [vmem:[%s2329 + $0x50] sm:$0xff]
  %v2341 = vld [vmem:[%s2329 + $0x58] sm:$0xff]
  %v2342 = vld [vmem:[%s2329 + $0x60] sm:$0xff]
  %v2343 = vld [vmem:[%s2329 + $0x68] sm:$0xff]
  %v2344 = vld [vmem:[%s2329 + $0x70] sm:$0xff]
  %v2346 = vrot.slane %v1759, 4
  %v2347 = vsel %vm1796, %v1804, %v2346
  %v2363 = vunpack.c.l.b16 %v2330
  %v2364 = vunpack.c.h.b16 %v2330
  %v2365 = vunpack.c.l.b16 %v2331
  %v2366 = vunpack.c.h.b16 %v2331
  %v2367 = vunpack.c.l.b16 %v2332
  %v2368 = vunpack.c.h.b16 %v2332
  %v2369 = vunpack.c.l.b16 %v2333
  %v2370 = vunpack.c.h.b16 %v2333
  %v2371 = vunpack.c.l.b16 %v2334
  %v2372 = vunpack.c.h.b16 %v2334
  %v2373 = vunpack.c.l.b16 %v2335
  %v2374 = vunpack.c.h.b16 %v2335
  %v2375 = vunpack.c.l.b16 %v2336
  %v2376 = vunpack.c.h.b16 %v2336
  %v2377 = vunpack.c.l.b16 %v2337
  %v2378 = vunpack.c.h.b16 %v2337
  %v2379 = vunpack.c.l.b16 %v2338
  %v2380 = vunpack.c.h.b16 %v2338
  %v2381 = vunpack.c.l.b16 %v2339
  %v2382 = vunpack.c.h.b16 %v2339
  %v2383 = vunpack.c.l.b16 %v2340
  %v2384 = vunpack.c.h.b16 %v2340
  %v2385 = vunpack.c.l.b16 %v2341
  %v2386 = vunpack.c.h.b16 %v2341
  %v2387 = vunpack.c.l.b16 %v2342
  %v2388 = vunpack.c.h.b16 %v2342
  %v2389 = vunpack.c.l.b16 %v2343
  %v2390 = vunpack.c.h.b16 %v2343
  %v2391 = vunpack.c.l.b16 %v2344
  %v2392 = vunpack.c.h.b16 %v2344
  %v2393 = vpack.c.b16 %v2365, %v2363
  %v2394 = vpack.c.b16 %v2366, %v2364
  %v2395 = vpack.c.b16 %v2369, %v2367
  %v2396 = vpack.c.b16 %v2370, %v2368
  %v2397 = vpack.c.b16 %v2373, %v2371
  %v2398 = vpack.c.b16 %v2374, %v2372
  %v2399 = vpack.c.b16 %v2377, %v2375
  %v2400 = vpack.c.b16 %v2378, %v2376
  %v2401 = vpack.c.b16 %v2381, %v2379
  %v2402 = vpack.c.b16 %v2382, %v2380
  %v2403 = vpack.c.b16 %v2385, %v2383
  %v2404 = vpack.c.b16 %v2386, %v2384
  %v2405 = vpack.c.b16 %v2389, %v2387
  %v2406 = vpack.c.b16 %v2390, %v2388
  %v2407 = vpack.c.b16 %v2391, %v2391
  %v2408 = vpack.c.b16 %v2392, %v2392
  %v2424 = vsel %vm1881, %v2347, 0
  %v2427 = vsel %vm1894, %v2407, 0
  %v2430 = vsel %vm1894, %v2408, 0
  %2432 = vmatprep.subr.bf16.mxu0 %v2394
  %2433 = vmatpush1.bf16.msra.mxu0 %v2393
  %2434 = vmatprep.subr.bf16.mxu0 %v2396
  %2435 = vmatpush1.bf16.msra.mxu0 %v2395
  %2436 = vmatprep.subr.bf16.mxu0 %v2398
  %2437 = vmatpush1.bf16.msra.mxu0 %v2397
  %2438 = vmatprep.subr.bf16.mxu0 %v2400
  %2439 = vmatpush1.bf16.msra.mxu0 %v2399
  %2440 = vmatprep.subr.bf16.mxu0 %v2402
  %2441 = vmatpush1.bf16.msra.mxu0 %v2401
  %2442 = vmatprep.subr.bf16.mxu0 %v2404
  %2443 = vmatpush1.bf16.msra.mxu0 %v2403
  %2444 = vmatprep.subr.bf16.mxu0 %v2406
  %2445 = vmatpush1.bf16.msra.mxu0 %v2405
  %2446 = vmatprep.subr.bf16.mxu0 %v2430
  %2447 = vmatpush1.bf16.msra.mxu0 %v2427
  %2448 = vmatprep.subr.bf16.mxu0 0
  %2449 = vmatpush1.bf16.msra.mxu0 0
  %2450 = vmatprep.subr.bf16.mxu0 0
  %2451 = vmatpush1.bf16.msra.mxu0 0
  %2452 = vmatprep.subr.bf16.mxu0 0
  %2453 = vmatpush1.bf16.msra.mxu0 0
  %2454 = vmatprep.subr.bf16.mxu0 0
  %2455 = vmatpush1.bf16.msra.mxu0 0
  %2456 = vmatprep.subr.bf16.mxu0 0
  %2457 = vmatpush1.bf16.msra.mxu0 0
  %2458 = vmatprep.subr.bf16.mxu0 0
  %2459 = vmatpush1.bf16.msra.mxu0 0
  %2460 = vmatprep.subr.bf16.mxu0 0
  %2461 = vmatpush1.bf16.msra.mxu0 0
  %2462 = vmatprep.subr.bf16.mxu0 0
  %2463 = vmatpush1.bf16.msra.mxu0 0
  %2464 = vmatprep.mubr.bf16.mxu0 0
  %2465 = vmatmul.mubr.bf16.gmra.mrb[0].mxu0 %v1886
  %v2466 = vpop.f32.mrb[0].mxu0
  %v2467 = vadd.f32 0.0, %v2466
  %v2468 = vpop.f32.mrb[0].mxu0
  %v2469 = vadd.f32 0.0, %v2468
  %v2470 = vpop.f32.mrb[0].mxu0
  %v2471 = vadd.f32 0.0, %v2470
  %v2472 = vpop.f32.mrb[0].mxu0
  %v2473 = vadd.f32 0.0, %v2472
  %2474 = vmatprep.mubr.bf16.mxu0 0
  %2475 = vmatmul.mubr.bf16.gmra.mrb[0].mxu0 %v1889
  %v2476 = vpop.f32.mrb[0].mxu0
  %v2477 = vadd.f32 0.0, %v2476
  %v2478 = vpop.f32.mrb[0].mxu0
  %v2479 = vadd.f32 0.0, %v2478
  %v2480 = vpop.f32.mrb[0].mxu0
  %v2481 = vadd.f32 0.0, %v2480
  %v2482 = vpop.f32.mrb[0].mxu0
  %v2483 = vadd.f32 0.0, %v2482
  %2484 = vmatprep.mubr.bf16.mxu0 0
  %2485 = vmatmul.mubr.bf16.gmra.mrb[0].mxu0 %v1892
  %v2486 = vpop.f32.mrb[0].mxu0
  %v2487 = vadd.f32 0.0, %v2486
  %v2488 = vpop.f32.mrb[0].mxu0
  %v2489 = vadd.f32 0.0, %v2488
  %v2490 = vpop.f32.mrb[0].mxu0
  %v2491 = vadd.f32 0.0, %v2490
  %v2492 = vpop.f32.mrb[0].mxu0
  %v2493 = vadd.f32 0.0, %v2492
  %2494 = vmatprep.mubr.bf16.mxu0 0
  %2495 = vmatmul.mubr.bf16.gmra.mrb[0].mxu0 %v2424
  %v2496 = vpop.f32.mrb[0].mxu0
  %v2497 = vadd.f32 0.0, %v2496
  %v2498 = vpop.f32.mrb[0].mxu0
  %v2499 = vadd.f32 0.0, %v2498
  %v2500 = vpop.f32.mrb[0].mxu0
  %v2501 = vadd.f32 0.0, %v2500
  %v2502 = vpop.f32.mrb[0].mxu0
  %v2503 = vadd.f32 0.0, %v2502
  %2504 = vdwg.mxu0
  %v2505 = vadd.f32 %v2313, %v2467
  %v2506 = vadd.f32 %v2314, %v2469
  %v2507 = vadd.f32 %v2315, %v2471
  %v2508 = vadd.f32 %v2316, %v2473
  %v2509 = vadd.f32 %v2317, %v2477
  %v2510 = vadd.f32 %v2318, %v2479
  %v2511 = vadd.f32 %v2319, %v2481
  %v2512 = vadd.f32 %v2320, %v2483
  %v2513 = vadd.f32 %v2321, %v2487
  %v2514 = vadd.f32 %v2322, %v2489
  %v2515 = vadd.f32 %v2323, %v2491
  %v2516 = vadd.f32 %v2324, %v2493
  %v2517 = vadd.f32 %v2325, %v2497
  %v2518 = vadd.f32 %v2326, %v2499
  %v2519 = vadd.f32 %v2327, %v2501
  %v2520 = vadd.f32 %v2328, %v2503
  %s2521 = scalar_lea.vmem %s3, 480
  %v2522 = vld [vmem:[%s2521] sm:$0xff]
  %v2523 = vld [vmem:[%s2521 + $0x8] sm:$0xff]
  %v2524 = vld [vmem:[%s2521 + $0x10] sm:$0xff]
  %v2525 = vld [vmem:[%s2521 + $0x18] sm:$0xff]
  %v2526 = vld [vmem:[%s2521 + $0x20] sm:$0xff]
  %v2527 = vld [vmem:[%s2521 + $0x28] sm:$0xff]
  %v2528 = vld [vmem:[%s2521 + $0x30] sm:$0xff]
  %v2529 = vld [vmem:[%s2521 + $0x38] sm:$0xff]
  %v2530 = vld [vmem:[%s2521 + $0x40] sm:$0xff]
  %v2531 = vld [vmem:[%s2521 + $0x48] sm:$0xff]
  %v2532 = vld [vmem:[%s2521 + $0x50] sm:$0xff]
  %v2533 = vld [vmem:[%s2521 + $0x58] sm:$0xff]
  %v2534 = vld [vmem:[%s2521 + $0x60] sm:$0xff]
  %v2535 = vld [vmem:[%s2521 + $0x68] sm:$0xff]
  %v2536 = vld [vmem:[%s2521 + $0x70] sm:$0xff]
  %v2552 = vunpack.c.l.b16 %v2522
  %v2553 = vunpack.c.h.b16 %v2522
  %v2554 = vunpack.c.l.b16 %v2523
  %v2555 = vunpack.c.h.b16 %v2523
  %v2556 = vunpack.c.l.b16 %v2524
  %v2557 = vunpack.c.h.b16 %v2524
  %v2558 = vunpack.c.l.b16 %v2525
  %v2559 = vunpack.c.h.b16 %v2525
  %v2560 = vunpack.c.l.b16 %v2526
  %v2561 = vunpack.c.h.b16 %v2526
  %v2562 = vunpack.c.l.b16 %v2527
  %v2563 = vunpack.c.h.b16 %v2527
  %v2564 = vunpack.c.l.b16 %v2528
  %v2565 = vunpack.c.h.b16 %v2528
  %v2566 = vunpack.c.l.b16 %v2529
  %v2567 = vunpack.c.h.b16 %v2529
  %v2568 = vunpack.c.l.b16 %v2530
  %v2569 = vunpack.c.h.b16 %v2530
  %v2570 = vunpack.c.l.b16 %v2531
  %v2571 = vunpack.c.h.b16 %v2531
  %v2572 = vunpack.c.l.b16 %v2532
  %v2573 = vunpack.c.h.b16 %v2532
  %v2574 = vunpack.c.l.b16 %v2533
  %v2575 = vunpack.c.h.b16 %v2533
  %v2576 = vunpack.c.l.b16 %v2534
  %v2577 = vunpack.c.h.b16 %v2534
  %v2578 = vunpack.c.l.b16 %v2535
  %v2579 = vunpack.c.h.b16 %v2535
  %v2580 = vunpack.c.l.b16 %v2536
  %v2581 = vunpack.c.h.b16 %v2536
  %v2582 = vpack.c.b16 %v2554, %v2552
  %v2583 = vpack.c.b16 %v2555, %v2553
  %v2584 = vpack.c.b16 %v2558, %v2556
  %v2585 = vpack.c.b16 %v2559, %v2557
  %v2586 = vpack.c.b16 %v2562, %v2560
  %v2587 = vpack.c.b16 %v2563, %v2561
  %v2588 = vpack.c.b16 %v2566, %v2564
  %v2589 = vpack.c.b16 %v2567, %v2565
  %v2590 = vpack.c.b16 %v2570, %v2568
  %v2591 = vpack.c.b16 %v2571, %v2569
  %v2592 = vpack.c.b16 %v2574, %v2572
  %v2593 = vpack.c.b16 %v2575, %v2573
  %v2594 = vpack.c.b16 %v2578, %v2576
  %v2595 = vpack.c.b16 %v2579, %v2577
  %v2596 = vpack.c.b16 %v2580, %v2580
  %v2597 = vpack.c.b16 %v2581, %v2581
  %v2613 = vsel %vm1881, %v1759, 0
  %v2616 = vsel %vm1894, %v2596, 0
  %v2619 = vsel %vm1894, %v2597, 0
  %2621 = vmatprep.subr.bf16.mxu0 %v2583
  %2622 = vmatpush1.bf16.msra.mxu0 %v2582
  %2623 = vmatprep.subr.bf16.mxu0 %v2585
  %2624 = vmatpush1.bf16.msra.mxu0 %v2584
  %2625 = vmatprep.subr.bf16.mxu0 %v2587
  %2626 = vmatpush1.bf16.msra.mxu0 %v2586
  %2627 = vmatprep.subr.bf16.mxu0 %v2589
  %2628 = vmatpush1.bf16.msra.mxu0 %v2588
  %2629 = vmatprep.subr.bf16.mxu0 %v2591
  %2630 = vmatpush1.bf16.msra.mxu0 %v2590
  %2631 = vmatprep.subr.bf16.mxu0 %v2593
  %2632 = vmatpush1.bf16.msra.mxu0 %v2592
  %2633 = vmatprep.subr.bf16.mxu0 %v2595
  %2634 = vmatpush1.bf16.msra.mxu0 %v2594
  %2635 = vmatprep.subr.bf16.mxu0 %v2619
  %2636 = vmatpush1.bf16.msra.mxu0 %v2616
  %2637 = vmatprep.subr.bf16.mxu0 0
  %2638 = vmatpush1.bf16.msra.mxu0 0
  %2639 = vmatprep.subr.bf16.mxu0 0
  %2640 = vmatpush1.bf16.msra.mxu0 0
  %2641 = vmatprep.subr.bf16.mxu0 0
  %2642 = vmatpush1.bf16.msra.mxu0 0
  %2643 = vmatprep.subr.bf16.mxu0 0
  %2644 = vmatpush1.bf16.msra.mxu0 0
  %2645 = vmatprep.subr.bf16.mxu0 0
  %2646 = vmatpush1.bf16.msra.mxu0 0
  %2647 = vmatprep.subr.bf16.mxu0 0
  %2648 = vmatpush1.bf16.msra.mxu0 0
  %2649 = vmatprep.subr.bf16.mxu0 0
  %2650 = vmatpush1.bf16.msra.mxu0 0
  %2651 = vmatprep.subr.bf16.mxu0 0
  %2652 = vmatpush1.bf16.msra.mxu0 0
  %2653 = vmatprep.mubr.bf16.mxu0 0
  %2654 = vmatmul.mubr.bf16.gmra.mrb[0].mxu0 %v2056
  %v2655 = vpop.f32.mrb[0].mxu0
  %v2656 = vadd.f32 0.0, %v2655
  %v2657 = vpop.f32.mrb[0].mxu0
  %v2658 = vadd.f32 0.0, %v2657
  %v2659 = vpop.f32.mrb[0].mxu0
  %v2660 = vadd.f32 0.0, %v2659
  %v2661 = vpop.f32.mrb[0].mxu0
  %v2662 = vadd.f32 0.0, %v2661
  %2663 = vmatprep.mubr.bf16.mxu0 0
  %2664 = vmatmul.mubr.bf16.gmra.mrb[0].mxu0 %v2059
  %v2665 = vpop.f32.mrb[0].mxu0
  %v2666 = vadd.f32 0.0, %v2665
  %v2667 = vpop.f32.mrb[0].mxu0
  %v2668 = vadd.f32 0.0, %v2667
  %v2669 = vpop.f32.mrb[0].mxu0
  %v2670 = vadd.f32 0.0, %v2669
  %v2671 = vpop.f32.mrb[0].mxu0
  %v2672 = vadd.f32 0.0, %v2671
  %2673 = vmatprep.mubr.bf16.mxu0 0
  %2674 = vmatmul.mubr.bf16.gmra.mrb[0].mxu0 %v2232
  %v2675 = vpop.f32.mrb[0].mxu0
  %v2676 = vadd.f32 0.0, %v2675
  %v2677 = vpop.f32.mrb[0].mxu0
  %v2678 = vadd.f32 0.0, %v2677
  %v2679 = vpop.f32.mrb[0].mxu0
  %v2680 = vadd.f32 0.0, %v2679
  %v2681 = vpop.f32.mrb[0].mxu0
  %v2682 = vadd.f32 0.0, %v2681
  %2683 = vmatprep.mubr.bf16.mxu0 0
  %2684 = vmatmul.mubr.bf16.gmra.mrb[0].mxu0 %v2613
  %v2685 = vpop.f32.mrb[0].mxu0
  %v2686 = vadd.f32 0.0, %v2685
  %v2687 = vpop.f32.mrb[0].mxu0
  %v2688 = vadd.f32 0.0, %v2687
  %v2689 = vpop.f32.mrb[0].mxu0
  %v2690 = vadd.f32 0.0, %v2689
  %v2691 = vpop.f32.mrb[0].mxu0
  %v2692 = vadd.f32 0.0, %v2691
  %2693 = vdwg.mxu0
  %v2694 = vadd.f32 %v2505, %v2656
  %v2695 = vadd.f32 %v2506, %v2658
  %v2696 = vadd.f32 %v2507, %v2660
  %v2697 = vadd.f32 %v2508, %v2662
  %v2698 = vadd.f32 %v2509, %v2666
  %v2699 = vadd.f32 %v2510, %v2668
  %v2700 = vadd.f32 %v2511, %v2670
  %v2701 = vadd.f32 %v2512, %v2672
  %v2702 = vadd.f32 %v2513, %v2676
  %v2703 = vadd.f32 %v2514, %v2678
  %v2704 = vadd.f32 %v2515, %v2680
  %v2705 = vadd.f32 %v2516, %v2682
  %v2706 = vadd.f32 %v2517, %v2686
  %v2707 = vadd.f32 %v2518, %v2688
  %v2708 = vadd.f32 %v2519, %v2690
  %v2709 = vadd.f32 %v2520, %v2692
  %v2710 = vld [vmem:[%s4] sm:$0x3]
  %v2712 = vlaneseq
  %v2713 = vshrl.u32 %v2712, 7
  %v2714 = vsub.s32 0, %v2713
  %v2715 = vrot.slane %v2710, %v2714
  %v2716 = vlaneseq
  %v2717 = vshrl.u32 %v2716, 7
  %v2718 = vsub.s32 1, %v2717
  %v2719 = vrot.slane %v2710, %v2718
  %v2722 = vadd.f32 %v2694, %v2715
  %v2723 = vadd.f32 %v2695, %v2719
  %v2724 = vadd.f32 %v2696, %v2715
  %v2725 = vadd.f32 %v2697, %v2719
  %v2726 = vadd.f32 %v2698, %v2715
  %v2727 = vadd.f32 %v2699, %v2719
  %v2728 = vadd.f32 %v2700, %v2715
  %v2729 = vadd.f32 %v2701, %v2719
  %v2730 = vadd.f32 %v2702, %v2715
  %v2731 = vadd.f32 %v2703, %v2719
  %v2732 = vadd.f32 %v2704, %v2715
  %v2733 = vadd.f32 %v2705, %v2719
  %v2734 = vadd.f32 %v2706, %v2715
  %v2735 = vadd.f32 %v2707, %v2719
  %v2736 = vadd.f32 %v2708, %v2715
  %v2737 = vadd.f32 %v2709, %v2719
  %v2738 = vmax.f32 %v2722, %v2724
  %v2739 = vmax.f32 %v2723, %v2725
  %v2740 = vmax.f32 %v2726, %v2728
  %v2741 = vmax.f32 %v2727, %v2729
  %v2742 = vmax.f32 %v2730, %v2732
  %v2743 = vmax.f32 %v2731, %v2733
  %v2744 = vmax.f32 %v2734, %v2736
  %v2745 = vmax.f32 %v2735, %v2737
  %2754 = vrot.lane.b32.xlu0 %v2738, 127
  %v2755 = vpop.permute.xlu0 %2754
  %2756 = vrot.lane.b32.xlu0 %v2739, 127
  %v2757 = vpop.permute.xlu0 %2756
  %2758 = vrot.lane.b32.xlu0 %v2740, 127
  %v2759 = vpop.permute.xlu0 %2758
  %2760 = vrot.lane.b32.xlu0 %v2741, 127
  %v2761 = vpop.permute.xlu0 %2760
  %2762 = vrot.lane.b32.xlu0 %v2742, 127
  %v2763 = vpop.permute.xlu0 %2762
  %2764 = vrot.lane.b32.xlu0 %v2743, 127
  %v2765 = vpop.permute.xlu0 %2764
  %2766 = vrot.lane.b32.xlu0 %v2744, 127
  %v2767 = vpop.permute.xlu0 %2766
  %2768 = vrot.lane.b32.xlu0 %v2745, 127
  %v2769 = vpop.permute.xlu0 %2768
  %v2770 = vsel %vm1436, %v2755, %v2757
  %v2771 = vsel %vm1436, %v2759, %v2761
  %v2772 = vsel %vm1436, %v2763, %v2765
  %v2773 = vsel %vm1436, %v2767, %v2769
  %vm2782 = vcmask 252928
  %v2783 = vsel %vm2782, %v2757, %v2739
  %v2784 = vsel %vm2782, %v2761, %v2741
  %v2785 = vsel %vm2782, %v2765, %v2743
  %v2786 = vsel %vm2782, %v2769, %v2745
  %v2787 = vmax.f32 %v2738, %v2770
  %v2788 = vmax.f32 %v2739, %v2783
  %v2789 = vmax.f32 %v2740, %v2771
  %v2790 = vmax.f32 %v2741, %v2784
  %v2791 = vmax.f32 %v2742, %v2772
  %v2792 = vmax.f32 %v2743, %v2785
  %v2793 = vmax.f32 %v2744, %v2773
  %v2794 = vmax.f32 %v2745, %v2786
  %v2795 = vpack.c.bf16 %v2789, %v2787
  %v2796 = vpack.c.bf16 %v2790, %v2788
  %v2797 = vpack.c.bf16 %v2793, %v2791
  %v2798 = vpack.c.bf16 %v2794, %v2792
  %v2799 = vld [vmem:[%s6] sm:$0xf]
  %v2800 = vld [vmem:[%s6 + $0x4] sm:$0xf]
  %v2801 = vld [vmem:[%s6 + $0x8] sm:$0xf]
  %v2802 = vld [vmem:[%s6 + $0xc] sm:$0xf]
  %v2803 = vld [vmem:[%s6 + $0x10] sm:$0xf]
  %v2804 = vld [vmem:[%s6 + $0x14] sm:$0xf]
  %v2805 = vld [vmem:[%s6 + $0x18] sm:$0xf]
  %v2806 = vld [vmem:[%s6 + $0x1c] sm:$0xf]
  %v2807 = vld [vmem:[%s6 + $0x20] sm:$0xf]
  %v2808 = vld [vmem:[%s6 + $0x24] sm:$0xf]
  %v2809 = vld [vmem:[%s6 + $0x28] sm:$0xf]
  %v2810 = vld [vmem:[%s6 + $0x2c] sm:$0xf]
  %v2811 = vld [vmem:[%s6 + $0x30] sm:$0xf]
  %v2812 = vld [vmem:[%s6 + $0x34] sm:$0xf]
  %v2813 = vld [vmem:[%s6 + $0x38] sm:$0xf]
  %v2814 = vld [vmem:[%s6 + $0x3c] sm:$0xf]
  %v2815 = vld [vmem:[%s6 + $0x40] sm:$0xf]
  %v2816 = vld [vmem:[%s6 + $0x44] sm:$0xf]
  %v2817 = vld [vmem:[%s6 + $0x48] sm:$0xf]
  %v2818 = vld [vmem:[%s6 + $0x4c] sm:$0xf]
  %v2839 = vunpack.c.l.b16 %v2799
  %v2840 = vunpack.c.l.b16 %v2800
  %v2841 = vunpack.c.l.b16 %v2801
  %v2842 = vunpack.c.l.b16 %v2802
  %v2843 = vunpack.c.l.b16 %v2803
  %v2844 = vunpack.c.l.b16 %v2804
  %v2845 = vunpack.c.l.b16 %v2805
  %v2846 = vunpack.c.l.b16 %v2806
  %v2847 = vunpack.c.l.b16 %v2807
  %v2848 = vunpack.c.l.b16 %v2808
  %v2849 = vunpack.c.l.b16 %v2809
  %v2850 = vunpack.c.l.b16 %v2810
  %v2851 = vunpack.c.l.b16 %v2811
  %v2852 = vunpack.c.l.b16 %v2812
  %v2853 = vunpack.c.l.b16 %v2813
  %v2854 = vunpack.c.l.b16 %v2814
  %v2855 = vunpack.c.l.b16 %v2815
  %v2856 = vunpack.c.l.b16 %v2816
  %v2857 = vunpack.c.l.b16 %v2817
  %v2858 = vunpack.c.l.b16 %v2818
  %v2859 = vpack.c.b16 %v2840, %v2839
  %v2860 = vpack.c.b16 %v2842, %v2841
  %v2861 = vpack.c.b16 %v2844, %v2843
  %v2862 = vpack.c.b16 %v2846, %v2845
  %v2863 = vpack.c.b16 %v2848, %v2847
  %v2864 = vpack.c.b16 %v2850, %v2849
  %v2865 = vpack.c.b16 %v2852, %v2851
  %v2866 = vpack.c.b16 %v2854, %v2853
  %v2867 = vpack.c.b16 %v2856, %v2855
  %v2868 = vpack.c.b16 %v2858, %v2857
  %vm2879 = vcmask 261120
  %v2881 = vsel %vm2879, %v2796, 0
  %v2884 = vsel %vm2879, %v2798, 0
  %2886 = vmatprep.subr.bf16.mxu0 0
  %2887 = vmatpush1.bf16.msra.mxu0 %v2859
  %2888 = vmatprep.subr.bf16.mxu0 0
  %2889 = vmatpush1.bf16.msra.mxu0 %v2860
  %2890 = vmatprep.subr.bf16.mxu0 0
  %2891 = vmatpush1.bf16.msra.mxu0 %v2861
  %2892 = vmatprep.subr.bf16.mxu0 0
  %2893 = vmatpush1.bf16.msra.mxu0 %v2862
  %2894 = vmatprep.subr.bf16.mxu0 0
  %2895 = vmatpush1.bf16.msra.mxu0 %v2863
  %2896 = vmatprep.subr.bf16.mxu0 0
  %2897 = vmatpush1.bf16.msra.mxu0 %v2864
  %2898 = vmatprep.subr.bf16.mxu0 0
  %2899 = vmatpush1.bf16.msra.mxu0 %v2865
  %2900 = vmatprep.subr.bf16.mxu0 0
  %2901 = vmatpush1.bf16.msra.mxu0 %v2866
  %2902 = vmatprep.subr.bf16.mxu0 0
  %2903 = vmatpush1.bf16.msra.mxu0 %v2867
  %2904 = vmatprep.subr.bf16.mxu0 0
  %2905 = vmatpush1.bf16.msra.mxu0 %v2868
  %2906 = vmatprep.subr.bf16.mxu0 0
  %2907 = vmatpush1.bf16.msra.mxu0 0
  %2908 = vmatprep.subr.bf16.mxu0 0
  %2909 = vmatpush1.bf16.msra.mxu0 0
  %2910 = vmatprep.subr.bf16.mxu0 0
  %2911 = vmatpush1.bf16.msra.mxu0 0
  %2912 = vmatprep.subr.bf16.mxu0 0
  %2913 = vmatpush1.bf16.msra.mxu0 0
  %2914 = vmatprep.subr.bf16.mxu0 0
  %2915 = vmatpush1.bf16.msra.mxu0 0
  %2916 = vmatprep.subr.bf16.mxu0 0
  %2917 = vmatpush1.bf16.msra.mxu0 0
  %2918 = vmatprep.mubr.bf16.mxu0 %v2881
  %2919 = vmatmul.mubr.bf16.gmra.mrb[0].mxu0 %v2795
  %v2920 = vpop.f32.mrb[0].mxu0
  %v2921 = vadd.f32 0.0, %v2920
  %v2922 = vpop.f32.mrb[0].mxu0
  %v2923 = vpop.f32.mrb[0].mxu0
  %v2924 = vadd.f32 0.0, %v2923
  %v2925 = vpop.f32.mrb[0].mxu0
  %2926 = vmatprep.mubr.bf16.mxu0 %v2884
  %2927 = vmatmul.mubr.bf16.gmra.mrb[0].mxu0 %v2797
  %v2928 = vpop.f32.mrb[0].mxu0
  %v2929 = vadd.f32 0.0, %v2928
  %v2930 = vpop.f32.mrb[0].mxu0
  %v2931 = vpop.f32.mrb[0].mxu0
  %v2932 = vadd.f32 0.0, %v2931
  %v2933 = vpop.f32.mrb[0].mxu0
  %2934 = vdwg.mxu0
  %v2935 = vmax.f32 %v2921, 0.0
  %v2936 = vmax.f32 %v2924, 0.0
  %v2937 = vmax.f32 %v2929, 0.0
  %v2938 = vmax.f32 %v2932, 0.0
  %v2939 = vpack.c.bf16 %v2936, %v2935
  %v2940 = vpack.c.bf16 %v2938, %v2937
  %v2941 = vld [vmem:[%s7] sm:$0xf]
  %v2942 = vld [vmem:[%s7 + $0x4] sm:$0xf]
  %v2943 = vld [vmem:[%s7 + $0x8] sm:$0xf]
  %v2944 = vld [vmem:[%s7 + $0xc] sm:$0xf]
  %v2945 = vld [vmem:[%s7 + $0x10] sm:$0xf]
  %v2946 = vld [vmem:[%s7 + $0x14] sm:$0xf]
  %v2947 = vld [vmem:[%s7 + $0x18] sm:$0xf]
  %v2948 = vld [vmem:[%s7 + $0x1c] sm:$0xf]
  %v2949 = vld [vmem:[%s7 + $0x20] sm:$0xf]
  %v2950 = vld [vmem:[%s7 + $0x24] sm:$0xf]
  %s2951 = scalar_lea.vmem %s7, 40
  %v2952 = vld [vmem:[%s2951] sm:$0xf]
  %v2953 = vld [vmem:[%s2951 + $0x4] sm:$0xf]
  %v2954 = vld [vmem:[%s2951 + $0x8] sm:$0xf]
  %v2955 = vld [vmem:[%s2951 + $0xc] sm:$0xf]
  %v2956 = vld [vmem:[%s2951 + $0x10] sm:$0xf]
  %v2957 = vld [vmem:[%s2951 + $0x14] sm:$0xf]
  %v2958 = vld [vmem:[%s2951 + $0x18] sm:$0xf]
  %v2959 = vld [vmem:[%s2951 + $0x1c] sm:$0xf]
  %v2960 = vld [vmem:[%s2951 + $0x20] sm:$0xf]
  %v2961 = vld [vmem:[%s2951 + $0x24] sm:$0xf]
  %v2963 = vrot.slane %v2939, 4
  %v2974 = vunpack.c.l.b16 %v2952
  %v2975 = vunpack.c.l.b16 %v2953
  %v2976 = vunpack.c.l.b16 %v2954
  %v2977 = vunpack.c.l.b16 %v2955
  %v2978 = vunpack.c.l.b16 %v2956
  %v2979 = vunpack.c.l.b16 %v2957
  %v2980 = vunpack.c.l.b16 %v2958
  %v2981 = vunpack.c.l.b16 %v2959
  %v2982 = vunpack.c.l.b16 %v2960
  %v2983 = vunpack.c.l.b16 %v2961
  %v2984 = vpack.c.b16 %v2975, %v2974
  %v2985 = vpack.c.b16 %v2977, %v2976
  %v2986 = vpack.c.b16 %v2979, %v2978
  %v2987 = vpack.c.b16 %v2981, %v2980
  %v2988 = vpack.c.b16 %v2983, %v2982
  %vm2994 = vcmask 654336
  %v2996 = vsel %vm2994, %v2963, 0
  %2998 = vmatprep.subr.bf16.mxu0 0
  %2999 = vmatpush1.bf16.msra.mxu0 %v2984
  %3000 = vmatprep.subr.bf16.mxu0 0
  %3001 = vmatpush1.bf16.msra.mxu0 %v2985
  %3002 = vmatprep.subr.bf16.mxu0 0
  %3003 = vmatpush1.bf16.msra.mxu0 %v2986
  %3004 = vmatprep.subr.bf16.mxu0 0
  %3005 = vmatpush1.bf16.msra.mxu0 %v2987
  %3006 = vmatprep.subr.bf16.mxu0 0
  %3007 = vmatpush1.bf16.msra.mxu0 %v2988
  %3008 = vmatprep.subr.bf16.mxu0 0
  %3009 = vmatpush1.bf16.msra.mxu0 0
  %3010 = vmatprep.subr.bf16.mxu0 0
  %3011 = vmatpush1.bf16.msra.mxu0 0
  %3012 = vmatprep.subr.bf16.mxu0 0
  %3013 = vmatpush1.bf16.msra.mxu0 0
  %3014 = vmatprep.subr.bf16.mxu0 0
  %3015 = vmatpush1.bf16.msra.mxu0 0
  %3016 = vmatprep.subr.bf16.mxu0 0
  %3017 = vmatpush1.bf16.msra.mxu0 0
  %3018 = vmatprep.subr.bf16.mxu0 0
  %3019 = vmatpush1.bf16.msra.mxu0 0
  %3020 = vmatprep.subr.bf16.mxu0 0
  %3021 = vmatpush1.bf16.msra.mxu0 0
  %3022 = vmatprep.subr.bf16.mxu0 0
  %3023 = vmatpush1.bf16.msra.mxu0 0
  %3024 = vmatprep.subr.bf16.mxu0 0
  %3025 = vmatpush1.bf16.msra.mxu0 0
  %3026 = vmatprep.subr.bf16.mxu0 0
  %3027 = vmatpush1.bf16.msra.mxu0 0
  %3028 = vmatprep.subr.bf16.mxu0 0
  %3029 = vmatpush1.bf16.msra.mxu0 0
  %3030 = vmatprep.mubr.bf16.mxu0 0
  %3031 = vmatmul.mubr.bf16.gmra.mrb[0].mxu0 %v2996
  %v3032 = vpop.f32.mrb[0].mxu0
  %v3033 = vadd.f32 0.0, %v3032
  %v3034 = vpop.f32.mrb[0].mxu0
  %v3035 = vpop.f32.mrb[0].mxu0
  %v3036 = vpop.f32.mrb[0].mxu0
  %3037 = vdwg.mxu0
  %v3048 = vunpack.c.l.b16 %v2941
  %v3049 = vunpack.c.l.b16 %v2942
  %v3050 = vunpack.c.l.b16 %v2943
  %v3051 = vunpack.c.l.b16 %v2944
  %v3052 = vunpack.c.l.b16 %v2945
  %v3053 = vunpack.c.l.b16 %v2946
  %v3054 = vunpack.c.l.b16 %v2947
  %v3055 = vunpack.c.l.b16 %v2948
  %v3056 = vunpack.c.l.b16 %v2949
  %v3057 = vunpack.c.l.b16 %v2950
  %v3058 = vpack.c.b16 %v3049, %v3048
  %v3059 = vpack.c.b16 %v3051, %v3050
  %v3060 = vpack.c.b16 %v3053, %v3052
  %v3061 = vpack.c.b16 %v3055, %v3054
  %v3062 = vpack.c.b16 %v3057, %v3056
  %v3069 = vsel %vm2994, %v2939, 0
  %3071 = vmatprep.subr.bf16.mxu0 0
  %3072 = vmatpush1.bf16.msra.mxu0 %v3058
  %3073 = vmatprep.subr.bf16.mxu0 0
  %3074 = vmatpush1.bf16.msra.mxu0 %v3059
  %3075 = vmatprep.subr.bf16.mxu0 0
  %3076 = vmatpush1.bf16.msra.mxu0 %v3060
  %3077 = vmatprep.subr.bf16.mxu0 0
  %3078 = vmatpush1.bf16.msra.mxu0 %v3061
  %3079 = vmatprep.subr.bf16.mxu0 0
  %3080 = vmatpush1.bf16.msra.mxu0 %v3062
  %3081 = vmatprep.subr.bf16.mxu0 0
  %3082 = vmatpush1.bf16.msra.mxu0 0
  %3083 = vmatprep.subr.bf16.mxu0 0
  %3084 = vmatpush1.bf16.msra.mxu0 0
  %3085 = vmatprep.subr.bf16.mxu0 0
  %3086 = vmatpush1.bf16.msra.mxu0 0
  %3087 = vmatprep.subr.bf16.mxu0 0
  %3088 = vmatpush1.bf16.msra.mxu0 0
  %3089 = vmatprep.subr.bf16.mxu0 0
  %3090 = vmatpush1.bf16.msra.mxu0 0
  %3091 = vmatprep.subr.bf16.mxu0 0
  %3092 = vmatpush1.bf16.msra.mxu0 0
  %3093 = vmatprep.subr.bf16.mxu0 0
  %3094 = vmatpush1.bf16.msra.mxu0 0
  %3095 = vmatprep.subr.bf16.mxu0 0
  %3096 = vmatpush1.bf16.msra.mxu0 0
  %3097 = vmatprep.subr.bf16.mxu0 0
  %3098 = vmatpush1.bf16.msra.mxu0 0
  %3099 = vmatprep.subr.bf16.mxu0 0
  %3100 = vmatpush1.bf16.msra.mxu0 0
  %3101 = vmatprep.subr.bf16.mxu0 0
  %3102 = vmatpush1.bf16.msra.mxu0 0
  %3103 = vmatprep.mubr.bf16.mxu0 0
  %3104 = vmatmul.mubr.bf16.gmra.mrb[0].mxu0 %v3069
  %v3105 = vpop.f32.mrb[0].mxu0
  %v3106 = vadd.f32 %v3033, %v3105
  %v3107 = vpop.f32.mrb[0].mxu0
  %v3108 = vpop.f32.mrb[0].mxu0
  %v3109 = vpop.f32.mrb[0].mxu0
  %3110 = vdwg.mxu0
  %s3111 = scalar_lea.vmem %s7, 80
  %v3112 = vld [vmem:[%s3111] sm:$0xf]
  %v3113 = vld [vmem:[%s3111 + $0x4] sm:$0xf]
  %v3114 = vld [vmem:[%s3111 + $0x8] sm:$0xf]
  %v3115 = vld [vmem:[%s3111 + $0xc] sm:$0xf]
  %v3116 = vld [vmem:[%s3111 + $0x10] sm:$0xf]
  %v3117 = vld [vmem:[%s3111 + $0x14] sm:$0xf]
  %v3118 = vld [vmem:[%s3111 + $0x18] sm:$0xf]
  %v3119 = vld [vmem:[%s3111 + $0x1c] sm:$0xf]
  %v3120 = vld [vmem:[%s3111 + $0x20] sm:$0xf]
  %v3121 = vld [vmem:[%s3111 + $0x24] sm:$0xf]
  %v3132 = vunpack.c.l.b16 %v3112
  %v3133 = vunpack.c.l.b16 %v3113
  %v3134 = vunpack.c.l.b16 %v3114
  %v3135 = vunpack.c.l.b16 %v3115
  %v3136 = vunpack.c.l.b16 %v3116
  %v3137 = vunpack.c.l.b16 %v3117
  %v3138 = vunpack.c.l.b16 %v3118
  %v3139 = vunpack.c.l.b16 %v3119
  %v3140 = vunpack.c.l.b16 %v3120
  %v3141 = vunpack.c.l.b16 %v3121
  %v3142 = vpack.c.b16 %v3133, %v3132
  %v3143 = vpack.c.b16 %v3135, %v3134
  %v3144 = vpack.c.b16 %v3137, %v3136
  %v3145 = vpack.c.b16 %v3139, %v3138
  %v3146 = vpack.c.b16 %v3141, %v3140
  %v3153 = vsel %vm2994, %v2940, 0
  %3155 = vmatprep.subr.bf16.mxu0 0
  %3156 = vmatpush1.bf16.msra.mxu0 %v3142
  %3157 = vmatprep.subr.bf16.mxu0 0
  %3158 = vmatpush1.bf16.msra.mxu0 %v3143
  %3159 = vmatprep.subr.bf16.mxu0 0
  %3160 = vmatpush1.bf16.msra.mxu0 %v3144
  %3161 = vmatprep.subr.bf16.mxu0 0
  %3162 = vmatpush1.bf16.msra.mxu0 %v3145
  %3163 = vmatprep.subr.bf16.mxu0 0
  %3164 = vmatpush1.bf16.msra.mxu0 %v3146
  %3165 = vmatprep.subr.bf16.mxu0 0
  %3166 = vmatpush1.bf16.msra.mxu0 0
  %3167 = vmatprep.subr.bf16.mxu0 0
  %3168 = vmatpush1.bf16.msra.mxu0 0
  %3169 = vmatprep.subr.bf16.mxu0 0
  %3170 = vmatpush1.bf16.msra.mxu0 0
  %3171 = vmatprep.subr.bf16.mxu0 0
  %3172 = vmatpush1.bf16.msra.mxu0 0
  %3173 = vmatprep.subr.bf16.mxu0 0
  %3174 = vmatpush1.bf16.msra.mxu0 0
  %3175 = vmatprep.subr.bf16.mxu0 0
  %3176 = vmatpush1.bf16.msra.mxu0 0
  %3177 = vmatprep.subr.bf16.mxu0 0
  %3178 = vmatpush1.bf16.msra.mxu0 0
  %3179 = vmatprep.subr.bf16.mxu0 0
  %3180 = vmatpush1.bf16.msra.mxu0 0
  %3181 = vmatprep.subr.bf16.mxu0 0
  %3182 = vmatpush1.bf16.msra.mxu0 0
  %3183 = vmatprep.subr.bf16.mxu0 0
  %3184 = vmatpush1.bf16.msra.mxu0 0
  %3185 = vmatprep.subr.bf16.mxu0 0
  %3186 = vmatpush1.bf16.msra.mxu0 0
  %3187 = vmatprep.mubr.bf16.mxu0 0
  %3188 = vmatmul.mubr.bf16.gmra.mrb[0].mxu0 %v3153
  %v3189 = vpop.f32.mrb[0].mxu0
  %v3190 = vadd.f32 0.0, %v3189
  %v3191 = vpop.f32.mrb[0].mxu0
  %v3192 = vpop.f32.mrb[0].mxu0
  %v3193 = vpop.f32.mrb[0].mxu0
  %3194 = vdwg.mxu0
  %v3195 = vadd.f32 %v3106, %v3190
  %s3196 = scalar_lea.vmem %s7, 120
  %v3197 = vld [vmem:[%s3196] sm:$0xf]
  %v3198 = vld [vmem:[%s3196 + $0x4] sm:$0xf]
  %v3199 = vld [vmem:[%s3196 + $0x8] sm:$0xf]
  %v3200 = vld [vmem:[%s3196 + $0xc] sm:$0xf]
  %v3201 = vld [vmem:[%s3196 + $0x10] sm:$0xf]
  %v3202 = vld [vmem:[%s3196 + $0x14] sm:$0xf]
  %v3203 = vld [vmem:[%s3196 + $0x18] sm:$0xf]
  %v3204 = vld [vmem:[%s3196 + $0x1c] sm:$0xf]
  %v3205 = vld [vmem:[%s3196 + $0x20] sm:$0xf]
  %v3206 = vld [vmem:[%s3196 + $0x24] sm:$0xf]
  %v3208 = vrot.slane %v2940, 4
  %v3219 = vunpack.c.l.b16 %v3197
  %v3220 = vunpack.c.l.b16 %v3198
  %v3221 = vunpack.c.l.b16 %v3199
  %v3222 = vunpack.c.l.b16 %v3200
  %v3223 = vunpack.c.l.b16 %v3201
  %v3224 = vunpack.c.l.b16 %v3202
  %v3225 = vunpack.c.l.b16 %v3203
  %v3226 = vunpack.c.l.b16 %v3204
  %v3227 = vunpack.c.l.b16 %v3205
  %v3228 = vunpack.c.l.b16 %v3206
  %v3229 = vpack.c.b16 %v3220, %v3219
  %v3230 = vpack.c.b16 %v3222, %v3221
  %v3231 = vpack.c.b16 %v3224, %v3223
  %v3232 = vpack.c.b16 %v3226, %v3225
  %v3233 = vpack.c.b16 %v3228, %v3227
  %v3240 = vsel %vm2994, %v3208, 0
  %3242 = vmatprep.subr.bf16.mxu0 0
  %3243 = vmatpush1.bf16.msra.mxu0 %v3229
  %3244 = vmatprep.subr.bf16.mxu0 0
  %3245 = vmatpush1.bf16.msra.mxu0 %v3230
  %3246 = vmatprep.subr.bf16.mxu0 0
  %3247 = vmatpush1.bf16.msra.mxu0 %v3231
  %3248 = vmatprep.subr.bf16.mxu0 0
  %3249 = vmatpush1.bf16.msra.mxu0 %v3232
  %3250 = vmatprep.subr.bf16.mxu0 0
  %3251 = vmatpush1.bf16.msra.mxu0 %v3233
  %3252 = vmatprep.subr.bf16.mxu0 0
  %3253 = vmatpush1.bf16.msra.mxu0 0
  %3254 = vmatprep.subr.bf16.mxu0 0
  %3255 = vmatpush1.bf16.msra.mxu0 0
  %3256 = vmatprep.subr.bf16.mxu0 0
  %3257 = vmatpush1.bf16.msra.mxu0 0
  %3258 = vmatprep.subr.bf16.mxu0 0
  %3259 = vmatpush1.bf16.msra.mxu0 0
  %3260 = vmatprep.subr.bf16.mxu0 0
  %3261 = vmatpush1.bf16.msra.mxu0 0
  %3262 = vmatprep.subr.bf16.mxu0 0
  %3263 = vmatpush1.bf16.msra.mxu0 0
  %3264 = vmatprep.subr.bf16.mxu0 0
  %3265 = vmatpush1.bf16.msra.mxu0 0
  %3266 = vmatprep.subr.bf16.mxu0 0
  %3267 = vmatpush1.bf16.msra.mxu0 0
  %3268 = vmatprep.subr.bf16.mxu0 0
  %3269 = vmatpush1.bf16.msra.mxu0 0
  %3270 = vmatprep.subr.bf16.mxu0 0
  %3271 = vmatpush1.bf16.msra.mxu0 0
  %3272 = vmatprep.subr.bf16.mxu0 0
  %3273 = vmatpush1.bf16.msra.mxu0 0
  %3274 = vmatprep.mubr.bf16.mxu0 0
  %3275 = vmatmul.mubr.bf16.gmra.mrb[0].mxu0 %v3240
  %v3276 = vpop.f32.mrb[0].mxu0
  %v3277 = vadd.f32 0.0, %v3276
  %v3278 = vpop.f32.mrb[0].mxu0
  %v3279 = vpop.f32.mrb[0].mxu0
  %v3280 = vpop.f32.mrb[0].mxu0
  %3281 = vdwg.mxu0
  %v3282 = vadd.f32 %v3195, %v3277
  %v3283 = vld [vmem:[%s8] sm:$0x1]
  %v3285 = vlaneseq
  %v3286 = vshrl.u32 %v3285, 7
  %v3287 = vsub.s32 0, %v3286
  %v3288 = vrot.slane %v3283, %v3287
  %v3290 = vadd.f32 %v3282, %v3288
  %v3291 = vmax.f32 %v3290, 0.0
  %v3292 = vlaneseq
  %v3293 = vand.u32 %v3292, 127
  %vm3294 = vcmp.lt.s32.totalorder %v3293, 10
  %v3295 = vsel %vm3294, %v3291, -1e+30
  %3296 = vmax.xlane.f32.xlu0 %v3295
  %v3297 = vpop.xlane.xlu0 %3296
  %v3298 = vsub.f32 %v3295, %v3297
  %v3299 = vmul.f32 %v3298, 1.442695
  %v3300 = vpow.pop %v3299
  %3301 = vadd.xlane.f32.xlu0 %v3300
  %v3302 = vpop.xlane.xlu0 %3301
  %v3303 = vlog2.pop %v3302
  %v3304 = vmul.f32 %v3303, 0.6931472
  %v3305 = vadd.f32 %v3297, %v3304
  %v3306 = vsub.f32 %v3295, %v3305
  %3307 = vst [vmem:[%s9] sm:$0xff] %v3306
  // Predicated region
  $region38: #{forward.1} parent=0 // pred_check
    _
  $region39: #{forward.1} parent=0 // pred_check_branch
    %3309 = sbr.rel (0) target = $region41
  $region40: #{forward.1} parent=0 // pred_region
    _
  $region41: #{forward.1} parent=0 // pred_fallthru
    _
  // Predicated region
  $region42: #{forward.1} parent=0 // pred_check
    _
  $region43: #{forward.1} parent=0 // pred_check_branch
    %3311 = sbr.rel (0) target = $region45
  $region44: #{forward.1} parent=0 // pred_region
    _
  $region45: #{forward.1} parent=0 // pred_fallthru
    _

</llo_original>
